<compile_context>
chip_gen: v7x
topology: tpu7x:2x2x1
jax: 0.10.0
libtpu: 0.0.40
codegen_flags: <defaults>
</compile_context>

<pallas_src>
import functools
import numpy as np

import jax
import jax.numpy as jnp
from jax.experimental import pallas as pl
from jax.experimental.pallas import tpu as pltpu


# ----------------------------------------------------------------------------
# small in-kernel helpers
# ----------------------------------------------------------------------------
def _gelu_exact(x):
    # matches torch.nn.GELU() (erf-based, non-approximate)
    return x * 0.5 * (1.0 + jax.lax.erf(x * 0.7071067811865475))


def _layer_norm(x, g, b, eps=1e-5):
    mu = jnp.mean(x, axis=-1, keepdims=True)
    var = jnp.mean((x - mu) ** 2, axis=-1, keepdims=True)
    return (x - mu) * jax.lax.rsqrt(var + eps) * g + b


# ----------------------------------------------------------------------------
# Kernel 1: Token_Embed  (pointwise convs + per-group max pooling)
#   gridded over groups; weights pre-transposed (in, out); bf16 MXU operands
# ----------------------------------------------------------------------------
def token_embed_kernel(pts_ref, w1_ref, b1_ref, bn1s_ref, bn1b_ref,
                       w2_ref, b2_ref, w3g_ref, w3l_ref, b3_ref,
                       bn2s_ref, bn2b_ref, w4_ref, b4_ref, out_ref):
    TBG, n, _ = pts_ref.shape
    D = out_ref.shape[-1]
    bf16 = jnp.bfloat16

    x = pts_ref[...].reshape(TBG * n, 3)
    w1 = w1_ref[...]                                        # (3, 128)

    # first_conv layer 1: Conv1d(3,128) as 3 broadcast FMAs (K=3 is MXU-hostile)
    f1 = (x[:, 0:1] * w1[0:1, :] + x[:, 1:2] * w1[1:2, :]
          + x[:, 2:3] * w1[2:3, :] + b1_ref[...])
    # BN (eval-mode, folded) + ReLU
    f1 = jnp.maximum(f1 * bn1s_ref[...] + bn1b_ref[...], 0.0)
    # first_conv layer 2: Conv1d(128,256)
    f2 = jnp.dot(f1.astype(bf16), w2_ref[...],
                 preferred_element_type=jnp.float32) + b2_ref[...]   # (TBG*n, 256)

    # per-group global max; the [global, local] concat matmul is split:
    #   f3 = g @ W_g + f2 @ W_l   (no (TBG*n, 512) concat buffer)
    g = jnp.max(f2.reshape(TBG, n, 256), axis=1)                     # (TBG, 256)
    f3_loc = jnp.dot(f2.astype(bf16), w3l_ref[...],
                     preferred_element_type=jnp.float32)             # (TBG*n, 512)
    f3_glb = jnp.dot(g.astype(bf16), w3g_ref[...],
                     preferred_element_type=jnp.float32)             # (TBG, 512)
    f3 = f3_loc.reshape(TBG, n, 512) + f3_glb[:, None, :] + b3_ref[...]
    f3 = jnp.maximum(f3 * bn2s_ref[...] + bn2b_ref[...], 0.0)

    f4 = jnp.dot(f3.reshape(TBG * n, 512).astype(bf16), w4_ref[...],
                 preferred_element_type=jnp.float32) + b4_ref[...]   # (TBG*n, D)
    out_ref[...] = jnp.max(f4.reshape(TBG, n, D), axis=1)            # (TBG, D)


def token_embed(pts, p):
    # pts: (B, Gv, n, 3)
    B, Gv, n, _ = pts.shape
    D = p['w4'].shape[1]
    BG = B * Gv
    # Larger row blocks (perf review): M = TBG*n rows per step fills the
    # 256-wide MXU on v6e/v7x and amortizes ~0.35us/step pipeline overhead.
    TBG = min(64, ((BG + 7) // 8) * 8)
    BGp = ((BG + TBG - 1) // TBG) * TBG

    x = pts.reshape(BG, n, 3)
    if BGp != BG:
        x = jnp.concatenate([x, jnp.zeros((BGp - BG, n, 3), x.dtype)], axis=0)

    def full(a):
        nd = a.ndim
        return pl.BlockSpec(a.shape, lambda i, _nd=nd: (0,) * _nd)

    inputs = [x, p['w1'], p['b1'], p['bn1s'], p['bn1b'], p['w2'], p['b2'],
              p['w3g'], p['w3l'], p['b3'], p['bn2s'], p['bn2b'],
              p['w4'], p['b4']]
    in_specs = ([pl.BlockSpec((TBG, n, 3), lambda i: (i, 0, 0))]
                + [full(a) for a in inputs[1:]])

    out = pl.pallas_call(
        token_embed_kernel,
        out_shape=jax.ShapeDtypeStruct((BGp, D), jnp.float32),
        grid=(BGp // TBG,),
        in_specs=in_specs,
        out_specs=pl.BlockSpec((TBG, D), lambda i: (i, 0)),
        compiler_params=pltpu.CompilerParams(
            dimension_semantics=("parallel",),
            vmem_limit_bytes=32 * 1024 * 1024),
    )(*inputs)
    return out[:BG].reshape(B, Gv, D)


# ----------------------------------------------------------------------------
# Kernel 2: fused encoder, layers on the grid
#   grid = (batch_blocks, depth); per-layer weights streamed one layer/step;
#   x & pos carried in persistent VMEM scratch; out_ref is the fused
#   (softmax-weighted) rec-layer accumulator, resident across the layer axis.
# ----------------------------------------------------------------------------
def encoder_kernel(rec_slot_ref,                      # scalar prefetch (SMEM)
                   x_ref, ctr_ref,
                   posw1_ref, posb1_ref, posw2_ref, posb2_ref,
                   ln1g_ref, ln1b_ref, ln2g_ref, ln2b_ref,
                   projb_ref, fc1b_ref, fc2b_ref,
                   normg_ref, normb_ref, recb_ref,
                   qkvw_ref, projw_ref, fc1w_ref, fc2w_ref, recw_ref,
                   out_ref,
                   x_scr, pos_scr,
                   *, num_heads, rec_layers):
    l = pl.program_id(1)
    Bblk, N, D = x_scr.shape
    Ddec = out_ref.shape[-1]
    H = num_heads
    dh = D // H
    M = Bblk * N
    bf16 = jnp.bfloat16

    # ---- first layer step of each batch block: pos embed, init carries/acc ----
    @pl.when(l == 0)
    def _init():
        c = ctr_ref[...].reshape(M, 3)
        pw1 = posw1_ref[...]                              # (3, 128)
        # Linear(3,128) as 3 FMAs (K=3 is MXU-hostile) -> GELU -> Linear(128,D)
        ph = (c[:, 0:1] * pw1[0:1, :] + c[:, 1:2] * pw1[1:2, :]
              + c[:, 2:3] * pw1[2:3, :] + posb1_ref[...])
        ph = _gelu_exact(ph)
        pos = jnp.dot(ph.astype(bf16), posw2_ref[...],
                      preferred_element_type=jnp.float32) + posb2_ref[...]
        pos_scr[...] = pos.reshape(Bblk, N, D)
        x_scr[...] = x_ref[...]
        out_ref[...] = jnp.zeros_like(out_ref)

    # per-layer small params: dynamic sublane slice of the resident stacks
    ln1g = ln1g_ref[pl.ds(l, 1), :]
    ln1b = ln1b_ref[pl.ds(l, 1), :]
    ln2g = ln2g_ref[pl.ds(l, 1), :]
    ln2b = ln2b_ref[pl.ds(l, 1), :]
    projb = projb_ref[pl.ds(l, 1), :]
    fc1b = fc1b_ref[pl.ds(l, 1), :]
    fc2b = fc2b_ref[pl.ds(l, 1), :]

    xi = (x_scr[...] + pos_scr[...]).reshape(M, D)        # x = block(x + pos)

    # ---- pre-norm multi-head attention (4-D einsums, no split/merge chains) ----
    h = _layer_norm(xi, ln1g, ln1b)
    qkv = jnp.dot(h.astype(bf16), qkvw_ref[0],
                  preferred_element_type=jnp.float32)     # (M, 3D)
    q = qkv[:, 0 * D:1 * D].reshape(Bblk, N, H, dh).astype(bf16)
    k = qkv[:, 1 * D:2 * D].reshape(Bblk, N, H, dh).astype(bf16)
    v = qkv[:, 2 * D:3 * D].reshape(Bblk, N, H, dh).astype(bf16)
    # NOTE: 1/sqrt(dh) is folded into the q-columns of qkv_w host-side.
    s = jnp.einsum('bnhd,bmhd->bhnm', q, k,
                   preferred_element_type=jnp.float32)    # (Bblk, H, N, N)
    s = s - jnp.max(s, axis=-1, keepdims=True)
    p = jnp.exp(s)
    p = p * pl.reciprocal(jnp.sum(p, axis=-1, keepdims=True), approx=True)
    o = jnp.einsum('bhnm,bmhd->bnhd', p.astype(bf16), v,
                   preferred_element_type=jnp.float32)    # (Bblk, N, H, dh)
    attn = o.reshape(M, D)
    attn = jnp.dot(attn.astype(bf16), projw_ref[0],
                   preferred_element_type=jnp.float32) + projb
    xi = xi + attn

    # ---- pre-norm MLP ----
    h = _layer_norm(xi, ln2g, ln2b)
    h = jnp.dot(h.astype(bf16), fc1w_ref[0],
                preferred_element_type=jnp.float32) + fc1b
    h = _gelu_exact(h)                                    # f32 (portable v5e/v6e/v7x)
    h = jnp.dot(h.astype(bf16), fc2w_ref[0],
                preferred_element_type=jnp.float32) + fc2b
    x_new = xi + h
    x_scr[...] = x_new.reshape(Bblk, N, D)

    # ---- rec-layer collection: norm -> proj (softmax(fuse_w) pre-folded) ----
    is_rec = functools.reduce(jnp.logical_or, [l == li for li in rec_layers])

    @pl.when(is_rec)
    def _rec():
        slot = rec_slot_ref[l]
        f = _layer_norm(x_new, normg_ref[...], normb_ref[...])
        recb = recb_ref[pl.ds(slot, 1), :]
        out_ref[...] += (jnp.dot(f.astype(bf16), recw_ref[0],
                                 preferred_element_type=jnp.float32)
                         + recb).reshape(Bblk, N, Ddec)


def encoder_forward(x, centers, params, cfg):
    B, N, D = x.shape
    depth = cfg['encoder_depth']
    heads = cfg['encoder_num_heads']
    rec_layers = tuple(int(i) for i in cfg['rec_layer'])
    Ddec = params['proj_b'].shape[-1]
    dh = D // heads
    scale = float(dh) ** -0.5

    blk = params['blocks']
    posp = params['pos']

    # Host-side folds:
    #  * softmax(fuse_w) into the rec-projection weights / biases
    #  * 1/sqrt(dh) into the q-columns of qkv_w (drops the in-kernel *scale)
    fuse_p = jax.nn.softmax(params['fuse_w'].astype(jnp.float32))          # (L,)
    recw = (params['proj_w'].astype(jnp.float32)
            * fuse_p[:, None, None]).astype(jnp.bfloat16)                  # (L, D, Ddec)
    recb = params['proj_b'].astype(jnp.float32) * fuse_p[:, None]          # (L, Ddec)

    qkvw = blk['qkv_w'].astype(jnp.float32)
    qkvw = jnp.concatenate([qkvw[..., :D] * scale, qkvw[..., D:]],
                           axis=-1).astype(jnp.bfloat16)                   # (depth, D, 3D)

    # layer -> rec-slot map (scalar-prefetched; drives recw's index_map)
    rec_slot_np = np.zeros((depth,), np.int32)
    for s_i, li in enumerate(rec_layers):
        rec_slot_np[li] = s_i
    rec_slot = jnp.asarray(rec_slot_np)

    # Batch blocking: target ~512 MXU rows, pad B (no divisor requirement),
    # and keep >= 2 grid steps along the parallel axis when possible (v7x 2 TCs).
    Bblk = max(1, min(B, -(-512 // max(N, 1))))
    if B >= 2 and -(-B // Bblk) < 2:
        Bblk = -(-B // 2)
    Bp = -(-B // Bblk) * Bblk
    if Bp != B:
        x = jnp.concatenate([x, jnp.zeros((Bp - B, N, D), x.dtype)], axis=0)
        centers = jnp.concatenate(
            [centers, jnp.zeros((Bp - B, N, 3), centers.dtype)], axis=0)

    grid = (Bp // Bblk, depth)

    def const_spec(a):
        nd = a.ndim
        return pl.BlockSpec(a.shape, lambda b, l, rs, _nd=nd: (0,) * _nd)

    def layer_spec(a):
        nd = a.ndim
        return pl.BlockSpec((1,) + a.shape[1:],
                            lambda b, l, rs, _nd=nd: (l,) + (0,) * (_nd - 1))

    small = [posp['w1'], posp['b1'], posp['w2'], posp['b2'],
             blk['ln1_g'], blk['ln1_b'], blk['ln2_g'], blk['ln2_b'],
             blk['proj_b'], blk['fc1_b'], blk['fc2_b'],
             params['norm']['g'], params['norm']['b'], recb]
    big = [qkvw, blk['proj_w'], blk['fc1_w'], blk['fc2_w']]

    inputs = [x, centers] + small + big + [recw]
    in_specs = ([pl.BlockSpec((Bblk, N, D), lambda b, l, rs: (b, 0, 0)),
                 pl.BlockSpec((Bblk, N, 3), lambda b, l, rs: (b, 0, 0))]
                + [const_spec(a) for a in small]
                + [layer_spec(a) for a in big]
                + [pl.BlockSpec((1, D, Ddec), lambda b, l, rs: (rs[l], 0, 0))])

    kern = functools.partial(encoder_kernel, num_heads=heads,
                             rec_layers=rec_layers)
    # NOTE: Ddec < 128 (demo) means a masked store; production Point-MAE
    # Ddec=384 is already lane-dense.
    out = pl.pallas_call(
        kern,
        out_shape=jax.ShapeDtypeStruct((Bp, N, Ddec), jnp.float32),
        grid_spec=pltpu.PrefetchScalarGridSpec(
            num_scalar_prefetch=1,
            grid=grid,
            in_specs=in_specs,
            out_specs=pl.BlockSpec((Bblk, N, Ddec), lambda b, l, rs: (b, 0, 0)),
            scratch_shapes=[pltpu.VMEM((Bblk, N, D), jnp.float32),   # x carry
                            pltpu.VMEM((Bblk, N, D), jnp.float32)]),  # pos carry
        compiler_params=pltpu.CompilerParams(
            dimension_semantics=("parallel", "arbitrary"),
            vmem_limit_bytes=48 * 1024 * 1024),
    )(rec_slot, *inputs)
    return out[:B]


# ----------------------------------------------------------------------------
# glue: random masking (host side, like the reference numpy implementation)
# ----------------------------------------------------------------------------
def mask_center_rand(center_np, mask_ratio, rng):
    B, G, _ = center_np.shape
    num_mask = int(mask_ratio * G)
    mask = np.zeros((B, G), dtype=bool)
    for i in range(B):
        m = np.hstack([np.zeros(G - num_mask), np.ones(num_mask)])
        rng.shuffle(m)
        mask[i] = m.astype(bool)
    return mask


# ----------------------------------------------------------------------------
# parameter init (deterministic, synthetic) — weights pre-transposed (in, out),
# MXU-operand weights in bf16, biases / norms / BN folds in f32.
# ----------------------------------------------------------------------------
def init_params(key, cfg):
    D = cfg['encoder_dim']
    Ddec = cfg['decoder_dim']
    L = len(cfg['rec_layer'])
    depth = cfg['encoder_depth']
    keys = iter(jax.random.split(key, 512))
    bf16 = jnp.bfloat16

    def nrm(shape, s=0.02):
        return (s * jax.random.normal(next(keys), shape)).astype(jnp.float32)

    def bn_fold(C):
        gamma = 1.0 + nrm((1, C), 0.1)
        beta = nrm((1, C), 0.1)
        rmean = jnp.zeros((1, C), jnp.float32)
        rvar = jnp.ones((1, C), jnp.float32)
        scale = gamma * jax.lax.rsqrt(rvar + 1e-5)
        shift = beta - rmean * scale
        return scale, shift

    bn1s, bn1b = bn_fold(128)
    bn2s, bn2b = bn_fold(512)
    tok = dict(
        w1=nrm((3, 128)), b1=nrm((1, 128)), bn1s=bn1s, bn1b=bn1b,
        w2=nrm((128, 256)).astype(bf16), b2=nrm((1, 256)),
        w3g=nrm((256, 512)).astype(bf16),    # acts on the broadcast global feature
        w3l=nrm((256, 512)).astype(bf16),    # acts on the local feature
        b3=nrm((1, 512)), bn2s=bn2s, bn2b=bn2b,
        w4=nrm((512, D)).astype(bf16), b4=nrm((1, D)),
    )
    pos = dict(w1=nrm((3, 128)), b1=nrm((1, 128)),
               w2=nrm((128, D)).astype(bf16), b2=nrm((1, D)))
    blocks = dict(
        ln1_g=jnp.ones((depth, D), jnp.float32),
        ln1_b=jnp.zeros((depth, D), jnp.float32),
        qkv_w=nrm((depth, D, 3 * D)).astype(bf16),      # no qkv bias
        proj_w=nrm((depth, D, D)).astype(bf16),
        proj_b=nrm((depth, D)),
        ln2_g=jnp.ones((depth, D), jnp.float32),
        ln2_b=jnp.zeros((depth, D), jnp.float32),
        fc1_w=nrm((depth, D, 4 * D)).astype(bf16), fc1_b=nrm((depth, 4 * D)),
        fc2_w=nrm((depth, 4 * D, D)).astype(bf16), fc2_b=nrm((depth, D)),
    )
    norm = dict(g=jnp.ones((1, D), jnp.float32), b=jnp.zeros((1, D), jnp.float32))
    proj_w = nrm((L, D, Ddec))   # kept f32; scaled by softmax(fuse_w) + cast at fwd
    proj_b = nrm((L, Ddec))
    fuse_w = nrm((L,), 0.5)
    return dict(tok=tok, pos=pos, blocks=blocks, norm=norm,
                proj_w=proj_w, proj_b=proj_b, fuse_w=fuse_w)


# ----------------------------------------------------------------------------
# MaskTransformer.forward  (training path, len(rec_layer) > 1)
# ----------------------------------------------------------------------------
def mask_transformer_forward(params, neighborhood_np, center_np, cfg, rng=None):
    B, G, gs, _ = neighborhood_np.shape
    rng = rng if rng is not None else np.random.default_rng(0)

    # masking (mask_type == 'rand')
    mask = mask_center_rand(center_np, cfg['mask_ratio'], rng)          # (B, G) bool
    num_mask = int(cfg['mask_ratio'] * G)
    Gv = G - num_mask

    # gather visible groups / centers (row-major order of unmasked entries,
    # same as torch boolean indexing + reshape)
    order = np.argsort(mask.astype(np.int32), axis=1, kind='stable')
    vis_idx = order[:, :Gv]                                             # (B, Gv)
    nb_vis = np.take_along_axis(neighborhood_np, vis_idx[:, :, None, None], axis=1)
    ctr_vis = np.take_along_axis(center_np, vis_idx[:, :, None], axis=1)

    nb_vis = jnp.asarray(nb_vis, jnp.float32)
    ctr_vis = jnp.asarray(ctr_vis, jnp.float32)

    # token embed (gridded kernel), then one fused encoder kernel that also
    # computes pos_embed and the rec-layer projection/fusion.
    x = token_embed(nb_vis, params['tok'])                              # (B, Gv, D)
    x_vis = encoder_forward(x, ctr_vis, params, cfg)                    # (B, Gv, Ddec)
    return x_vis, jnp.asarray(mask)


# ----------------------------------------------------------------------------
if __name__ == "__main__":
    cfg = dict(mask_ratio=0.5, encoder_depth=2, encoder_num_heads=4,
               encoder_dim=64, decoder_dim=64, rec_layer=[0, 1],
               mask_type='rand', shuffle=False, drop_path_rate=0.0)

    B, G, group_size = 2, 16, 16
    key = jax.random.PRNGKey(0)
    k_nb, k_ctr, k_par = jax.random.split(key, 3)
    neighborhood = np.asarray(jax.random.normal(k_nb, (B, G, group_size, 3),
                                                jnp.float32))
    center = np.asarray(jax.random.normal(k_ctr, (B, G, 3), jnp.float32))

    params = init_params(k_par, cfg)

    x_vis, bool_masked_pos = mask_transformer_forward(
        params, neighborhood, center, cfg, rng=np.random.default_rng(0))
    x_vis = jax.block_until_ready(x_vis)

    expected_vis = G - int(cfg['mask_ratio'] * G)
    assert x_vis.shape == (B, expected_vis, cfg['decoder_dim'])
    assert bool_masked_pos.shape == (B, G)
    assert bool(jnp.all(jnp.isfinite(x_vis)))
    print("KERNEL_OK")
</pallas_src>

<mosaic_0001>
module attributes {stable_mosaic.version = 11 : i64} {
  func.func @token_embed_kernel(%arg0: i32, %arg1: memref<16x16x3xf32, #tpu.memory_space<vmem>>, %arg2: memref<3x128xf32, #tpu.memory_space<vmem>>, %arg3: memref<1x128xf32, #tpu.memory_space<vmem>>, %arg4: memref<1x128xf32, #tpu.memory_space<vmem>>, %arg5: memref<1x128xf32, #tpu.memory_space<vmem>>, %arg6: memref<128x256xbf16, #tpu.memory_space<vmem>>, %arg7: memref<1x256xf32, #tpu.memory_space<vmem>>, %arg8: memref<256x512xbf16, #tpu.memory_space<vmem>>, %arg9: memref<256x512xbf16, #tpu.memory_space<vmem>>, %arg10: memref<1x512xf32, #tpu.memory_space<vmem>>, %arg11: memref<1x512xf32, #tpu.memory_space<vmem>>, %arg12: memref<1x512xf32, #tpu.memory_space<vmem>>, %arg13: memref<512x64xbf16, #tpu.memory_space<vmem>>, %arg14: memref<1x64xf32, #tpu.memory_space<vmem>>, %arg15: memref<16x64xf32, #tpu.memory_space<vmem>>) attributes {dimension_semantics = [#tpu.dimension_semantics<parallel>], iteration_bounds = array<i64: 1>, scalar_prefetch = 0 : i64, scratch_operands = 0 : i64, tpu.core_type = #tpu.core_type<tc>, window_params = [{transform_indices = @transform_0, window_bounds = array<i64: 16, 16, 3>}, {pipeline_mode = #tpu.pipeline_mode<synchronous>, transform_indices = @transform_1, window_bounds = array<i64: 3, 128>}, {pipeline_mode = #tpu.pipeline_mode<synchronous>, transform_indices = @transform_2, window_bounds = array<i64: 1, 128>}, {pipeline_mode = #tpu.pipeline_mode<synchronous>, transform_indices = @transform_3, window_bounds = array<i64: 1, 128>}, {pipeline_mode = #tpu.pipeline_mode<synchronous>, transform_indices = @transform_4, window_bounds = array<i64: 1, 128>}, {pipeline_mode = #tpu.pipeline_mode<synchronous>, transform_indices = @transform_5, window_bounds = array<i64: 128, 256>}, {pipeline_mode = #tpu.pipeline_mode<synchronous>, transform_indices = @transform_6, window_bounds = array<i64: 1, 256>}, {pipeline_mode = #tpu.pipeline_mode<synchronous>, transform_indices = @transform_7, window_bounds = array<i64: 256, 512>}, {pipeline_mode = #tpu.pipeline_mode<synchronous>, transform_indices = @transform_8, window_bounds = array<i64: 256, 512>}, {pipeline_mode = #tpu.pipeline_mode<synchronous>, transform_indices = @transform_9, window_bounds = array<i64: 1, 512>}, {pipeline_mode = #tpu.pipeline_mode<synchronous>, transform_indices = @transform_10, window_bounds = array<i64: 1, 512>}, {pipeline_mode = #tpu.pipeline_mode<synchronous>, transform_indices = @transform_11, window_bounds = array<i64: 1, 512>}, {pipeline_mode = #tpu.pipeline_mode<synchronous>, transform_indices = @transform_12, window_bounds = array<i64: 512, 64>}, {pipeline_mode = #tpu.pipeline_mode<synchronous>, transform_indices = @transform_13, window_bounds = array<i64: 1, 64>}, {transform_indices = @transform_14, window_bounds = array<i64: 16, 64>}]} {
    %c0 = arith.constant 0 : index
    %c0_0 = arith.constant 0 : index
    %c0_1 = arith.constant 0 : index
    %0 = vector.load %arg1[%c0, %c0_0, %c0_1] : memref<16x16x3xf32, #tpu.memory_space<vmem>>, vector<16x16x3xf32>
    %1 = vector.shape_cast %0 : vector<16x16x3xf32> to vector<256x3xf32>
    %c0_2 = arith.constant 0 : index
    %c0_3 = arith.constant 0 : index
    %2 = vector.load %arg2[%c0_2, %c0_3] : memref<3x128xf32, #tpu.memory_space<vmem>>, vector<3x128xf32>
    %3 = vector.extract_strided_slice %1 {offsets = [0, 0], sizes = [256, 1], strides = [1, 1]} : vector<256x3xf32> to vector<256x1xf32>
    %4 = vector.extract_strided_slice %2 {offsets = [0, 0], sizes = [1, 128], strides = [1, 1]} : vector<3x128xf32> to vector<1x128xf32>
    %5 = vector.broadcast %3 : vector<256x1xf32> to vector<256x128xf32>
    %6 = vector.broadcast %4 : vector<1x128xf32> to vector<256x128xf32>
    %7 = arith.mulf %5, %6 : vector<256x128xf32>
    %8 = vector.extract_strided_slice %1 {offsets = [0, 1], sizes = [256, 1], strides = [1, 1]} : vector<256x3xf32> to vector<256x1xf32>
    %9 = vector.extract_strided_slice %2 {offsets = [1, 0], sizes = [1, 128], strides = [1, 1]} : vector<3x128xf32> to vector<1x128xf32>
    %10 = vector.broadcast %8 : vector<256x1xf32> to vector<256x128xf32>
    %11 = vector.broadcast %9 : vector<1x128xf32> to vector<256x128xf32>
    %12 = arith.mulf %10, %11 : vector<256x128xf32>
    %13 = arith.addf %7, %12 : vector<256x128xf32>
    %14 = vector.extract_strided_slice %1 {offsets = [0, 2], sizes = [256, 1], strides = [1, 1]} : vector<256x3xf32> to vector<256x1xf32>
    %15 = vector.extract_strided_slice %2 {offsets = [2, 0], sizes = [1, 128], strides = [1, 1]} : vector<3x128xf32> to vector<1x128xf32>
    %16 = vector.broadcast %14 : vector<256x1xf32> to vector<256x128xf32>
    %17 = vector.broadcast %15 : vector<1x128xf32> to vector<256x128xf32>
    %18 = arith.mulf %16, %17 : vector<256x128xf32>
    %19 = arith.addf %13, %18 : vector<256x128xf32>
    %c0_4 = arith.constant 0 : index
    %c0_5 = arith.constant 0 : index
    %20 = vector.load %arg3[%c0_4, %c0_5] : memref<1x128xf32, #tpu.memory_space<vmem>>, vector<1x128xf32>
    %21 = vector.broadcast %20 : vector<1x128xf32> to vector<256x128xf32>
    %22 = arith.addf %19, %21 : vector<256x128xf32>
    %c0_6 = arith.constant 0 : index
    %c0_7 = arith.constant 0 : index
    %23 = vector.load %arg4[%c0_6, %c0_7] : memref<1x128xf32, #tpu.memory_space<vmem>>, vector<1x128xf32>
    %24 = vector.broadcast %23 : vector<1x128xf32> to vector<256x128xf32>
    %25 = arith.mulf %22, %24 : vector<256x128xf32>
    %c0_8 = arith.constant 0 : index
    %c0_9 = arith.constant 0 : index
    %26 = vector.load %arg5[%c0_8, %c0_9] : memref<1x128xf32, #tpu.memory_space<vmem>>, vector<1x128xf32>
    %27 = vector.broadcast %26 : vector<1x128xf32> to vector<256x128xf32>
    %28 = arith.addf %25, %27 : vector<256x128xf32>
    %cst = arith.constant 0.000000e+00 : f32
    %29 = vector.broadcast %cst : f32 to vector<256x128xf32>
    %30 = arith.maximumf %28, %29 : vector<256x128xf32>
    %31 = arith.truncf %30 : vector<256x128xf32> to vector<256x128xbf16>
    %c0_10 = arith.constant 0 : index
    %c0_11 = arith.constant 0 : index
    %32 = vector.load %arg6[%c0_10, %c0_11] : memref<128x256xbf16, #tpu.memory_space<vmem>>, vector<128x256xbf16>
    %cst_12 = arith.constant dense<0.000000e+00> : vector<256x256xf32>
    %33 = tpu.matmul %31, %32, %cst_12 {dimension_numbers = #tpu.dot_dimension_numbers<[1], [0], [0], [1], [0, 0, 1, 1], [], []>} : vector<256x128xbf16>, vector<128x256xbf16>, vector<256x256xf32> -> vector<256x256xf32>
    %c0_13 = arith.constant 0 : index
    %c0_14 = arith.constant 0 : index
    %34 = vector.load %arg7[%c0_13, %c0_14] : memref<1x256xf32, #tpu.memory_space<vmem>>, vector<1x256xf32>
    %35 = vector.broadcast %34 : vector<1x256xf32> to vector<256x256xf32>
    %36 = arith.addf %33, %35 : vector<256x256xf32>
    %37 = vector.shape_cast %36 : vector<256x256xf32> to vector<16x16x256xf32>
    %cst_15 = arith.constant dense<0xFF800000> : vector<16x256xf32>
    %38 = vector.multi_reduction <maximumf>, %37, %cst_15 [1] : vector<16x16x256xf32> to vector<16x256xf32>
    %39 = arith.truncf %36 : vector<256x256xf32> to vector<256x256xbf16>
    %c0_16 = arith.constant 0 : index
    %c0_17 = arith.constant 0 : index
    %40 = vector.load %arg9[%c0_16, %c0_17] : memref<256x512xbf16, #tpu.memory_space<vmem>>, vector<256x512xbf16>
    %cst_18 = arith.constant dense<0.000000e+00> : vector<256x512xf32>
    %41 = tpu.matmul %39, %40, %cst_18 {dimension_numbers = #tpu.dot_dimension_numbers<[1], [0], [0], [1], [0, 0, 1, 1], [], []>} : vector<256x256xbf16>, vector<256x512xbf16>, vector<256x512xf32> -> vector<256x512xf32>
    %42 = arith.truncf %38 : vector<16x256xf32> to vector<16x256xbf16>
    %c0_19 = arith.constant 0 : index
    %c0_20 = arith.constant 0 : index
    %43 = vector.load %arg8[%c0_19, %c0_20] : memref<256x512xbf16, #tpu.memory_space<vmem>>, vector<256x512xbf16>
    %cst_21 = arith.constant dense<0.000000e+00> : vector<16x512xf32>
    %44 = tpu.matmul %42, %43, %cst_21 {dimension_numbers = #tpu.dot_dimension_numbers<[1], [0], [0], [1], [0, 0, 1, 1], [], []>} : vector<16x256xbf16>, vector<256x512xbf16>, vector<16x512xf32> -> vector<16x512xf32>
    %45 = vector.shape_cast %41 : vector<256x512xf32> to vector<16x16x512xf32>
    %46 = vector.shape_cast %44 : vector<16x512xf32> to vector<16x1x512xf32>
    %47 = vector.broadcast %46 : vector<16x1x512xf32> to vector<16x16x512xf32>
    %48 = arith.addf %45, %47 : vector<16x16x512xf32>
    %c0_22 = arith.constant 0 : index
    %c0_23 = arith.constant 0 : index
    %49 = vector.load %arg10[%c0_22, %c0_23] : memref<1x512xf32, #tpu.memory_space<vmem>>, vector<1x512xf32>
    %50 = vector.shape_cast %49 : vector<1x512xf32> to vector<1x1x512xf32>
    %51 = vector.broadcast %50 : vector<1x1x512xf32> to vector<16x16x512xf32>
    %52 = arith.addf %48, %51 : vector<16x16x512xf32>
    %c0_24 = arith.constant 0 : index
    %c0_25 = arith.constant 0 : index
    %53 = vector.load %arg11[%c0_24, %c0_25] : memref<1x512xf32, #tpu.memory_space<vmem>>, vector<1x512xf32>
    %54 = vector.shape_cast %53 : vector<1x512xf32> to vector<1x1x512xf32>
    %55 = vector.broadcast %54 : vector<1x1x512xf32> to vector<16x16x512xf32>
    %56 = arith.mulf %52, %55 : vector<16x16x512xf32>
    %c0_26 = arith.constant 0 : index
    %c0_27 = arith.constant 0 : index
    %57 = vector.load %arg12[%c0_26, %c0_27] : memref<1x512xf32, #tpu.memory_space<vmem>>, vector<1x512xf32>
    %58 = vector.shape_cast %57 : vector<1x512xf32> to vector<1x1x512xf32>
    %59 = vector.broadcast %58 : vector<1x1x512xf32> to vector<16x16x512xf32>
    %60 = arith.addf %56, %59 : vector<16x16x512xf32>
    %cst_28 = arith.constant 0.000000e+00 : f32
    %61 = vector.broadcast %cst_28 : f32 to vector<16x16x512xf32>
    %62 = arith.maximumf %60, %61 : vector<16x16x512xf32>
    %63 = vector.shape_cast %62 : vector<16x16x512xf32> to vector<256x512xf32>
    %64 = arith.truncf %63 : vector<256x512xf32> to vector<256x512xbf16>
    %c0_29 = arith.constant 0 : index
    %c0_30 = arith.constant 0 : index
    %65 = vector.load %arg13[%c0_29, %c0_30] : memref<512x64xbf16, #tpu.memory_space<vmem>>, vector<512x64xbf16>
    %cst_31 = arith.constant dense<0.000000e+00> : vector<256x64xf32>
    %66 = tpu.matmul %64, %65, %cst_31 {dimension_numbers = #tpu.dot_dimension_numbers<[1], [0], [0], [1], [0, 0, 1, 1], [], []>} : vector<256x512xbf16>, vector<512x64xbf16>, vector<256x64xf32> -> vector<256x64xf32>
    %c0_32 = arith.constant 0 : index
    %c0_33 = arith.constant 0 : index
    %67 = vector.load %arg14[%c0_32, %c0_33] : memref<1x64xf32, #tpu.memory_space<vmem>>, vector<1x64xf32>
    %68 = vector.broadcast %67 : vector<1x64xf32> to vector<256x64xf32>
    %69 = arith.addf %66, %68 : vector<256x64xf32>
    %70 = vector.shape_cast %69 : vector<256x64xf32> to vector<16x16x64xf32>
    %cst_34 = arith.constant dense<0xFF800000> : vector<16x64xf32>
    %71 = vector.multi_reduction <maximumf>, %70, %cst_34 [1] : vector<16x16x64xf32> to vector<16x64xf32>
    %c0_35 = arith.constant 0 : index
    %c0_36 = arith.constant 0 : index
    %72 = vector.load %arg15[%c0_35, %c0_36] : memref<16x64xf32, #tpu.memory_space<vmem>>, vector<16x64xf32>
    tpu.vector_store %arg15[%c0_35, %c0_36], %71 {strides = array<i32>} : memref<16x64xf32, #tpu.memory_space<vmem>>, vector<16x64xf32>,
    return
  }
  func.func @transform_0(%arg0: i32) -> (i32, i32, i32) {
    %c0_i32 = arith.constant 0 : i32
    %c0_i32_0 = arith.constant 0 : i32
    %c0_i32_1 = arith.constant 0 : i32
    return %arg0, %c0_i32, %c0_i32_0 : i32, i32, i32
  }
  func.func @transform_1(%arg0: i32) -> (i32, i32) {
    %c0_i32 = arith.constant 0 : i32
    %c0_i32_0 = arith.constant 0 : i32
    %c0_i32_1 = arith.constant 0 : i32
    return %c0_i32, %c0_i32_0 : i32, i32
  }
  func.func @transform_2(%arg0: i32) -> (i32, i32) {
    %c0_i32 = arith.constant 0 : i32
    %c0_i32_0 = arith.constant 0 : i32
    %c0_i32_1 = arith.constant 0 : i32
    return %c0_i32, %c0_i32_0 : i32, i32
  }
  func.func @transform_3(%arg0: i32) -> (i32, i32) {
    %c0_i32 = arith.constant 0 : i32
    %c0_i32_0 = arith.constant 0 : i32
    %c0_i32_1 = arith.constant 0 : i32
    return %c0_i32, %c0_i32_0 : i32, i32
  }
  func.func @transform_4(%arg0: i32) -> (i32, i32) {
    %c0_i32 = arith.constant 0 : i32
    %c0_i32_0 = arith.constant 0 : i32
    %c0_i32_1 = arith.constant 0 : i32
    return %c0_i32, %c0_i32_0 : i32, i32
  }
  func.func @transform_5(%arg0: i32) -> (i32, i32) {
    %c0_i32 = arith.constant 0 : i32
    %c0_i32_0 = arith.constant 0 : i32
    %c0_i32_1 = arith.constant 0 : i32
    return %c0_i32, %c0_i32_0 : i32, i32
  }
  func.func @transform_6(%arg0: i32) -> (i32, i32) {
    %c0_i32 = arith.constant 0 : i32
    %c0_i32_0 = arith.constant 0 : i32
    %c0_i32_1 = arith.constant 0 : i32
    return %c0_i32, %c0_i32_0 : i32, i32
  }
  func.func @transform_7(%arg0: i32) -> (i32, i32) {
    %c0_i32 = arith.constant 0 : i32
    %c0_i32_0 = arith.constant 0 : i32
    %c0_i32_1 = arith.constant 0 : i32
    return %c0_i32, %c0_i32_0 : i32, i32
  }
  func.func @transform_8(%arg0: i32) -> (i32, i32) {
    %c0_i32 = arith.constant 0 : i32
    %c0_i32_0 = arith.constant 0 : i32
    %c0_i32_1 = arith.constant 0 : i32
    return %c0_i32, %c0_i32_0 : i32, i32
  }
  func.func @transform_9(%arg0: i32) -> (i32, i32) {
    %c0_i32 = arith.constant 0 : i32
    %c0_i32_0 = arith.constant 0 : i32
    %c0_i32_1 = arith.constant 0 : i32
    return %c0_i32, %c0_i32_0 : i32, i32
  }
  func.func @transform_10(%arg0: i32) -> (i32, i32) {
    %c0_i32 = arith.constant 0 : i32
    %c0_i32_0 = arith.constant 0 : i32
    %c0_i32_1 = arith.constant 0 : i32
    return %c0_i32, %c0_i32_0 : i32, i32
  }
  func.func @transform_11(%arg0: i32) -> (i32, i32) {
    %c0_i32 = arith.constant 0 : i32
    %c0_i32_0 = arith.constant 0 : i32
    %c0_i32_1 = arith.constant 0 : i32
    return %c0_i32, %c0_i32_0 : i32, i32
  }
  func.func @transform_12(%arg0: i32) -> (i32, i32) {
    %c0_i32 = arith.constant 0 : i32
    %c0_i32_0 = arith.constant 0 : i32
    %c0_i32_1 = arith.constant 0 : i32
    return %c0_i32, %c0_i32_0 : i32, i32
  }
  func.func @transform_13(%arg0: i32) -> (i32, i32) {
    %c0_i32 = arith.constant 0 : i32
    %c0_i32_0 = arith.constant 0 : i32
    %c0_i32_1 = arith.constant 0 : i32
    return %c0_i32, %c0_i32_0 : i32, i32
  }
  func.func @transform_14(%arg0: i32) -> (i32, i32) {
    %c0_i32 = arith.constant 0 : i32
    %c0_i32_0 = arith.constant 0 : i32
    return %arg0, %c0_i32 : i32, i32
  }
}

</mosaic_0001>

<llo_original>
// kernel: tpu_custom_call.1
$region0: #{tpu_custom_call.1}
  #allocation0 [shape = 'u32[]', space=smem, size = 0x4, offset = 0x4, fixed_abs, tag = 'smem constant byte address 0x4 - core index']
  #allocation1 [shape = 'u32[144,128]{1,0:T(1,128)}', space=vmem, size = 0x12000, scoped, tag = 'internal scratch']
  %s0 = inlined_call_operand.vmem [shape: f32[16,16,3], index: 0, kind: input, shape index: {}]
  %s1 = inlined_call_operand.vmem [shape: f32[3,128], index: 1, kind: input, shape index: {}]
  %s2 = inlined_call_operand.vmem [shape: f32[1,128], index: 2, kind: input, shape index: {}]
  %s3 = inlined_call_operand.vmem [shape: f32[1,128], index: 3, kind: input, shape index: {}]
  %s4 = inlined_call_operand.vmem [shape: f32[1,128], index: 4, kind: input, shape index: {}]
  %s5 = inlined_call_operand.hbm [shape: bf16[128,256], index: 5, kind: input, shape index: {}]
  %s6 = inlined_call_operand.vmem [shape: f32[1,256], index: 6, kind: input, shape index: {}]
  %s7 = inlined_call_operand.vmem [shape: bf16[256,512], index: 7, kind: input, shape index: {}]
  %s8 = inlined_call_operand.hbm [shape: bf16[256,512], index: 8, kind: input, shape index: {}]
  %s9 = inlined_call_operand.vmem [shape: f32[1,512], index: 9, kind: input, shape index: {}]
  %s10 = inlined_call_operand.vmem [shape: f32[1,512], index: 10, kind: input, shape index: {}]
  %s11 = inlined_call_operand.vmem [shape: f32[1,512], index: 11, kind: input, shape index: {}]
  %s12 = inlined_call_operand.vmem [shape: bf16[512,64], index: 12, kind: input, shape index: {}]
  %s13 = inlined_call_operand.vmem [shape: f32[1,64], index: 13, kind: input, shape index: {}]
  %s14 = inlined_call_operand.hbm [shape: f32[16,64], index: 14, kind: output, shape index: {}]
  %s15 = sld [smem:[#allocation0]]
  $region74: #{tpu_custom_call.1} parent=0
    _
  %s17 = ssub.s32 1, %s15
  %s18 = scalar_select 0, %s17, %s15
  $region1: #{tpu_custom_call.1} parent=0
    #allocation2 [shape = 'u8[65536]{0}', space=vmem, size = 0x10000, scoped, tag = 'input window, operand 5, single buffered']
    #allocation3 [shape = 's32[1]{0}', space=sflag, size = 0x4, scoped, tag = 'scoped memory for tpu_custom_call.1']
    #allocation4 [shape = 's32[1]{0}', space=sflag, size = 0x4, scoped, tag = 'scoped memory for tpu_custom_call.1']
    #allocation5 [shape = 'u8[262144]{0}', space=vmem, size = 0x40000, scoped, tag = 'input window, operand 8, single buffered']
    #allocation6 [shape = 's32[1]{0}', space=sflag, size = 0x4, scoped, tag = 'scoped memory for tpu_custom_call.1']
    #allocation7 [shape = 'u8[8192]{0}', space=vmem, size = 0x2000, scoped, tag = 'output window, operand 0, single buffered']
    %19 = vsyncpa [#allocation3], 0
    %20 = vsyncpa [#allocation6], 0
    %21 = vsyncpa [#allocation4], 0
    // Predicated region
    $region2: #{tpu_custom_call.1} parent=1 // pred_check
      _
    $region3: #{tpu_custom_call.1} parent=1 // pred_check_branch
      %23 = sbr.rel (0) target = $region5
    $region4: #{tpu_custom_call.1} parent=1 // pred_region
      _
    $region5: #{tpu_custom_call.1} parent=1 // pred_fallthru
      _
    // Predicated region
    $region6: #{tpu_custom_call.1} parent=1 // pred_check
      _
    $region7: #{tpu_custom_call.1} parent=1 // pred_check_branch
      %25 = sbr.rel (0) target = $region9
    $region8: #{tpu_custom_call.1} parent=1 // pred_region
      _
    $region9: #{tpu_custom_call.1} parent=1 // pred_fallthru
      _
    // Predicated region
    $region10: #{tpu_custom_call.1} parent=1 // pred_check
      _
    $region11: #{tpu_custom_call.1} parent=1 // pred_check_branch
      %27 = sbr.rel (0) target = $region13
    $region12: #{tpu_custom_call.1} parent=1 // pred_region
      _
    $region13: #{tpu_custom_call.1} parent=1 // pred_fallthru
      _
    // Predicated region
    $region14: #{tpu_custom_call.1} parent=1 // pred_check
      _
    $region15: #{tpu_custom_call.1} parent=1 // pred_check_branch
      %29 = sbr.rel (0) target = $region17
    $region16: #{tpu_custom_call.1} parent=1 // pred_region
      _
    $region17: #{tpu_custom_call.1} parent=1 // pred_fallthru
      _
    // Predicated region
    $region18: #{tpu_custom_call.1} parent=1 // pred_check
      _
    $region19: #{tpu_custom_call.1} parent=1 // pred_check_branch
      %31 = sbr.rel (0) target = $region21
    $region20: #{tpu_custom_call.1} parent=1 // pred_region
      _
    $region21: #{tpu_custom_call.1} parent=1 // pred_fallthru
      _
    // Predicated region
    $region22: #{tpu_custom_call.1} parent=1 // pred_check
      _
    $region23: #{tpu_custom_call.1} parent=1 // pred_check_branch
      %33 = sbr.rel (0) target = $region25
    $region24: #{tpu_custom_call.1} parent=1 // pred_region
      %s35 = ssub.s32 2048, 2048
      %36 = vsyncadd [#allocation3], %s35
      %s37 = sshll.u32 [#allocation2], 4
      %s38 = int_to_ptr.vmem [resolvable:$true] %s37
      %43 = dma.hbm_to_vmem [thread:$0]  %s5, 2048, %s38, [#allocation3], 128, 128, 8
    $region25: #{tpu_custom_call.1} parent=1 // pred_fallthru
      _
    // Predicated region
    $region26: #{tpu_custom_call.1} parent=1 // pred_check
      _
    $region27: #{tpu_custom_call.1} parent=1 // pred_check_branch
      %45 = sbr.rel (0) target = $region29
    $region28: #{tpu_custom_call.1} parent=1 // pred_region
      _
    $region29: #{tpu_custom_call.1} parent=1 // pred_fallthru
      _
    // Predicated region
    $region30: #{tpu_custom_call.1} parent=1 // pred_check
      _
    $region31: #{tpu_custom_call.1} parent=1 // pred_check_branch
      %47 = sbr.rel (0) target = $region33
    $region32: #{tpu_custom_call.1} parent=1 // pred_region
      _
    $region33: #{tpu_custom_call.1} parent=1 // pred_fallthru
      _
    // Predicated region
    $region34: #{tpu_custom_call.1} parent=1 // pred_check
      _
    $region35: #{tpu_custom_call.1} parent=1 // pred_check_branch
      %49 = sbr.rel (0) target = $region37
    $region36: #{tpu_custom_call.1} parent=1 // pred_region
      %s51 = ssub.s32 8192, 8192
      %52 = vsyncadd [#allocation6], %s51
      %s53 = sshll.u32 [#allocation5], 4
      %s54 = int_to_ptr.vmem [resolvable:$true] %s53
      %59 = dma.hbm_to_vmem [thread:$0]  %s8, 8192, %s54, [#allocation6], 256, 256, 16
    $region37: #{tpu_custom_call.1} parent=1 // pred_fallthru
      _
    // Predicated region
    $region38: #{tpu_custom_call.1} parent=1 // pred_check
      _
    $region39: #{tpu_custom_call.1} parent=1 // pred_check_branch
      %61 = sbr.rel (0) target = $region41
    $region40: #{tpu_custom_call.1} parent=1 // pred_region
      _
    $region41: #{tpu_custom_call.1} parent=1 // pred_fallthru
      _
    // Predicated region
    $region42: #{tpu_custom_call.1} parent=1 // pred_check
      _
    $region43: #{tpu_custom_call.1} parent=1 // pred_check_branch
      %63 = sbr.rel (0) target = $region45
    $region44: #{tpu_custom_call.1} parent=1 // pred_region
      _
    $region45: #{tpu_custom_call.1} parent=1 // pred_fallthru
      _
    // Predicated region
    $region46: #{tpu_custom_call.1} parent=1 // pred_check
      _
    $region47: #{tpu_custom_call.1} parent=1 // pred_check_branch
      %65 = sbr.rel (0) target = $region49
    $region48: #{tpu_custom_call.1} parent=1 // pred_region
      _
    $region49: #{tpu_custom_call.1} parent=1 // pred_fallthru
      _
    // Predicated region
    $region50: #{tpu_custom_call.1} parent=1 // pred_check
      _
    $region51: #{tpu_custom_call.1} parent=1 // pred_check_branch
      %67 = sbr.rel (0) target = $region53
    $region52: #{tpu_custom_call.1} parent=1 // pred_region
      _
    $region53: #{tpu_custom_call.1} parent=1 // pred_fallthru
      _
    // Predicated region
    $region54: #{tpu_custom_call.1} parent=1 // pred_check
      _
    $region55: #{tpu_custom_call.1} parent=1 // pred_check_branch
      %69 = sbr.rel (0) target = $region57
    $region56: #{tpu_custom_call.1} parent=1 // pred_region
      _
    $region57: #{tpu_custom_call.1} parent=1 // pred_fallthru
      _
    // Predicated region
    $region58: #{tpu_custom_call.1} parent=1 // pred_check
      _
    $region59: #{tpu_custom_call.1} parent=1 // pred_check_branch
      %71 = sbr.rel (0) target = $region61
    $region60: #{tpu_custom_call.1} parent=1 // pred_region
      %72 = dma.done [#allocation3], 2048
    $region61: #{tpu_custom_call.1} parent=1 // pred_fallthru
      _
    // Predicated region
    $region62: #{tpu_custom_call.1} parent=1 // pred_check
      _
    $region63: #{tpu_custom_call.1} parent=1 // pred_check_branch
      %74 = sbr.rel (0) target = $region65
    $region64: #{tpu_custom_call.1} parent=1 // pred_region
      %75 = dma.done [#allocation6], 8192
    $region65: #{tpu_custom_call.1} parent=1 // pred_fallthru
      _
    %v77 = vld [vmem:[%s0] sm:$0xff]
    %v78 = vld [vmem:[%s0 + $0x8] sm:$0xff]
    %v79 = vld [vmem:[%s0 + $0x10] sm:$0xff]
    %v80 = vld [vmem:[%s0 + $0x18] sm:$0xff]
    %v81 = vld [vmem:[%s0 + $0x20] sm:$0xff]
    %v82 = vld [vmem:[%s0 + $0x28] sm:$0xff]
    %v83 = vld [vmem:[%s0 + $0x30] sm:$0xff]
    %v84 = vld [vmem:[%s0 + $0x38] sm:$0xff]
    %v85 = vld [vmem:[%s0 + $0x40] sm:$0xff]
    %v86 = vld [vmem:[%s0 + $0x48] sm:$0xff]
    %v87 = vld [vmem:[%s0 + $0x50] sm:$0xff]
    %v88 = vld [vmem:[%s0 + $0x58] sm:$0xff]
    %v89 = vld [vmem:[%s0 + $0x60] sm:$0xff]
    %v90 = vld [vmem:[%s0 + $0x68] sm:$0xff]
    %v91 = vld [vmem:[%s0 + $0x70] sm:$0xff]
    %v92 = vld [vmem:[%s0 + $0x78] sm:$0xff]
    %v93 = vld [vmem:[%s0 + $0x80] sm:$0xff]
    %v94 = vld [vmem:[%s0 + $0x88] sm:$0xff]
    %v95 = vld [vmem:[%s0 + $0x90] sm:$0xff]
    %v96 = vld [vmem:[%s0 + $0x98] sm:$0xff]
    %v97 = vld [vmem:[%s0 + $0xa0] sm:$0xff]
    %v98 = vld [vmem:[%s0 + $0xa8] sm:$0xff]
    %v99 = vld [vmem:[%s0 + $0xb0] sm:$0xff]
    %v100 = vld [vmem:[%s0 + $0xb8] sm:$0xff]
    %v101 = vld [vmem:[%s0 + $0xc0] sm:$0xff]
    %v102 = vld [vmem:[%s0 + $0xc8] sm:$0xff]
    %v103 = vld [vmem:[%s0 + $0xd0] sm:$0xff]
    %v104 = vld [vmem:[%s0 + $0xd8] sm:$0xff]
    %v105 = vld [vmem:[%s0 + $0xe0] sm:$0xff]
    %v106 = vld [vmem:[%s0 + $0xe8] sm:$0xff]
    %v107 = vld [vmem:[%s0 + $0xf0] sm:$0xff]
    %v108 = vld [vmem:[%s0 + $0xf8] sm:$0xff]
    %v109 = vld [vmem:[%s1] sm:$0x7]
    %111 = vset.pattern.permute.xlu0 0
    %112 = vperm.xlu0 %111, %v77
    %v113 = vpop.permute.xlu0 %112
    %116 = vset.pattern.permute.xlu0 0
    %117 = vperm.xlu0 %116, %v78
    %v118 = vpop.permute.xlu0 %117
    %121 = vset.pattern.permute.xlu0 0
    %122 = vperm.xlu0 %121, %v79
    %v123 = vpop.permute.xlu0 %122
    %126 = vset.pattern.permute.xlu0 0
    %127 = vperm.xlu0 %126, %v80
    %v128 = vpop.permute.xlu0 %127
    %131 = vset.pattern.permute.xlu0 0
    %132 = vperm.xlu0 %131, %v81
    %v133 = vpop.permute.xlu0 %132
    %136 = vset.pattern.permute.xlu0 0
    %137 = vperm.xlu0 %136, %v82
    %v138 = vpop.permute.xlu0 %137
    %141 = vset.pattern.permute.xlu0 0
    %142 = vperm.xlu0 %141, %v83
    %v143 = vpop.permute.xlu0 %142
    %146 = vset.pattern.permute.xlu0 0
    %147 = vperm.xlu0 %146, %v84
    %v148 = vpop.permute.xlu0 %147
    %151 = vset.pattern.permute.xlu0 0
    %152 = vperm.xlu0 %151, %v85
    %v153 = vpop.permute.xlu0 %152
    %156 = vset.pattern.permute.xlu0 0
    %157 = vperm.xlu0 %156, %v86
    %v158 = vpop.permute.xlu0 %157
    %161 = vset.pattern.permute.xlu0 0
    %162 = vperm.xlu0 %161, %v87
    %v163 = vpop.permute.xlu0 %162
    %166 = vset.pattern.permute.xlu0 0
    %167 = vperm.xlu0 %166, %v88
    %v168 = vpop.permute.xlu0 %167
    %171 = vset.pattern.permute.xlu0 0
    %172 = vperm.xlu0 %171, %v89
    %v173 = vpop.permute.xlu0 %172
    %176 = vset.pattern.permute.xlu0 0
    %177 = vperm.xlu0 %176, %v90
    %v178 = vpop.permute.xlu0 %177
    %181 = vset.pattern.permute.xlu0 0
    %182 = vperm.xlu0 %181, %v91
    %v183 = vpop.permute.xlu0 %182
    %186 = vset.pattern.permute.xlu0 0
    %187 = vperm.xlu0 %186, %v92
    %v188 = vpop.permute.xlu0 %187
    %191 = vset.pattern.permute.xlu0 0
    %192 = vperm.xlu0 %191, %v93
    %v193 = vpop.permute.xlu0 %192
    %196 = vset.pattern.permute.xlu0 0
    %197 = vperm.xlu0 %196, %v94
    %v198 = vpop.permute.xlu0 %197
    %201 = vset.pattern.permute.xlu0 0
    %202 = vperm.xlu0 %201, %v95
    %v203 = vpop.permute.xlu0 %202
    %206 = vset.pattern.permute.xlu0 0
    %207 = vperm.xlu0 %206, %v96
    %v208 = vpop.permute.xlu0 %207
    %211 = vset.pattern.permute.xlu0 0
    %212 = vperm.xlu0 %211, %v97
    %v213 = vpop.permute.xlu0 %212
    %216 = vset.pattern.permute.xlu0 0
    %217 = vperm.xlu0 %216, %v98
    %v218 = vpop.permute.xlu0 %217
    %221 = vset.pattern.permute.xlu0 0
    %222 = vperm.xlu0 %221, %v99
    %v223 = vpop.permute.xlu0 %222
    %226 = vset.pattern.permute.xlu0 0
    %227 = vperm.xlu0 %226, %v100
    %v228 = vpop.permute.xlu0 %227
    %231 = vset.pattern.permute.xlu0 0
    %232 = vperm.xlu0 %231, %v101
    %v233 = vpop.permute.xlu0 %232
    %236 = vset.pattern.permute.xlu0 0
    %237 = vperm.xlu0 %236, %v102
    %v238 = vpop.permute.xlu0 %237
    %241 = vset.pattern.permute.xlu0 0
    %242 = vperm.xlu0 %241, %v103
    %v243 = vpop.permute.xlu0 %242
    %246 = vset.pattern.permute.xlu0 0
    %247 = vperm.xlu0 %246, %v104
    %v248 = vpop.permute.xlu0 %247
    %251 = vset.pattern.permute.xlu0 0
    %252 = vperm.xlu0 %251, %v105
    %v253 = vpop.permute.xlu0 %252
    %256 = vset.pattern.permute.xlu0 0
    %257 = vperm.xlu0 %256, %v106
    %v258 = vpop.permute.xlu0 %257
    %261 = vset.pattern.permute.xlu0 0
    %262 = vperm.xlu0 %261, %v107
    %v263 = vpop.permute.xlu0 %262
    %266 = vset.pattern.permute.xlu0 0
    %267 = vperm.xlu0 %266, %v108
    %v268 = vpop.permute.xlu0 %267
    %v270 = vlaneseq
    %v271 = vshrl.u32 %v270, 7
    %v272 = vsub.s32 0, %v271
    %v273 = vrot.slane %v109, %v272
    %v274 = vmul.f32 %v113, %v273
    %v275 = vmul.f32 %v118, %v273
    %v276 = vmul.f32 %v123, %v273
    %v277 = vmul.f32 %v128, %v273
    %v278 = vmul.f32 %v133, %v273
    %v279 = vmul.f32 %v138, %v273
    %v280 = vmul.f32 %v143, %v273
    %v281 = vmul.f32 %v148, %v273
    %v282 = vmul.f32 %v153, %v273
    %v283 = vmul.f32 %v158, %v273
    %v284 = vmul.f32 %v163, %v273
    %v285 = vmul.f32 %v168, %v273
    %v286 = vmul.f32 %v173, %v273
    %v287 = vmul.f32 %v178, %v273
    %v288 = vmul.f32 %v183, %v273
    %v289 = vmul.f32 %v188, %v273
    %v290 = vmul.f32 %v193, %v273
    %v291 = vmul.f32 %v198, %v273
    %v292 = vmul.f32 %v203, %v273
    %v293 = vmul.f32 %v208, %v273
    %v294 = vmul.f32 %v213, %v273
    %v295 = vmul.f32 %v218, %v273
    %v296 = vmul.f32 %v223, %v273
    %v297 = vmul.f32 %v228, %v273
    %v298 = vmul.f32 %v233, %v273
    %v299 = vmul.f32 %v238, %v273
    %v300 = vmul.f32 %v243, %v273
    %v301 = vmul.f32 %v248, %v273
    %v302 = vmul.f32 %v253, %v273
    %v303 = vmul.f32 %v258, %v273
    %v304 = vmul.f32 %v263, %v273
    %v305 = vmul.f32 %v268, %v273
    %306 = vset.pattern.permute.xlu0 1
    %307 = vperm.xlu0 %306, %v77
    %v308 = vpop.permute.xlu0 %307
    %310 = vset.pattern.permute.xlu0 1
    %311 = vperm.xlu0 %310, %v78
    %v312 = vpop.permute.xlu0 %311
    %314 = vset.pattern.permute.xlu0 1
    %315 = vperm.xlu0 %314, %v79
    %v316 = vpop.permute.xlu0 %315
    %318 = vset.pattern.permute.xlu0 1
    %319 = vperm.xlu0 %318, %v80
    %v320 = vpop.permute.xlu0 %319
    %322 = vset.pattern.permute.xlu0 1
    %323 = vperm.xlu0 %322, %v81
    %v324 = vpop.permute.xlu0 %323
    %326 = vset.pattern.permute.xlu0 1
    %327 = vperm.xlu0 %326, %v82
    %v328 = vpop.permute.xlu0 %327
    %330 = vset.pattern.permute.xlu0 1
    %331 = vperm.xlu0 %330, %v83
    %v332 = vpop.permute.xlu0 %331
    %334 = vset.pattern.permute.xlu0 1
    %335 = vperm.xlu0 %334, %v84
    %v336 = vpop.permute.xlu0 %335
    %338 = vset.pattern.permute.xlu0 1
    %339 = vperm.xlu0 %338, %v85
    %v340 = vpop.permute.xlu0 %339
    %342 = vset.pattern.permute.xlu0 1
    %343 = vperm.xlu0 %342, %v86
    %v344 = vpop.permute.xlu0 %343
    %346 = vset.pattern.permute.xlu0 1
    %347 = vperm.xlu0 %346, %v87
    %v348 = vpop.permute.xlu0 %347
    %350 = vset.pattern.permute.xlu0 1
    %351 = vperm.xlu0 %350, %v88
    %v352 = vpop.permute.xlu0 %351
    %354 = vset.pattern.permute.xlu0 1
    %355 = vperm.xlu0 %354, %v89
    %v356 = vpop.permute.xlu0 %355
    %358 = vset.pattern.permute.xlu0 1
    %359 = vperm.xlu0 %358, %v90
    %v360 = vpop.permute.xlu0 %359
    %362 = vset.pattern.permute.xlu0 1
    %363 = vperm.xlu0 %362, %v91
    %v364 = vpop.permute.xlu0 %363
    %366 = vset.pattern.permute.xlu0 1
    %367 = vperm.xlu0 %366, %v92
    %v368 = vpop.permute.xlu0 %367
    %370 = vset.pattern.permute.xlu0 1
    %371 = vperm.xlu0 %370, %v93
    %v372 = vpop.permute.xlu0 %371
    %374 = vset.pattern.permute.xlu0 1
    %375 = vperm.xlu0 %374, %v94
    %v376 = vpop.permute.xlu0 %375
    %378 = vset.pattern.permute.xlu0 1
    %379 = vperm.xlu0 %378, %v95
    %v380 = vpop.permute.xlu0 %379
    %382 = vset.pattern.permute.xlu0 1
    %383 = vperm.xlu0 %382, %v96
    %v384 = vpop.permute.xlu0 %383
    %386 = vset.pattern.permute.xlu0 1
    %387 = vperm.xlu0 %386, %v97
    %v388 = vpop.permute.xlu0 %387
    %390 = vset.pattern.permute.xlu0 1
    %391 = vperm.xlu0 %390, %v98
    %v392 = vpop.permute.xlu0 %391
    %394 = vset.pattern.permute.xlu0 1
    %395 = vperm.xlu0 %394, %v99
    %v396 = vpop.permute.xlu0 %395
    %398 = vset.pattern.permute.xlu0 1
    %399 = vperm.xlu0 %398, %v100
    %v400 = vpop.permute.xlu0 %399
    %402 = vset.pattern.permute.xlu0 1
    %403 = vperm.xlu0 %402, %v101
    %v404 = vpop.permute.xlu0 %403
    %406 = vset.pattern.permute.xlu0 1
    %407 = vperm.xlu0 %406, %v102
    %v408 = vpop.permute.xlu0 %407
    %410 = vset.pattern.permute.xlu0 1
    %411 = vperm.xlu0 %410, %v103
    %v412 = vpop.permute.xlu0 %411
    %414 = vset.pattern.permute.xlu0 1
    %415 = vperm.xlu0 %414, %v104
    %v416 = vpop.permute.xlu0 %415
    %418 = vset.pattern.permute.xlu0 1
    %419 = vperm.xlu0 %418, %v105
    %v420 = vpop.permute.xlu0 %419
    %422 = vset.pattern.permute.xlu0 1
    %423 = vperm.xlu0 %422, %v106
    %v424 = vpop.permute.xlu0 %423
    %426 = vset.pattern.permute.xlu0 1
    %427 = vperm.xlu0 %426, %v107
    %v428 = vpop.permute.xlu0 %427
    %430 = vset.pattern.permute.xlu0 1
    %431 = vperm.xlu0 %430, %v108
    %v432 = vpop.permute.xlu0 %431
    %v434 = vlaneseq
    %v435 = vshrl.u32 %v434, 7
    %v436 = vsub.s32 1, %v435
    %v437 = vrot.slane %v109, %v436
    %v438 = vmul.f32 %v308, %v437
    %v439 = vmul.f32 %v312, %v437
    %v440 = vmul.f32 %v316, %v437
    %v441 = vmul.f32 %v320, %v437
    %v442 = vmul.f32 %v324, %v437
    %v443 = vmul.f32 %v328, %v437
    %v444 = vmul.f32 %v332, %v437
    %v445 = vmul.f32 %v336, %v437
    %v446 = vmul.f32 %v340, %v437
    %v447 = vmul.f32 %v344, %v437
    %v448 = vmul.f32 %v348, %v437
    %v449 = vmul.f32 %v352, %v437
    %v450 = vmul.f32 %v356, %v437
    %v451 = vmul.f32 %v360, %v437
    %v452 = vmul.f32 %v364, %v437
    %v453 = vmul.f32 %v368, %v437
    %v454 = vmul.f32 %v372, %v437
    %v455 = vmul.f32 %v376, %v437
    %v456 = vmul.f32 %v380, %v437
    %v457 = vmul.f32 %v384, %v437
    %v458 = vmul.f32 %v388, %v437
    %v459 = vmul.f32 %v392, %v437
    %v460 = vmul.f32 %v396, %v437
    %v461 = vmul.f32 %v400, %v437
    %v462 = vmul.f32 %v404, %v437
    %v463 = vmul.f32 %v408, %v437
    %v464 = vmul.f32 %v412, %v437
    %v465 = vmul.f32 %v416, %v437
    %v466 = vmul.f32 %v420, %v437
    %v467 = vmul.f32 %v424, %v437
    %v468 = vmul.f32 %v428, %v437
    %v469 = vmul.f32 %v432, %v437
    %v470 = vadd.f32 %v274, %v438
    %v471 = vadd.f32 %v275, %v439
    %v472 = vadd.f32 %v276, %v440
    %v473 = vadd.f32 %v277, %v441
    %v474 = vadd.f32 %v278, %v442
    %v475 = vadd.f32 %v279, %v443
    %v476 = vadd.f32 %v280, %v444
    %v477 = vadd.f32 %v281, %v445
    %v478 = vadd.f32 %v282, %v446
    %v479 = vadd.f32 %v283, %v447
    %v480 = vadd.f32 %v284, %v448
    %v481 = vadd.f32 %v285, %v449
    %v482 = vadd.f32 %v286, %v450
    %v483 = vadd.f32 %v287, %v451
    %v484 = vadd.f32 %v288, %v452
    %v485 = vadd.f32 %v289, %v453
    %v486 = vadd.f32 %v290, %v454
    %v487 = vadd.f32 %v291, %v455
    %v488 = vadd.f32 %v292, %v456
    %v489 = vadd.f32 %v293, %v457
    %v490 = vadd.f32 %v294, %v458
    %v491 = vadd.f32 %v295, %v459
    %v492 = vadd.f32 %v296, %v460
    %v493 = vadd.f32 %v297, %v461
    %v494 = vadd.f32 %v298, %v462
    %v495 = vadd.f32 %v299, %v463
    %v496 = vadd.f32 %v300, %v464
    %v497 = vadd.f32 %v301, %v465
    %v498 = vadd.f32 %v302, %v466
    %v499 = vadd.f32 %v303, %v467
    %v500 = vadd.f32 %v304, %v468
    %v501 = vadd.f32 %v305, %v469
    %502 = vset.pattern.permute.xlu0 2
    %503 = vperm.xlu0 %502, %v77
    %v504 = vpop.permute.xlu0 %503
    %506 = vset.pattern.permute.xlu0 2
    %507 = vperm.xlu0 %506, %v78
    %v508 = vpop.permute.xlu0 %507
    %510 = vset.pattern.permute.xlu0 2
    %511 = vperm.xlu0 %510, %v79
    %v512 = vpop.permute.xlu0 %511
    %514 = vset.pattern.permute.xlu0 2
    %515 = vperm.xlu0 %514, %v80
    %v516 = vpop.permute.xlu0 %515
    %518 = vset.pattern.permute.xlu0 2
    %519 = vperm.xlu0 %518, %v81
    %v520 = vpop.permute.xlu0 %519
    %522 = vset.pattern.permute.xlu0 2
    %523 = vperm.xlu0 %522, %v82
    %v524 = vpop.permute.xlu0 %523
    %526 = vset.pattern.permute.xlu0 2
    %527 = vperm.xlu0 %526, %v83
    %v528 = vpop.permute.xlu0 %527
    %530 = vset.pattern.permute.xlu0 2
    %531 = vperm.xlu0 %530, %v84
    %v532 = vpop.permute.xlu0 %531
    %534 = vset.pattern.permute.xlu0 2
    %535 = vperm.xlu0 %534, %v85
    %v536 = vpop.permute.xlu0 %535
    %538 = vset.pattern.permute.xlu0 2
    %539 = vperm.xlu0 %538, %v86
    %v540 = vpop.permute.xlu0 %539
    %542 = vset.pattern.permute.xlu0 2
    %543 = vperm.xlu0 %542, %v87
    %v544 = vpop.permute.xlu0 %543
    %546 = vset.pattern.permute.xlu0 2
    %547 = vperm.xlu0 %546, %v88
    %v548 = vpop.permute.xlu0 %547
    %550 = vset.pattern.permute.xlu0 2
    %551 = vperm.xlu0 %550, %v89
    %v552 = vpop.permute.xlu0 %551
    %554 = vset.pattern.permute.xlu0 2
    %555 = vperm.xlu0 %554, %v90
    %v556 = vpop.permute.xlu0 %555
    %558 = vset.pattern.permute.xlu0 2
    %559 = vperm.xlu0 %558, %v91
    %v560 = vpop.permute.xlu0 %559
    %562 = vset.pattern.permute.xlu0 2
    %563 = vperm.xlu0 %562, %v92
    %v564 = vpop.permute.xlu0 %563
    %566 = vset.pattern.permute.xlu0 2
    %567 = vperm.xlu0 %566, %v93
    %v568 = vpop.permute.xlu0 %567
    %570 = vset.pattern.permute.xlu0 2
    %571 = vperm.xlu0 %570, %v94
    %v572 = vpop.permute.xlu0 %571
    %574 = vset.pattern.permute.xlu0 2
    %575 = vperm.xlu0 %574, %v95
    %v576 = vpop.permute.xlu0 %575
    %578 = vset.pattern.permute.xlu0 2
    %579 = vperm.xlu0 %578, %v96
    %v580 = vpop.permute.xlu0 %579
    %582 = vset.pattern.permute.xlu0 2
    %583 = vperm.xlu0 %582, %v97
    %v584 = vpop.permute.xlu0 %583
    %586 = vset.pattern.permute.xlu0 2
    %587 = vperm.xlu0 %586, %v98
    %v588 = vpop.permute.xlu0 %587
    %590 = vset.pattern.permute.xlu0 2
    %591 = vperm.xlu0 %590, %v99
    %v592 = vpop.permute.xlu0 %591
    %594 = vset.pattern.permute.xlu0 2
    %595 = vperm.xlu0 %594, %v100
    %v596 = vpop.permute.xlu0 %595
    %598 = vset.pattern.permute.xlu0 2
    %599 = vperm.xlu0 %598, %v101
    %v600 = vpop.permute.xlu0 %599
    %602 = vset.pattern.permute.xlu0 2
    %603 = vperm.xlu0 %602, %v102
    %v604 = vpop.permute.xlu0 %603
    %606 = vset.pattern.permute.xlu0 2
    %607 = vperm.xlu0 %606, %v103
    %v608 = vpop.permute.xlu0 %607
    %610 = vset.pattern.permute.xlu0 2
    %611 = vperm.xlu0 %610, %v104
    %v612 = vpop.permute.xlu0 %611
    %614 = vset.pattern.permute.xlu0 2
    %615 = vperm.xlu0 %614, %v105
    %v616 = vpop.permute.xlu0 %615
    %618 = vset.pattern.permute.xlu0 2
    %619 = vperm.xlu0 %618, %v106
    %v620 = vpop.permute.xlu0 %619
    %622 = vset.pattern.permute.xlu0 2
    %623 = vperm.xlu0 %622, %v107
    %v624 = vpop.permute.xlu0 %623
    %626 = vset.pattern.permute.xlu0 2
    %627 = vperm.xlu0 %626, %v108
    %v628 = vpop.permute.xlu0 %627
    %v630 = vlaneseq
    %v631 = vshrl.u32 %v630, 7
    %v632 = vsub.s32 2, %v631
    %v633 = vrot.slane %v109, %v632
    %v634 = vmul.f32 %v504, %v633
    %v635 = vmul.f32 %v508, %v633
    %v636 = vmul.f32 %v512, %v633
    %v637 = vmul.f32 %v516, %v633
    %v638 = vmul.f32 %v520, %v633
    %v639 = vmul.f32 %v524, %v633
    %v640 = vmul.f32 %v528, %v633
    %v641 = vmul.f32 %v532, %v633
    %v642 = vmul.f32 %v536, %v633
    %v643 = vmul.f32 %v540, %v633
    %v644 = vmul.f32 %v544, %v633
    %v645 = vmul.f32 %v548, %v633
    %v646 = vmul.f32 %v552, %v633
    %v647 = vmul.f32 %v556, %v633
    %v648 = vmul.f32 %v560, %v633
    %v649 = vmul.f32 %v564, %v633
    %v650 = vmul.f32 %v568, %v633
    %v651 = vmul.f32 %v572, %v633
    %v652 = vmul.f32 %v576, %v633
    %v653 = vmul.f32 %v580, %v633
    %v654 = vmul.f32 %v584, %v633
    %v655 = vmul.f32 %v588, %v633
    %v656 = vmul.f32 %v592, %v633
    %v657 = vmul.f32 %v596, %v633
    %v658 = vmul.f32 %v600, %v633
    %v659 = vmul.f32 %v604, %v633
    %v660 = vmul.f32 %v608, %v633
    %v661 = vmul.f32 %v612, %v633
    %v662 = vmul.f32 %v616, %v633
    %v663 = vmul.f32 %v620, %v633
    %v664 = vmul.f32 %v624, %v633
    %v665 = vmul.f32 %v628, %v633
    %v666 = vadd.f32 %v470, %v634
    %v667 = vadd.f32 %v471, %v635
    %v668 = vadd.f32 %v472, %v636
    %v669 = vadd.f32 %v473, %v637
    %v670 = vadd.f32 %v474, %v638
    %v671 = vadd.f32 %v475, %v639
    %v672 = vadd.f32 %v476, %v640
    %v673 = vadd.f32 %v477, %v641
    %v674 = vadd.f32 %v478, %v642
    %v675 = vadd.f32 %v479, %v643
    %v676 = vadd.f32 %v480, %v644
    %v677 = vadd.f32 %v481, %v645
    %v678 = vadd.f32 %v482, %v646
    %v679 = vadd.f32 %v483, %v647
    %v680 = vadd.f32 %v484, %v648
    %v681 = vadd.f32 %v485, %v649
    %v682 = vadd.f32 %v486, %v650
    %v683 = vadd.f32 %v487, %v651
    %v684 = vadd.f32 %v488, %v652
    %v685 = vadd.f32 %v489, %v653
    %v686 = vadd.f32 %v490, %v654
    %v687 = vadd.f32 %v491, %v655
    %v688 = vadd.f32 %v492, %v656
    %v689 = vadd.f32 %v493, %v657
    %v690 = vadd.f32 %v494, %v658
    %v691 = vadd.f32 %v495, %v659
    %v692 = vadd.f32 %v496, %v660
    %v693 = vadd.f32 %v497, %v661
    %v694 = vadd.f32 %v498, %v662
    %v695 = vadd.f32 %v499, %v663
    %v696 = vadd.f32 %v500, %v664
    %v697 = vadd.f32 %v501, %v665
    %v698 = vld [vmem:[%s2] sm:$0x1]
    %v700 = vlaneseq
    %v701 = vshrl.u32 %v700, 7
    %v702 = vsub.s32 0, %v701
    %v703 = vrot.slane %v698, %v702
    %v705 = vadd.f32 %v666, %v703
    %v706 = vadd.f32 %v667, %v703
    %v707 = vadd.f32 %v668, %v703
    %v708 = vadd.f32 %v669, %v703
    %v709 = vadd.f32 %v670, %v703
    %v710 = vadd.f32 %v671, %v703
    %v711 = vadd.f32 %v672, %v703
    %v712 = vadd.f32 %v673, %v703
    %v713 = vadd.f32 %v674, %v703
    %v714 = vadd.f32 %v675, %v703
    %v715 = vadd.f32 %v676, %v703
    %v716 = vadd.f32 %v677, %v703
    %v717 = vadd.f32 %v678, %v703
    %v718 = vadd.f32 %v679, %v703
    %v719 = vadd.f32 %v680, %v703
    %v720 = vadd.f32 %v681, %v703
    %v721 = vadd.f32 %v682, %v703
    %v722 = vadd.f32 %v683, %v703
    %v723 = vadd.f32 %v684, %v703
    %v724 = vadd.f32 %v685, %v703
    %v725 = vadd.f32 %v686, %v703
    %v726 = vadd.f32 %v687, %v703
    %v727 = vadd.f32 %v688, %v703
    %v728 = vadd.f32 %v689, %v703
    %v729 = vadd.f32 %v690, %v703
    %v730 = vadd.f32 %v691, %v703
    %v731 = vadd.f32 %v692, %v703
    %v732 = vadd.f32 %v693, %v703
    %v733 = vadd.f32 %v694, %v703
    %v734 = vadd.f32 %v695, %v703
    %v735 = vadd.f32 %v696, %v703
    %v736 = vadd.f32 %v697, %v703
    %v737 = vld [vmem:[%s3] sm:$0x1]
    %v739 = vlaneseq
    %v740 = vshrl.u32 %v739, 7
    %v741 = vsub.s32 0, %v740
    %v742 = vrot.slane %v737, %v741
    %v744 = vmul.f32 %v705, %v742
    %v745 = vmul.f32 %v706, %v742
    %v746 = vmul.f32 %v707, %v742
    %v747 = vmul.f32 %v708, %v742
    %v748 = vmul.f32 %v709, %v742
    %v749 = vmul.f32 %v710, %v742
    %v750 = vmul.f32 %v711, %v742
    %v751 = vmul.f32 %v712, %v742
    %v752 = vmul.f32 %v713, %v742
    %v753 = vmul.f32 %v714, %v742
    %v754 = vmul.f32 %v715, %v742
    %v755 = vmul.f32 %v716, %v742
    %v756 = vmul.f32 %v717, %v742
    %v757 = vmul.f32 %v718, %v742
    %v758 = vmul.f32 %v719, %v742
    %v759 = vmul.f32 %v720, %v742
    %v760 = vmul.f32 %v721, %v742
    %v761 = vmul.f32 %v722, %v742
    %v762 = vmul.f32 %v723, %v742
    %v763 = vmul.f32 %v724, %v742
    %v764 = vmul.f32 %v725, %v742
    %v765 = vmul.f32 %v726, %v742
    %v766 = vmul.f32 %v727, %v742
    %v767 = vmul.f32 %v728, %v742
    %v768 = vmul.f32 %v729, %v742
    %v769 = vmul.f32 %v730, %v742
    %v770 = vmul.f32 %v731, %v742
    %v771 = vmul.f32 %v732, %v742
    %v772 = vmul.f32 %v733, %v742
    %v773 = vmul.f32 %v734, %v742
    %v774 = vmul.f32 %v735, %v742
    %v775 = vmul.f32 %v736, %v742
    %v776 = vld [vmem:[%s4] sm:$0x1]
    %v778 = vlaneseq
    %v779 = vshrl.u32 %v778, 7
    %v780 = vsub.s32 0, %v779
    %v781 = vrot.slane %v776, %v780
    %v783 = vadd.f32 %v744, %v781
    %v784 = vadd.f32 %v745, %v781
    %v785 = vadd.f32 %v746, %v781
    %v786 = vadd.f32 %v747, %v781
    %v787 = vadd.f32 %v748, %v781
    %v788 = vadd.f32 %v749, %v781
    %v789 = vadd.f32 %v750, %v781
    %v790 = vadd.f32 %v751, %v781
    %v791 = vadd.f32 %v752, %v781
    %v792 = vadd.f32 %v753, %v781
    %v793 = vadd.f32 %v754, %v781
    %v794 = vadd.f32 %v755, %v781
    %v795 = vadd.f32 %v756, %v781
    %v796 = vadd.f32 %v757, %v781
    %v797 = vadd.f32 %v758, %v781
    %v798 = vadd.f32 %v759, %v781
    %v799 = vadd.f32 %v760, %v781
    %v800 = vadd.f32 %v761, %v781
    %v801 = vadd.f32 %v762, %v781
    %v802 = vadd.f32 %v763, %v781
    %v803 = vadd.f32 %v764, %v781
    %v804 = vadd.f32 %v765, %v781
    %v805 = vadd.f32 %v766, %v781
    %v806 = vadd.f32 %v767, %v781
    %v807 = vadd.f32 %v768, %v781
    %v808 = vadd.f32 %v769, %v781
    %v809 = vadd.f32 %v770, %v781
    %v810 = vadd.f32 %v771, %v781
    %v811 = vadd.f32 %v772, %v781
    %v812 = vadd.f32 %v773, %v781
    %v813 = vadd.f32 %v774, %v781
    %v814 = vadd.f32 %v775, %v781
    %v815 = vmax.f32 %v783, 0.0
    %v816 = vmax.f32 %v784, 0.0
    %v817 = vmax.f32 %v785, 0.0
    %v818 = vmax.f32 %v786, 0.0
    %v819 = vmax.f32 %v787, 0.0
    %v820 = vmax.f32 %v788, 0.0
    %v821 = vmax.f32 %v789, 0.0
    %v822 = vmax.f32 %v790, 0.0
    %v823 = vmax.f32 %v791, 0.0
    %v824 = vmax.f32 %v792, 0.0
    %v825 = vmax.f32 %v793, 0.0
    %v826 = vmax.f32 %v794, 0.0
    %v827 = vmax.f32 %v795, 0.0
    %v828 = vmax.f32 %v796, 0.0
    %v829 = vmax.f32 %v797, 0.0
    %v830 = vmax.f32 %v798, 0.0
    %v831 = vmax.f32 %v799, 0.0
    %v832 = vmax.f32 %v800, 0.0
    %v833 = vmax.f32 %v801, 0.0
    %v834 = vmax.f32 %v802, 0.0
    %v835 = vmax.f32 %v803, 0.0
    %v836 = vmax.f32 %v804, 0.0
    %v837 = vmax.f32 %v805, 0.0
    %v838 = vmax.f32 %v806, 0.0
    %v839 = vmax.f32 %v807, 0.0
    %v840 = vmax.f32 %v808, 0.0
    %v841 = vmax.f32 %v809, 0.0
    %v842 = vmax.f32 %v810, 0.0
    %v843 = vmax.f32 %v811, 0.0
    %v844 = vmax.f32 %v812, 0.0
    %v845 = vmax.f32 %v813, 0.0
    %v846 = vmax.f32 %v814, 0.0
    %v847 = vpack.c.bf16 %v816, %v815
    %v848 = vpack.c.bf16 %v818, %v817
    %v849 = vpack.c.bf16 %v820, %v819
    %v850 = vpack.c.bf16 %v822, %v821
    %v851 = vpack.c.bf16 %v824, %v823
    %v852 = vpack.c.bf16 %v826, %v825
    %v853 = vpack.c.bf16 %v828, %v827
    %v854 = vpack.c.bf16 %v830, %v829
    %v855 = vpack.c.bf16 %v832, %v831
    %v856 = vpack.c.bf16 %v834, %v833
    %v857 = vpack.c.bf16 %v836, %v835
    %v858 = vpack.c.bf16 %v838, %v837
    %v859 = vpack.c.bf16 %v840, %v839
    %v860 = vpack.c.bf16 %v842, %v841
    %v861 = vpack.c.bf16 %v844, %v843
    %v862 = vpack.c.bf16 %v846, %v845
    %v863 = vld [vmem:[#allocation2] sm:$0xff]
    %v864 = vld [vmem:[#allocation2 + $0x8] sm:$0xff]
    %v865 = vld [vmem:[#allocation2 + $0x10] sm:$0xff]
    %v866 = vld [vmem:[#allocation2 + $0x18] sm:$0xff]
    %v867 = vld [vmem:[#allocation2 + $0x20] sm:$0xff]
    %v868 = vld [vmem:[#allocation2 + $0x28] sm:$0xff]
    %v869 = vld [vmem:[#allocation2 + $0x30] sm:$0xff]
    %v870 = vld [vmem:[#allocation2 + $0x38] sm:$0xff]
    %v871 = vld [vmem:[#allocation2 + $0x40] sm:$0xff]
    %v872 = vld [vmem:[#allocation2 + $0x48] sm:$0xff]
    %v873 = vld [vmem:[#allocation2 + $0x50] sm:$0xff]
    %v874 = vld [vmem:[#allocation2 + $0x58] sm:$0xff]
    %v875 = vld [vmem:[#allocation2 + $0x60] sm:$0xff]
    %v876 = vld [vmem:[#allocation2 + $0x68] sm:$0xff]
    %v877 = vld [vmem:[#allocation2 + $0x70] sm:$0xff]
    %v878 = vld [vmem:[#allocation2 + $0x78] sm:$0xff]
    %v879 = vld [vmem:[%s6] sm:$0x3]
    %v881 = vlaneseq
    %v882 = vshrl.u32 %v881, 7
    %v883 = vsub.s32 0, %v882
    %v884 = vrot.slane %v879, %v883
    %v885 = vlaneseq
    %v886 = vshrl.u32 %v885, 7
    %v887 = vsub.s32 1, %v886
    %v888 = vrot.slane %v879, %v887
    %v907 = vunpack.c.l.b16 %v863
    %v908 = vunpack.c.h.b16 %v863
    %v909 = vunpack.c.l.b16 %v864
    %v910 = vunpack.c.h.b16 %v864
    %v911 = vunpack.c.l.b16 %v865
    %v912 = vunpack.c.h.b16 %v865
    %v913 = vunpack.c.l.b16 %v866
    %v914 = vunpack.c.h.b16 %v866
    %v915 = vunpack.c.l.b16 %v867
    %v916 = vunpack.c.h.b16 %v867
    %v917 = vunpack.c.l.b16 %v868
    %v918 = vunpack.c.h.b16 %v868
    %v919 = vunpack.c.l.b16 %v869
    %v920 = vunpack.c.h.b16 %v869
    %v921 = vunpack.c.l.b16 %v870
    %v922 = vunpack.c.h.b16 %v870
    %v923 = vunpack.c.l.b16 %v871
    %v924 = vunpack.c.h.b16 %v871
    %v925 = vunpack.c.l.b16 %v872
    %v926 = vunpack.c.h.b16 %v872
    %v927 = vunpack.c.l.b16 %v873
    %v928 = vunpack.c.h.b16 %v873
    %v929 = vunpack.c.l.b16 %v874
    %v930 = vunpack.c.h.b16 %v874
    %v931 = vunpack.c.l.b16 %v875
    %v932 = vunpack.c.h.b16 %v875
    %v933 = vunpack.c.l.b16 %v876
    %v934 = vunpack.c.h.b16 %v876
    %v935 = vunpack.c.l.b16 %v877
    %v936 = vunpack.c.h.b16 %v877
    %v937 = vunpack.c.l.b16 %v878
    %v938 = vunpack.c.h.b16 %v878
    %v939 = vpack.c.b16 %v909, %v907
    %v940 = vpack.c.b16 %v910, %v908
    %v941 = vpack.c.b16 %v913, %v911
    %v942 = vpack.c.b16 %v914, %v912
    %v943 = vpack.c.b16 %v917, %v915
    %v944 = vpack.c.b16 %v918, %v916
    %v945 = vpack.c.b16 %v921, %v919
    %v946 = vpack.c.b16 %v922, %v920
    %v947 = vpack.c.b16 %v925, %v923
    %v948 = vpack.c.b16 %v926, %v924
    %v949 = vpack.c.b16 %v929, %v927
    %v950 = vpack.c.b16 %v930, %v928
    %v951 = vpack.c.b16 %v933, %v931
    %v952 = vpack.c.b16 %v934, %v932
    %v953 = vpack.c.b16 %v937, %v935
    %v954 = vpack.c.b16 %v938, %v936
    %971 = vmatprep.subr.bf16.mxu0 %v940
    %972 = vmatpush1.bf16.msra.mxu0 %v939
    %973 = vmatprep.subr.bf16.mxu0 %v942
    %974 = vmatpush1.bf16.msra.mxu0 %v941
    %975 = vmatprep.subr.bf16.mxu0 %v944
    %976 = vmatpush1.bf16.msra.mxu0 %v943
    %977 = vmatprep.subr.bf16.mxu0 %v946
    %978 = vmatpush1.bf16.msra.mxu0 %v945
    %979 = vmatprep.subr.bf16.mxu0 %v948
    %980 = vmatpush1.bf16.msra.mxu0 %v947
    %981 = vmatprep.subr.bf16.mxu0 %v950
    %982 = vmatpush1.bf16.msra.mxu0 %v949
    %983 = vmatprep.subr.bf16.mxu0 %v952
    %984 = vmatpush1.bf16.msra.mxu0 %v951
    %985 = vmatprep.subr.bf16.mxu0 %v954
    %986 = vmatpush1.bf16.msra.mxu0 %v953
    %987 = vmatprep.subr.bf16.mxu0 0
    %988 = vmatpush1.bf16.msra.mxu0 0
    %989 = vmatprep.subr.bf16.mxu0 0
    %990 = vmatpush1.bf16.msra.mxu0 0
    %991 = vmatprep.subr.bf16.mxu0 0
    %992 = vmatpush1.bf16.msra.mxu0 0
    %993 = vmatprep.subr.bf16.mxu0 0
    %994 = vmatpush1.bf16.msra.mxu0 0
    %995 = vmatprep.subr.bf16.mxu0 0
    %996 = vmatpush1.bf16.msra.mxu0 0
    %997 = vmatprep.subr.bf16.mxu0 0
    %998 = vmatpush1.bf16.msra.mxu0 0
    %999 = vmatprep.subr.bf16.mxu0 0
    %1000 = vmatpush1.bf16.msra.mxu0 0
    %1001 = vmatprep.subr.bf16.mxu0 0
    %1002 = vmatpush1.bf16.msra.mxu0 0
    %1003 = vmatprep.mubr.bf16.mxu0 0
    %1004 = vmatmul.mubr.bf16.gmra.mrb[0].mxu0 %v847
    %v1005 = vpop.f32.mrb[0].mxu0
    %v1006 = vadd.f32 %v884, %v1005
    %v1007 = vpop.f32.mrb[0].mxu0
    %v1008 = vadd.f32 %v888, %v1007
    %v1009 = vpop.f32.mrb[0].mxu0
    %v1010 = vadd.f32 %v884, %v1009
    %v1011 = vpop.f32.mrb[0].mxu0
    %v1012 = vadd.f32 %v888, %v1011
    %1013 = vmatprep.mubr.bf16.mxu0 0
    %1014 = vmatmul.mubr.bf16.gmra.mrb[0].mxu0 %v848
    %v1015 = vpop.f32.mrb[0].mxu0
    %v1016 = vadd.f32 %v884, %v1015
    %v1017 = vpop.f32.mrb[0].mxu0
    %v1018 = vadd.f32 %v888, %v1017
    %v1019 = vpop.f32.mrb[0].mxu0
    %v1020 = vadd.f32 %v884, %v1019
    %v1021 = vpop.f32.mrb[0].mxu0
    %v1022 = vadd.f32 %v888, %v1021
    %1023 = vmatprep.mubr.bf16.mxu0 0
    %1024 = vmatmul.mubr.bf16.gmra.mrb[0].mxu0 %v849
    %v1025 = vpop.f32.mrb[0].mxu0
    %v1026 = vadd.f32 %v884, %v1025
    %v1027 = vpop.f32.mrb[0].mxu0
    %v1028 = vadd.f32 %v888, %v1027
    %v1029 = vpop.f32.mrb[0].mxu0
    %v1030 = vadd.f32 %v884, %v1029
    %v1031 = vpop.f32.mrb[0].mxu0
    %v1032 = vadd.f32 %v888, %v1031
    %1033 = vmatprep.mubr.bf16.mxu0 0
    %1034 = vmatmul.mubr.bf16.gmra.mrb[0].mxu0 %v850
    %v1035 = vpop.f32.mrb[0].mxu0
    %v1036 = vadd.f32 %v884, %v1035
    %v1037 = vpop.f32.mrb[0].mxu0
    %v1038 = vadd.f32 %v888, %v1037
    %v1039 = vpop.f32.mrb[0].mxu0
    %v1040 = vadd.f32 %v884, %v1039
    %v1041 = vpop.f32.mrb[0].mxu0
    %v1042 = vadd.f32 %v888, %v1041
    %1043 = vmatprep.mubr.bf16.mxu0 0
    %1044 = vmatmul.mubr.bf16.gmra.mrb[0].mxu0 %v851
    %v1045 = vpop.f32.mrb[0].mxu0
    %v1046 = vadd.f32 %v884, %v1045
    %v1047 = vpop.f32.mrb[0].mxu0
    %v1048 = vadd.f32 %v888, %v1047
    %v1049 = vpop.f32.mrb[0].mxu0
    %v1050 = vadd.f32 %v884, %v1049
    %v1051 = vpop.f32.mrb[0].mxu0
    %v1052 = vadd.f32 %v888, %v1051
    %1053 = vmatprep.mubr.bf16.mxu0 0
    %1054 = vmatmul.mubr.bf16.gmra.mrb[0].mxu0 %v852
    %v1055 = vpop.f32.mrb[0].mxu0
    %v1056 = vadd.f32 %v884, %v1055
    %v1057 = vpop.f32.mrb[0].mxu0
    %v1058 = vadd.f32 %v888, %v1057
    %v1059 = vpop.f32.mrb[0].mxu0
    %v1060 = vadd.f32 %v884, %v1059
    %v1061 = vpop.f32.mrb[0].mxu0
    %v1062 = vadd.f32 %v888, %v1061
    %1063 = vmatprep.mubr.bf16.mxu0 0
    %1064 = vmatmul.mubr.bf16.gmra.mrb[0].mxu0 %v853
    %v1065 = vpop.f32.mrb[0].mxu0
    %v1066 = vadd.f32 %v884, %v1065
    %v1067 = vpop.f32.mrb[0].mxu0
    %v1068 = vadd.f32 %v888, %v1067
    %v1069 = vpop.f32.mrb[0].mxu0
    %v1070 = vadd.f32 %v884, %v1069
    %v1071 = vpop.f32.mrb[0].mxu0
    %v1072 = vadd.f32 %v888, %v1071
    %1073 = vmatprep.mubr.bf16.mxu0 0
    %1074 = vmatmul.mubr.bf16.gmra.mrb[0].mxu0 %v854
    %v1075 = vpop.f32.mrb[0].mxu0
    %v1076 = vadd.f32 %v884, %v1075
    %v1077 = vpop.f32.mrb[0].mxu0
    %v1078 = vadd.f32 %v888, %v1077
    %v1079 = vpop.f32.mrb[0].mxu0
    %v1080 = vadd.f32 %v884, %v1079
    %v1081 = vpop.f32.mrb[0].mxu0
    %v1082 = vadd.f32 %v888, %v1081
    %1083 = vmatprep.mubr.bf16.mxu0 0
    %1084 = vmatmul.mubr.bf16.gmra.mrb[0].mxu0 %v855
    %v1085 = vpop.f32.mrb[0].mxu0
    %v1086 = vadd.f32 %v884, %v1085
    %v1087 = vpop.f32.mrb[0].mxu0
    %v1088 = vadd.f32 %v888, %v1087
    %v1089 = vpop.f32.mrb[0].mxu0
    %v1090 = vadd.f32 %v884, %v1089
    %v1091 = vpop.f32.mrb[0].mxu0
    %v1092 = vadd.f32 %v888, %v1091
    %1093 = vmatprep.mubr.bf16.mxu0 0
    %1094 = vmatmul.mubr.bf16.gmra.mrb[0].mxu0 %v856
    %v1095 = vpop.f32.mrb[0].mxu0
    %v1096 = vadd.f32 %v884, %v1095
    %v1097 = vpop.f32.mrb[0].mxu0
    %v1098 = vadd.f32 %v888, %v1097
    %v1099 = vpop.f32.mrb[0].mxu0
    %v1100 = vadd.f32 %v884, %v1099
    %v1101 = vpop.f32.mrb[0].mxu0
    %v1102 = vadd.f32 %v888, %v1101
    %1103 = vmatprep.mubr.bf16.mxu0 0
    %1104 = vmatmul.mubr.bf16.gmra.mrb[0].mxu0 %v857
    %v1105 = vpop.f32.mrb[0].mxu0
    %v1106 = vadd.f32 %v884, %v1105
    %v1107 = vpop.f32.mrb[0].mxu0
    %v1108 = vadd.f32 %v888, %v1107
    %v1109 = vpop.f32.mrb[0].mxu0
    %v1110 = vadd.f32 %v884, %v1109
    %v1111 = vpop.f32.mrb[0].mxu0
    %v1112 = vadd.f32 %v888, %v1111
    %1113 = vmatprep.mubr.bf16.mxu0 0
    %1114 = vmatmul.mubr.bf16.gmra.mrb[0].mxu0 %v858
    %v1115 = vpop.f32.mrb[0].mxu0
    %v1116 = vadd.f32 %v884, %v1115
    %v1117 = vpop.f32.mrb[0].mxu0
    %v1118 = vadd.f32 %v888, %v1117
    %v1119 = vpop.f32.mrb[0].mxu0
    %v1120 = vadd.f32 %v884, %v1119
    %v1121 = vpop.f32.mrb[0].mxu0
    %v1122 = vadd.f32 %v888, %v1121
    %1123 = vmatprep.mubr.bf16.mxu0 0
    %1124 = vmatmul.mubr.bf16.gmra.mrb[0].mxu0 %v859
    %v1125 = vpop.f32.mrb[0].mxu0
    %v1126 = vadd.f32 %v884, %v1125
    %v1127 = vpop.f32.mrb[0].mxu0
    %v1128 = vadd.f32 %v888, %v1127
    %v1129 = vpop.f32.mrb[0].mxu0
    %v1130 = vadd.f32 %v884, %v1129
    %v1131 = vpop.f32.mrb[0].mxu0
    %v1132 = vadd.f32 %v888, %v1131
    %1133 = vmatprep.mubr.bf16.mxu0 0
    %1134 = vmatmul.mubr.bf16.gmra.mrb[0].mxu0 %v860
    %v1135 = vpop.f32.mrb[0].mxu0
    %v1136 = vadd.f32 %v884, %v1135
    %v1137 = vpop.f32.mrb[0].mxu0
    %v1138 = vadd.f32 %v888, %v1137
    %v1139 = vpop.f32.mrb[0].mxu0
    %v1140 = vadd.f32 %v884, %v1139
    %v1141 = vpop.f32.mrb[0].mxu0
    %v1142 = vadd.f32 %v888, %v1141
    %1143 = vmatprep.mubr.bf16.mxu0 0
    %1144 = vmatmul.mubr.bf16.gmra.mrb[0].mxu0 %v861
    %v1145 = vpop.f32.mrb[0].mxu0
    %v1146 = vadd.f32 %v884, %v1145
    %v1147 = vpop.f32.mrb[0].mxu0
    %v1148 = vadd.f32 %v888, %v1147
    %v1149 = vpop.f32.mrb[0].mxu0
    %v1150 = vadd.f32 %v884, %v1149
    %v1151 = vpop.f32.mrb[0].mxu0
    %v1152 = vadd.f32 %v888, %v1151
    %1153 = vmatprep.mubr.bf16.mxu0 0
    %1154 = vmatmul.mubr.bf16.gmra.mrb[0].mxu0 %v862
    %v1155 = vpop.f32.mrb[0].mxu0
    %v1156 = vadd.f32 %v884, %v1155
    %v1157 = vpop.f32.mrb[0].mxu0
    %v1158 = vadd.f32 %v888, %v1157
    %v1159 = vpop.f32.mrb[0].mxu0
    %v1160 = vadd.f32 %v884, %v1159
    %v1161 = vpop.f32.mrb[0].mxu0
    %v1162 = vadd.f32 %v888, %v1161
    %1163 = vdwg.mxu0
    %v1164 = vmax.f32 %v1006, %v1010
    %v1165 = vrot.slane %v1164, 4
    %v1166 = vmax.f32 %v1164, %v1165
    %v1167 = vrot.slane %v1166, 2
    %v1168 = vmax.f32 %v1166, %v1167
    %v1169 = vrot.slane %v1168, 1
    %v1170 = vmax.f32 %v1168, %v1169
    %v1171 = vmax.f32 %v1008, %v1012
    %v1172 = vrot.slane %v1171, 4
    %v1173 = vmax.f32 %v1171, %v1172
    %v1174 = vrot.slane %v1173, 2
    %v1175 = vmax.f32 %v1173, %v1174
    %v1176 = vrot.slane %v1175, 1
    %v1177 = vmax.f32 %v1175, %v1176
    %v1178 = vmax.f32 %v1016, %v1020
    %v1179 = vrot.slane %v1178, 4
    %v1180 = vmax.f32 %v1178, %v1179
    %v1181 = vrot.slane %v1180, 2
    %v1182 = vmax.f32 %v1180, %v1181
    %v1183 = vrot.slane %v1182, 1
    %v1184 = vmax.f32 %v1182, %v1183
    %v1185 = vmax.f32 %v1018, %v1022
    %v1186 = vrot.slane %v1185, 4
    %v1187 = vmax.f32 %v1185, %v1186
    %v1188 = vrot.slane %v1187, 2
    %v1189 = vmax.f32 %v1187, %v1188
    %v1190 = vrot.slane %v1189, 1
    %v1191 = vmax.f32 %v1189, %v1190
    %v1192 = vmax.f32 %v1026, %v1030
    %v1193 = vrot.slane %v1192, 4
    %v1194 = vmax.f32 %v1192, %v1193
    %v1195 = vrot.slane %v1194, 2
    %v1196 = vmax.f32 %v1194, %v1195
    %v1197 = vrot.slane %v1196, 1
    %v1198 = vmax.f32 %v1196, %v1197
    %v1199 = vmax.f32 %v1028, %v1032
    %v1200 = vrot.slane %v1199, 4
    %v1201 = vmax.f32 %v1199, %v1200
    %v1202 = vrot.slane %v1201, 2
    %v1203 = vmax.f32 %v1201, %v1202
    %v1204 = vrot.slane %v1203, 1
    %v1205 = vmax.f32 %v1203, %v1204
    %v1206 = vmax.f32 %v1036, %v1040
    %v1207 = vrot.slane %v1206, 4
    %v1208 = vmax.f32 %v1206, %v1207
    %v1209 = vrot.slane %v1208, 2
    %v1210 = vmax.f32 %v1208, %v1209
    %v1211 = vrot.slane %v1210, 1
    %v1212 = vmax.f32 %v1210, %v1211
    %v1213 = vmax.f32 %v1038, %v1042
    %v1214 = vrot.slane %v1213, 4
    %v1215 = vmax.f32 %v1213, %v1214
    %v1216 = vrot.slane %v1215, 2
    %v1217 = vmax.f32 %v1215, %v1216
    %v1218 = vrot.slane %v1217, 1
    %v1219 = vmax.f32 %v1217, %v1218
    %v1220 = vmax.f32 %v1046, %v1050
    %v1221 = vrot.slane %v1220, 4
    %v1222 = vmax.f32 %v1220, %v1221
    %v1223 = vrot.slane %v1222, 2
    %v1224 = vmax.f32 %v1222, %v1223
    %v1225 = vrot.slane %v1224, 1
    %v1226 = vmax.f32 %v1224, %v1225
    %v1227 = vmax.f32 %v1048, %v1052
    %v1228 = vrot.slane %v1227, 4
    %v1229 = vmax.f32 %v1227, %v1228
    %v1230 = vrot.slane %v1229, 2
    %v1231 = vmax.f32 %v1229, %v1230
    %v1232 = vrot.slane %v1231, 1
    %v1233 = vmax.f32 %v1231, %v1232
    %v1234 = vmax.f32 %v1056, %v1060
    %v1235 = vrot.slane %v1234, 4
    %v1236 = vmax.f32 %v1234, %v1235
    %v1237 = vrot.slane %v1236, 2
    %v1238 = vmax.f32 %v1236, %v1237
    %v1239 = vrot.slane %v1238, 1
    %v1240 = vmax.f32 %v1238, %v1239
    %v1241 = vmax.f32 %v1058, %v1062
    %v1242 = vrot.slane %v1241, 4
    %v1243 = vmax.f32 %v1241, %v1242
    %v1244 = vrot.slane %v1243, 2
    %v1245 = vmax.f32 %v1243, %v1244
    %v1246 = vrot.slane %v1245, 1
    %v1247 = vmax.f32 %v1245, %v1246
    %v1248 = vmax.f32 %v1066, %v1070
    %v1249 = vrot.slane %v1248, 4
    %v1250 = vmax.f32 %v1248, %v1249
    %v1251 = vrot.slane %v1250, 2
    %v1252 = vmax.f32 %v1250, %v1251
    %v1253 = vrot.slane %v1252, 1
    %v1254 = vmax.f32 %v1252, %v1253
    %v1255 = vmax.f32 %v1068, %v1072
    %v1256 = vrot.slane %v1255, 4
    %v1257 = vmax.f32 %v1255, %v1256
    %v1258 = vrot.slane %v1257, 2
    %v1259 = vmax.f32 %v1257, %v1258
    %v1260 = vrot.slane %v1259, 1
    %v1261 = vmax.f32 %v1259, %v1260
    %v1262 = vmax.f32 %v1076, %v1080
    %v1263 = vrot.slane %v1262, 4
    %v1264 = vmax.f32 %v1262, %v1263
    %v1265 = vrot.slane %v1264, 2
    %v1266 = vmax.f32 %v1264, %v1265
    %v1267 = vrot.slane %v1266, 1
    %v1268 = vmax.f32 %v1266, %v1267
    %v1269 = vmax.f32 %v1078, %v1082
    %v1270 = vrot.slane %v1269, 4
    %v1271 = vmax.f32 %v1269, %v1270
    %v1272 = vrot.slane %v1271, 2
    %v1273 = vmax.f32 %v1271, %v1272
    %v1274 = vrot.slane %v1273, 1
    %v1275 = vmax.f32 %v1273, %v1274
    %v1276 = vmax.f32 %v1086, %v1090
    %v1277 = vrot.slane %v1276, 4
    %v1278 = vmax.f32 %v1276, %v1277
    %v1279 = vrot.slane %v1278, 2
    %v1280 = vmax.f32 %v1278, %v1279
    %v1281 = vrot.slane %v1280, 1
    %v1282 = vmax.f32 %v1280, %v1281
    %v1283 = vmax.f32 %v1088, %v1092
    %v1284 = vrot.slane %v1283, 4
    %v1285 = vmax.f32 %v1283, %v1284
    %v1286 = vrot.slane %v1285, 2
    %v1287 = vmax.f32 %v1285, %v1286
    %v1288 = vrot.slane %v1287, 1
    %v1289 = vmax.f32 %v1287, %v1288
    %v1290 = vmax.f32 %v1096, %v1100
    %v1291 = vrot.slane %v1290, 4
    %v1292 = vmax.f32 %v1290, %v1291
    %v1293 = vrot.slane %v1292, 2
    %v1294 = vmax.f32 %v1292, %v1293
    %v1295 = vrot.slane %v1294, 1
    %v1296 = vmax.f32 %v1294, %v1295
    %v1297 = vmax.f32 %v1098, %v1102
    %v1298 = vrot.slane %v1297, 4
    %v1299 = vmax.f32 %v1297, %v1298
    %v1300 = vrot.slane %v1299, 2
    %v1301 = vmax.f32 %v1299, %v1300
    %v1302 = vrot.slane %v1301, 1
    %v1303 = vmax.f32 %v1301, %v1302
    %v1304 = vmax.f32 %v1106, %v1110
    %v1305 = vrot.slane %v1304, 4
    %v1306 = vmax.f32 %v1304, %v1305
    %v1307 = vrot.slane %v1306, 2
    %v1308 = vmax.f32 %v1306, %v1307
    %v1309 = vrot.slane %v1308, 1
    %v1310 = vmax.f32 %v1308, %v1309
    %v1311 = vmax.f32 %v1108, %v1112
    %v1312 = vrot.slane %v1311, 4
    %v1313 = vmax.f32 %v1311, %v1312
    %v1314 = vrot.slane %v1313, 2
    %v1315 = vmax.f32 %v1313, %v1314
    %v1316 = vrot.slane %v1315, 1
    %v1317 = vmax.f32 %v1315, %v1316
    %v1318 = vmax.f32 %v1116, %v1120
    %v1319 = vrot.slane %v1318, 4
    %v1320 = vmax.f32 %v1318, %v1319
    %v1321 = vrot.slane %v1320, 2
    %v1322 = vmax.f32 %v1320, %v1321
    %v1323 = vrot.slane %v1322, 1
    %v1324 = vmax.f32 %v1322, %v1323
    %v1325 = vmax.f32 %v1118, %v1122
    %v1326 = vrot.slane %v1325, 4
    %v1327 = vmax.f32 %v1325, %v1326
    %v1328 = vrot.slane %v1327, 2
    %v1329 = vmax.f32 %v1327, %v1328
    %v1330 = vrot.slane %v1329, 1
    %v1331 = vmax.f32 %v1329, %v1330
    %v1332 = vmax.f32 %v1126, %v1130
    %v1333 = vrot.slane %v1332, 4
    %v1334 = vmax.f32 %v1332, %v1333
    %v1335 = vrot.slane %v1334, 2
    %v1336 = vmax.f32 %v1334, %v1335
    %v1337 = vrot.slane %v1336, 1
    %v1338 = vmax.f32 %v1336, %v1337
    %v1339 = vmax.f32 %v1128, %v1132
    %v1340 = vrot.slane %v1339, 4
    %v1341 = vmax.f32 %v1339, %v1340
    %v1342 = vrot.slane %v1341, 2
    %v1343 = vmax.f32 %v1341, %v1342
    %v1344 = vrot.slane %v1343, 1
    %v1345 = vmax.f32 %v1343, %v1344
    %v1346 = vmax.f32 %v1136, %v1140
    %v1347 = vrot.slane %v1346, 4
    %v1348 = vmax.f32 %v1346, %v1347
    %v1349 = vrot.slane %v1348, 2
    %v1350 = vmax.f32 %v1348, %v1349
    %v1351 = vrot.slane %v1350, 1
    %v1352 = vmax.f32 %v1350, %v1351
    %v1353 = vmax.f32 %v1138, %v1142
    %v1354 = vrot.slane %v1353, 4
    %v1355 = vmax.f32 %v1353, %v1354
    %v1356 = vrot.slane %v1355, 2
    %v1357 = vmax.f32 %v1355, %v1356
    %v1358 = vrot.slane %v1357, 1
    %v1359 = vmax.f32 %v1357, %v1358
    %v1360 = vmax.f32 %v1146, %v1150
    %v1361 = vrot.slane %v1360, 4
    %v1362 = vmax.f32 %v1360, %v1361
    %v1363 = vrot.slane %v1362, 2
    %v1364 = vmax.f32 %v1362, %v1363
    %v1365 = vrot.slane %v1364, 1
    %v1366 = vmax.f32 %v1364, %v1365
    %v1367 = vmax.f32 %v1148, %v1152
    %v1368 = vrot.slane %v1367, 4
    %v1369 = vmax.f32 %v1367, %v1368
    %v1370 = vrot.slane %v1369, 2
    %v1371 = vmax.f32 %v1369, %v1370
    %v1372 = vrot.slane %v1371, 1
    %v1373 = vmax.f32 %v1371, %v1372
    %v1374 = vmax.f32 %v1156, %v1160
    %v1375 = vrot.slane %v1374, 4
    %v1376 = vmax.f32 %v1374, %v1375
    %v1377 = vrot.slane %v1376, 2
    %v1378 = vmax.f32 %v1376, %v1377
    %v1379 = vrot.slane %v1378, 1
    %v1380 = vmax.f32 %v1378, %v1379
    %v1381 = vmax.f32 %v1158, %v1162
    %v1382 = vrot.slane %v1381, 4
    %v1383 = vmax.f32 %v1381, %v1382
    %v1384 = vrot.slane %v1383, 2
    %v1385 = vmax.f32 %v1383, %v1384
    %v1386 = vrot.slane %v1385, 1
    %v1387 = vmax.f32 %v1385, %v1386
    %v1388 = vpack.c.bf16 %v1010, %v1006
    %v1389 = vpack.c.bf16 %v1012, %v1008
    %v1390 = vpack.c.bf16 %v1020, %v1016
    %v1391 = vpack.c.bf16 %v1022, %v1018
    %v1392 = vpack.c.bf16 %v1030, %v1026
    %v1393 = vpack.c.bf16 %v1032, %v1028
    %v1394 = vpack.c.bf16 %v1040, %v1036
    %v1395 = vpack.c.bf16 %v1042, %v1038
    %v1396 = vpack.c.bf16 %v1050, %v1046
    %v1397 = vpack.c.bf16 %v1052, %v1048
    %v1398 = vpack.c.bf16 %v1060, %v1056
    %v1399 = vpack.c.bf16 %v1062, %v1058
    %v1400 = vpack.c.bf16 %v1070, %v1066
    %v1401 = vpack.c.bf16 %v1072, %v1068
    %v1402 = vpack.c.bf16 %v1080, %v1076
    %v1403 = vpack.c.bf16 %v1082, %v1078
    %v1404 = vpack.c.bf16 %v1090, %v1086
    %v1405 = vpack.c.bf16 %v1092, %v1088
    %v1406 = vpack.c.bf16 %v1100, %v1096
    %v1407 = vpack.c.bf16 %v1102, %v1098
    %v1408 = vpack.c.bf16 %v1110, %v1106
    %v1409 = vpack.c.bf16 %v1112, %v1108
    %v1410 = vpack.c.bf16 %v1120, %v1116
    %v1411 = vpack.c.bf16 %v1122, %v1118
    %v1412 = vpack.c.bf16 %v1130, %v1126
    %v1413 = vpack.c.bf16 %v1132, %v1128
    %v1414 = vpack.c.bf16 %v1140, %v1136
    %v1415 = vpack.c.bf16 %v1142, %v1138
    %v1416 = vpack.c.bf16 %v1150, %v1146
    %v1417 = vpack.c.bf16 %v1152, %v1148
    %v1418 = vpack.c.bf16 %v1160, %v1156
    %v1419 = vpack.c.bf16 %v1162, %v1158
    %v1420 = vld [vmem:[#allocation5] sm:$0xff]
    %v1421 = vld [vmem:[#allocation5 + $0x8] sm:$0xff]
    %v1422 = vld [vmem:[#allocation5 + $0x10] sm:$0xff]
    %v1423 = vld [vmem:[#allocation5 + $0x18] sm:$0xff]
    %v1424 = vld [vmem:[#allocation5 + $0x20] sm:$0xff]
    %v1425 = vld [vmem:[#allocation5 + $0x28] sm:$0xff]
    %v1426 = vld [vmem:[#allocation5 + $0x30] sm:$0xff]
    %v1427 = vld [vmem:[#allocation5 + $0x38] sm:$0xff]
    %v1428 = vld [vmem:[#allocation5 + $0x40] sm:$0xff]
    %v1429 = vld [vmem:[#allocation5 + $0x48] sm:$0xff]
    %v1430 = vld [vmem:[#allocation5 + $0x50] sm:$0xff]
    %v1431 = vld [vmem:[#allocation5 + $0x58] sm:$0xff]
    %v1432 = vld [vmem:[#allocation5 + $0x60] sm:$0xff]
    %v1433 = vld [vmem:[#allocation5 + $0x68] sm:$0xff]
    %v1434 = vld [vmem:[#allocation5 + $0x70] sm:$0xff]
    %v1435 = vld [vmem:[#allocation5 + $0x78] sm:$0xff]
    %v1436 = vld [vmem:[#allocation5 + $0x80] sm:$0xff]
    %v1437 = vld [vmem:[#allocation5 + $0x88] sm:$0xff]
    %v1438 = vld [vmem:[#allocation5 + $0x90] sm:$0xff]
    %v1439 = vld [vmem:[#allocation5 + $0x98] sm:$0xff]
    %v1440 = vld [vmem:[#allocation5 + $0xa0] sm:$0xff]
    %v1441 = vld [vmem:[#allocation5 + $0xa8] sm:$0xff]
    %v1442 = vld [vmem:[#allocation5 + $0xb0] sm:$0xff]
    %v1443 = vld [vmem:[#allocation5 + $0xb8] sm:$0xff]
    %v1444 = vld [vmem:[#allocation5 + $0xc0] sm:$0xff]
    %v1445 = vld [vmem:[#allocation5 + $0xc8] sm:$0xff]
    %v1446 = vld [vmem:[#allocation5 + $0xd0] sm:$0xff]
    %v1447 = vld [vmem:[#allocation5 + $0xd8] sm:$0xff]
    %v1448 = vld [vmem:[#allocation5 + $0xe0] sm:$0xff]
    %v1449 = vld [vmem:[#allocation5 + $0xe8] sm:$0xff]
    %v1450 = vld [vmem:[#allocation5 + $0xf0] sm:$0xff]
    %v1451 = vld [vmem:[#allocation5 + $0xf8] sm:$0xff]
    %v1452 = vld [vmem:[#allocation5 + $0x100] sm:$0xff]
    %v1453 = vld [vmem:[#allocation5 + $0x108] sm:$0xff]
    %v1454 = vld [vmem:[#allocation5 + $0x110] sm:$0xff]
    %v1455 = vld [vmem:[#allocation5 + $0x118] sm:$0xff]
    %v1456 = vld [vmem:[#allocation5 + $0x120] sm:$0xff]
    %v1457 = vld [vmem:[#allocation5 + $0x128] sm:$0xff]
    %v1458 = vld [vmem:[#allocation5 + $0x130] sm:$0xff]
    %v1459 = vld [vmem:[#allocation5 + $0x138] sm:$0xff]
    %v1460 = vld [vmem:[#allocation5 + $0x140] sm:$0xff]
    %v1461 = vld [vmem:[#allocation5 + $0x148] sm:$0xff]
    %v1462 = vld [vmem:[#allocation5 + $0x150] sm:$0xff]
    %v1463 = vld [vmem:[#allocation5 + $0x158] sm:$0xff]
    %v1464 = vld [vmem:[#allocation5 + $0x160] sm:$0xff]
    %v1465 = vld [vmem:[#allocation5 + $0x168] sm:$0xff]
    %v1466 = vld [vmem:[#allocation5 + $0x170] sm:$0xff]
    %v1467 = vld [vmem:[#allocation5 + $0x178] sm:$0xff]
    %v1468 = vld [vmem:[#allocation5 + $0x180] sm:$0xff]
    %v1469 = vld [vmem:[#allocation5 + $0x188] sm:$0xff]
    %v1470 = vld [vmem:[#allocation5 + $0x190] sm:$0xff]
    %v1471 = vld [vmem:[#allocation5 + $0x198] sm:$0xff]
    %v1472 = vld [vmem:[#allocation5 + $0x1a0] sm:$0xff]
    %v1473 = vld [vmem:[#allocation5 + $0x1a8] sm:$0xff]
    %v1474 = vld [vmem:[#allocation5 + $0x1b0] sm:$0xff]
    %v1475 = vld [vmem:[#allocation5 + $0x1b8] sm:$0xff]
    %v1476 = vld [vmem:[#allocation5 + $0x1c0] sm:$0xff]
    %v1477 = vld [vmem:[#allocation5 + $0x1c8] sm:$0xff]
    %v1478 = vld [vmem:[#allocation5 + $0x1d0] sm:$0xff]
    %v1479 = vld [vmem:[#allocation5 + $0x1d8] sm:$0xff]
    %v1480 = vld [vmem:[#allocation5 + $0x1e0] sm:$0xff]
    %v1481 = vld [vmem:[#allocation5 + $0x1e8] sm:$0xff]
    %v1482 = vld [vmem:[#allocation5 + $0x1f0] sm:$0xff]
    %v1483 = vld [vmem:[#allocation5 + $0x1f8] sm:$0xff]
    %v1548 = vunpack.c.l.b16 %v1420
    %v1549 = vunpack.c.h.b16 %v1420
    %v1550 = vunpack.c.l.b16 %v1421
    %v1551 = vunpack.c.h.b16 %v1421
    %v1552 = vunpack.c.l.b16 %v1422
    %v1553 = vunpack.c.h.b16 %v1422
    %v1554 = vunpack.c.l.b16 %v1423
    %v1555 = vunpack.c.h.b16 %v1423
    %v1556 = vunpack.c.l.b16 %v1424
    %v1557 = vunpack.c.h.b16 %v1424
    %v1558 = vunpack.c.l.b16 %v1425
    %v1559 = vunpack.c.h.b16 %v1425
    %v1560 = vunpack.c.l.b16 %v1426
    %v1561 = vunpack.c.h.b16 %v1426
    %v1562 = vunpack.c.l.b16 %v1427
    %v1563 = vunpack.c.h.b16 %v1427
    %v1564 = vunpack.c.l.b16 %v1428
    %v1565 = vunpack.c.h.b16 %v1428
    %v1566 = vunpack.c.l.b16 %v1429
    %v1567 = vunpack.c.h.b16 %v1429
    %v1568 = vunpack.c.l.b16 %v1430
    %v1569 = vunpack.c.h.b16 %v1430
    %v1570 = vunpack.c.l.b16 %v1431
    %v1571 = vunpack.c.h.b16 %v1431
    %v1572 = vunpack.c.l.b16 %v1432
    %v1573 = vunpack.c.h.b16 %v1432
    %v1574 = vunpack.c.l.b16 %v1433
    %v1575 = vunpack.c.h.b16 %v1433
    %v1576 = vunpack.c.l.b16 %v1434
    %v1577 = vunpack.c.h.b16 %v1434
    %v1578 = vunpack.c.l.b16 %v1435
    %v1579 = vunpack.c.h.b16 %v1435
    %v1580 = vunpack.c.l.b16 %v1436
    %v1581 = vunpack.c.h.b16 %v1436
    %v1582 = vunpack.c.l.b16 %v1437
    %v1583 = vunpack.c.h.b16 %v1437
    %v1584 = vunpack.c.l.b16 %v1438
    %v1585 = vunpack.c.h.b16 %v1438
    %v1586 = vunpack.c.l.b16 %v1439
    %v1587 = vunpack.c.h.b16 %v1439
    %v1588 = vunpack.c.l.b16 %v1440
    %v1589 = vunpack.c.h.b16 %v1440
    %v1590 = vunpack.c.l.b16 %v1441
    %v1591 = vunpack.c.h.b16 %v1441
    %v1592 = vunpack.c.l.b16 %v1442
    %v1593 = vunpack.c.h.b16 %v1442
    %v1594 = vunpack.c.l.b16 %v1443
    %v1595 = vunpack.c.h.b16 %v1443
    %v1596 = vunpack.c.l.b16 %v1444
    %v1597 = vunpack.c.h.b16 %v1444
    %v1598 = vunpack.c.l.b16 %v1445
    %v1599 = vunpack.c.h.b16 %v1445
    %v1600 = vunpack.c.l.b16 %v1446
    %v1601 = vunpack.c.h.b16 %v1446
    %v1602 = vunpack.c.l.b16 %v1447
    %v1603 = vunpack.c.h.b16 %v1447
    %v1604 = vunpack.c.l.b16 %v1448
    %v1605 = vunpack.c.h.b16 %v1448
    %v1606 = vunpack.c.l.b16 %v1449
    %v1607 = vunpack.c.h.b16 %v1449
    %v1608 = vunpack.c.l.b16 %v1450
    %v1609 = vunpack.c.h.b16 %v1450
    %v1610 = vunpack.c.l.b16 %v1451
    %v1611 = vunpack.c.h.b16 %v1451
    %v1612 = vunpack.c.l.b16 %v1452
    %v1613 = vunpack.c.h.b16 %v1452
    %v1614 = vunpack.c.l.b16 %v1453
    %v1615 = vunpack.c.h.b16 %v1453
    %v1616 = vunpack.c.l.b16 %v1454
    %v1617 = vunpack.c.h.b16 %v1454
    %v1618 = vunpack.c.l.b16 %v1455
    %v1619 = vunpack.c.h.b16 %v1455
    %v1620 = vunpack.c.l.b16 %v1456
    %v1621 = vunpack.c.h.b16 %v1456
    %v1622 = vunpack.c.l.b16 %v1457
    %v1623 = vunpack.c.h.b16 %v1457
    %v1624 = vunpack.c.l.b16 %v1458
    %v1625 = vunpack.c.h.b16 %v1458
    %v1626 = vunpack.c.l.b16 %v1459
    %v1627 = vunpack.c.h.b16 %v1459
    %v1628 = vunpack.c.l.b16 %v1460
    %v1629 = vunpack.c.h.b16 %v1460
    %v1630 = vunpack.c.l.b16 %v1461
    %v1631 = vunpack.c.h.b16 %v1461
    %v1632 = vunpack.c.l.b16 %v1462
    %v1633 = vunpack.c.h.b16 %v1462
    %v1634 = vunpack.c.l.b16 %v1463
    %v1635 = vunpack.c.h.b16 %v1463
    %v1636 = vunpack.c.l.b16 %v1464
    %v1637 = vunpack.c.h.b16 %v1464
    %v1638 = vunpack.c.l.b16 %v1465
    %v1639 = vunpack.c.h.b16 %v1465
    %v1640 = vunpack.c.l.b16 %v1466
    %v1641 = vunpack.c.h.b16 %v1466
    %v1642 = vunpack.c.l.b16 %v1467
    %v1643 = vunpack.c.h.b16 %v1467
    %v1644 = vunpack.c.l.b16 %v1468
    %v1645 = vunpack.c.h.b16 %v1468
    %v1646 = vunpack.c.l.b16 %v1469
    %v1647 = vunpack.c.h.b16 %v1469
    %v1648 = vunpack.c.l.b16 %v1470
    %v1649 = vunpack.c.h.b16 %v1470
    %v1650 = vunpack.c.l.b16 %v1471
    %v1651 = vunpack.c.h.b16 %v1471
    %v1652 = vunpack.c.l.b16 %v1472
    %v1653 = vunpack.c.h.b16 %v1472
    %v1654 = vunpack.c.l.b16 %v1473
    %v1655 = vunpack.c.h.b16 %v1473
    %v1656 = vunpack.c.l.b16 %v1474
    %v1657 = vunpack.c.h.b16 %v1474
    %v1658 = vunpack.c.l.b16 %v1475
    %v1659 = vunpack.c.h.b16 %v1475
    %v1660 = vunpack.c.l.b16 %v1476
    %v1661 = vunpack.c.h.b16 %v1476
    %v1662 = vunpack.c.l.b16 %v1477
    %v1663 = vunpack.c.h.b16 %v1477
    %v1664 = vunpack.c.l.b16 %v1478
    %v1665 = vunpack.c.h.b16 %v1478
    %v1666 = vunpack.c.l.b16 %v1479
    %v1667 = vunpack.c.h.b16 %v1479
    %v1668 = vunpack.c.l.b16 %v1480
    %v1669 = vunpack.c.h.b16 %v1480
    %v1670 = vunpack.c.l.b16 %v1481
    %v1671 = vunpack.c.h.b16 %v1481
    %v1672 = vunpack.c.l.b16 %v1482
    %v1673 = vunpack.c.h.b16 %v1482
    %v1674 = vunpack.c.l.b16 %v1483
    %v1675 = vunpack.c.h.b16 %v1483
    %v1676 = vpack.c.b16 %v1552, %v1548
    %v1677 = vpack.c.b16 %v1553, %v1549
    %v1678 = vpack.c.b16 %v1554, %v1550
    %v1679 = vpack.c.b16 %v1555, %v1551
    %v1680 = vpack.c.b16 %v1560, %v1556
    %v1681 = vpack.c.b16 %v1561, %v1557
    %v1682 = vpack.c.b16 %v1562, %v1558
    %v1683 = vpack.c.b16 %v1563, %v1559
    %v1684 = vpack.c.b16 %v1568, %v1564
    %v1685 = vpack.c.b16 %v1569, %v1565
    %v1686 = vpack.c.b16 %v1570, %v1566
    %v1687 = vpack.c.b16 %v1571, %v1567
    %v1688 = vpack.c.b16 %v1576, %v1572
    %v1689 = vpack.c.b16 %v1577, %v1573
    %v1690 = vpack.c.b16 %v1578, %v1574
    %v1691 = vpack.c.b16 %v1579, %v1575
    %v1692 = vpack.c.b16 %v1584, %v1580
    %v1693 = vpack.c.b16 %v1585, %v1581
    %v1694 = vpack.c.b16 %v1586, %v1582
    %v1695 = vpack.c.b16 %v1587, %v1583
    %v1696 = vpack.c.b16 %v1592, %v1588
    %v1697 = vpack.c.b16 %v1593, %v1589
    %v1698 = vpack.c.b16 %v1594, %v1590
    %v1699 = vpack.c.b16 %v1595, %v1591
    %v1700 = vpack.c.b16 %v1600, %v1596
    %v1701 = vpack.c.b16 %v1601, %v1597
    %v1702 = vpack.c.b16 %v1602, %v1598
    %v1703 = vpack.c.b16 %v1603, %v1599
    %v1704 = vpack.c.b16 %v1608, %v1604
    %v1705 = vpack.c.b16 %v1609, %v1605
    %v1706 = vpack.c.b16 %v1610, %v1606
    %v1707 = vpack.c.b16 %v1611, %v1607
    %v1708 = vpack.c.b16 %v1616, %v1612
    %v1709 = vpack.c.b16 %v1617, %v1613
    %v1710 = vpack.c.b16 %v1618, %v1614
    %v1711 = vpack.c.b16 %v1619, %v1615
    %v1712 = vpack.c.b16 %v1624, %v1620
    %v1713 = vpack.c.b16 %v1625, %v1621
    %v1714 = vpack.c.b16 %v1626, %v1622
    %v1715 = vpack.c.b16 %v1627, %v1623
    %v1716 = vpack.c.b16 %v1632, %v1628
    %v1717 = vpack.c.b16 %v1633, %v1629
    %v1718 = vpack.c.b16 %v1634, %v1630
    %v1719 = vpack.c.b16 %v1635, %v1631
    %v1720 = vpack.c.b16 %v1640, %v1636
    %v1721 = vpack.c.b16 %v1641, %v1637
    %v1722 = vpack.c.b16 %v1642, %v1638
    %v1723 = vpack.c.b16 %v1643, %v1639
    %v1724 = vpack.c.b16 %v1648, %v1644
    %v1725 = vpack.c.b16 %v1649, %v1645
    %v1726 = vpack.c.b16 %v1650, %v1646
    %v1727 = vpack.c.b16 %v1651, %v1647
    %v1728 = vpack.c.b16 %v1656, %v1652
    %v1729 = vpack.c.b16 %v1657, %v1653
    %v1730 = vpack.c.b16 %v1658, %v1654
    %v1731 = vpack.c.b16 %v1659, %v1655
    %v1732 = vpack.c.b16 %v1664, %v1660
    %v1733 = vpack.c.b16 %v1665, %v1661
    %v1734 = vpack.c.b16 %v1666, %v1662
    %v1735 = vpack.c.b16 %v1667, %v1663
    %v1736 = vpack.c.b16 %v1672, %v1668
    %v1737 = vpack.c.b16 %v1673, %v1669
    %v1738 = vpack.c.b16 %v1674, %v1670
    %v1739 = vpack.c.b16 %v1675, %v1671
    %1804 = vmatprep.subr.bf16.mxu0 %v1677
    %1805 = vmatpush1.bf16.msra.mxu0 %v1676
    %1806 = vmatprep.subr.bf16.mxu0 %v1681
    %1807 = vmatpush1.bf16.msra.mxu0 %v1680
    %1808 = vmatprep.subr.bf16.mxu0 %v1685
    %1809 = vmatpush1.bf16.msra.mxu0 %v1684
    %1810 = vmatprep.subr.bf16.mxu0 %v1689
    %1811 = vmatpush1.bf16.msra.mxu0 %v1688
    %1812 = vmatprep.subr.bf16.mxu0 %v1693
    %1813 = vmatpush1.bf16.msra.mxu0 %v1692
    %1814 = vmatprep.subr.bf16.mxu0 %v1697
    %1815 = vmatpush1.bf16.msra.mxu0 %v1696
    %1816 = vmatprep.subr.bf16.mxu0 %v1701
    %1817 = vmatpush1.bf16.msra.mxu0 %v1700
    %1818 = vmatprep.subr.bf16.mxu0 %v1705
    %1819 = vmatpush1.bf16.msra.mxu0 %v1704
    %1820 = vmatprep.subr.bf16.mxu0 %v1709
    %1821 = vmatpush1.bf16.msra.mxu0 %v1708
    %1822 = vmatprep.subr.bf16.mxu0 %v1713
    %1823 = vmatpush1.bf16.msra.mxu0 %v1712
    %1824 = vmatprep.subr.bf16.mxu0 %v1717
    %1825 = vmatpush1.bf16.msra.mxu0 %v1716
    %1826 = vmatprep.subr.bf16.mxu0 %v1721
    %1827 = vmatpush1.bf16.msra.mxu0 %v1720
    %1828 = vmatprep.subr.bf16.mxu0 %v1725
    %1829 = vmatpush1.bf16.msra.mxu0 %v1724
    %1830 = vmatprep.subr.bf16.mxu0 %v1729
    %1831 = vmatpush1.bf16.msra.mxu0 %v1728
    %1832 = vmatprep.subr.bf16.mxu0 %v1733
    %1833 = vmatpush1.bf16.msra.mxu0 %v1732
    %1834 = vmatprep.subr.bf16.mxu0 %v1737
    %1835 = vmatpush1.bf16.msra.mxu0 %v1736
    %1836 = vmatprep.mubr.bf16.mxu0 %v1389
    %1837 = vmatmul.mubr.bf16.gmra.mrb[0].mxu0 %v1388
    %v1838 = vpop.f32.mrb[0].mxu0
    %v1839 = vadd.f32 0.0, %v1838
    %v1840 = vpop.f32.mrb[0].mxu0
    %v1841 = vadd.f32 0.0, %v1840
    %v1842 = vpop.f32.mrb[0].mxu0
    %v1843 = vadd.f32 0.0, %v1842
    %v1844 = vpop.f32.mrb[0].mxu0
    %v1845 = vadd.f32 0.0, %v1844
    %1846 = vmatprep.mubr.bf16.mxu0 %v1391
    %1847 = vmatmul.mubr.bf16.gmra.mrb[0].mxu0 %v1390
    %v1848 = vpop.f32.mrb[0].mxu0
    %v1849 = vadd.f32 0.0, %v1848
    %v1850 = vpop.f32.mrb[0].mxu0
    %v1851 = vadd.f32 0.0, %v1850
    %v1852 = vpop.f32.mrb[0].mxu0
    %v1853 = vadd.f32 0.0, %v1852
    %v1854 = vpop.f32.mrb[0].mxu0
    %v1855 = vadd.f32 0.0, %v1854
    %1856 = vmatprep.mubr.bf16.mxu0 %v1393
    %1857 = vmatmul.mubr.bf16.gmra.mrb[0].mxu0 %v1392
    %v1858 = vpop.f32.mrb[0].mxu0
    %v1859 = vadd.f32 0.0, %v1858
    %v1860 = vpop.f32.mrb[0].mxu0
    %v1861 = vadd.f32 0.0, %v1860
    %v1862 = vpop.f32.mrb[0].mxu0
    %v1863 = vadd.f32 0.0, %v1862
    %v1864 = vpop.f32.mrb[0].mxu0
    %v1865 = vadd.f32 0.0, %v1864
    %1866 = vmatprep.mubr.bf16.mxu0 %v1395
    %1867 = vmatmul.mubr.bf16.gmra.mrb[0].mxu0 %v1394
    %v1868 = vpop.f32.mrb[0].mxu0
    %v1869 = vadd.f32 0.0, %v1868
    %v1870 = vpop.f32.mrb[0].mxu0
    %v1871 = vadd.f32 0.0, %v1870
    %v1872 = vpop.f32.mrb[0].mxu0
    %v1873 = vadd.f32 0.0, %v1872
    %v1874 = vpop.f32.mrb[0].mxu0
    %v1875 = vadd.f32 0.0, %v1874
    %1876 = vmatprep.mubr.bf16.mxu0 %v1397
    %1877 = vmatmul.mubr.bf16.gmra.mrb[0].mxu0 %v1396
    %v1878 = vpop.f32.mrb[0].mxu0
    %v1879 = vadd.f32 0.0, %v1878
    %v1880 = vpop.f32.mrb[0].mxu0
    %v1881 = vadd.f32 0.0, %v1880
    %v1882 = vpop.f32.mrb[0].mxu0
    %v1883 = vadd.f32 0.0, %v1882
    %v1884 = vpop.f32.mrb[0].mxu0
    %v1885 = vadd.f32 0.0, %v1884
    %1886 = vmatprep.mubr.bf16.mxu0 %v1399
    %1887 = vmatmul.mubr.bf16.gmra.mrb[0].mxu0 %v1398
    %v1888 = vpop.f32.mrb[0].mxu0
    %v1889 = vadd.f32 0.0, %v1888
    %v1890 = vpop.f32.mrb[0].mxu0
    %v1891 = vadd.f32 0.0, %v1890
    %v1892 = vpop.f32.mrb[0].mxu0
    %v1893 = vadd.f32 0.0, %v1892
    %v1894 = vpop.f32.mrb[0].mxu0
    %v1895 = vadd.f32 0.0, %v1894
    %1896 = vmatprep.mubr.bf16.mxu0 %v1401
    %1897 = vmatmul.mubr.bf16.gmra.mrb[0].mxu0 %v1400
    %v1898 = vpop.f32.mrb[0].mxu0
    %v1899 = vadd.f32 0.0, %v1898
    %v1900 = vpop.f32.mrb[0].mxu0
    %v1901 = vadd.f32 0.0, %v1900
    %v1902 = vpop.f32.mrb[0].mxu0
    %v1903 = vadd.f32 0.0, %v1902
    %v1904 = vpop.f32.mrb[0].mxu0
    %v1905 = vadd.f32 0.0, %v1904
    %1906 = vmatprep.mubr.bf16.mxu0 %v1403
    %1907 = vmatmul.mubr.bf16.gmra.mrb[0].mxu0 %v1402
    %v1908 = vpop.f32.mrb[0].mxu0
    %v1909 = vadd.f32 0.0, %v1908
    %v1910 = vpop.f32.mrb[0].mxu0
    %v1911 = vadd.f32 0.0, %v1910
    %v1912 = vpop.f32.mrb[0].mxu0
    %v1913 = vadd.f32 0.0, %v1912
    %v1914 = vpop.f32.mrb[0].mxu0
    %v1915 = vadd.f32 0.0, %v1914
    %1916 = vmatprep.mubr.bf16.mxu0 %v1405
    %1917 = vmatmul.mubr.bf16.gmra.mrb[0].mxu0 %v1404
    %v1918 = vpop.f32.mrb[0].mxu0
    %v1919 = vadd.f32 0.0, %v1918
    %v1920 = vpop.f32.mrb[0].mxu0
    %v1921 = vadd.f32 0.0, %v1920
    %v1922 = vpop.f32.mrb[0].mxu0
    %v1923 = vadd.f32 0.0, %v1922
    %v1924 = vpop.f32.mrb[0].mxu0
    %v1925 = vadd.f32 0.0, %v1924
    %1926 = vmatprep.mubr.bf16.mxu0 %v1407
    %1927 = vmatmul.mubr.bf16.gmra.mrb[0].mxu0 %v1406
    %v1928 = vpop.f32.mrb[0].mxu0
    %v1929 = vadd.f32 0.0, %v1928
    %v1930 = vpop.f32.mrb[0].mxu0
    %v1931 = vadd.f32 0.0, %v1930
    %v1932 = vpop.f32.mrb[0].mxu0
    %v1933 = vadd.f32 0.0, %v1932
    %v1934 = vpop.f32.mrb[0].mxu0
    %v1935 = vadd.f32 0.0, %v1934
    %1936 = vmatprep.mubr.bf16.mxu0 %v1409
    %1937 = vmatmul.mubr.bf16.gmra.mrb[0].mxu0 %v1408
    %v1938 = vpop.f32.mrb[0].mxu0
    %v1939 = vadd.f32 0.0, %v1938
    %v1940 = vpop.f32.mrb[0].mxu0
    %v1941 = vadd.f32 0.0, %v1940
    %v1942 = vpop.f32.mrb[0].mxu0
    %v1943 = vadd.f32 0.0, %v1942
    %v1944 = vpop.f32.mrb[0].mxu0
    %v1945 = vadd.f32 0.0, %v1944
    %1946 = vmatprep.mubr.bf16.mxu0 %v1411
    %1947 = vmatmul.mubr.bf16.gmra.mrb[0].mxu0 %v1410
    %v1948 = vpop.f32.mrb[0].mxu0
    %v1949 = vadd.f32 0.0, %v1948
    %v1950 = vpop.f32.mrb[0].mxu0
    %v1951 = vadd.f32 0.0, %v1950
    %v1952 = vpop.f32.mrb[0].mxu0
    %v1953 = vadd.f32 0.0, %v1952
    %v1954 = vpop.f32.mrb[0].mxu0
    %v1955 = vadd.f32 0.0, %v1954
    %1956 = vmatprep.mubr.bf16.mxu0 %v1413
    %1957 = vmatmul.mubr.bf16.gmra.mrb[0].mxu0 %v1412
    %v1958 = vpop.f32.mrb[0].mxu0
    %v1959 = vadd.f32 0.0, %v1958
    %v1960 = vpop.f32.mrb[0].mxu0
    %v1961 = vadd.f32 0.0, %v1960
    %v1962 = vpop.f32.mrb[0].mxu0
    %v1963 = vadd.f32 0.0, %v1962
    %v1964 = vpop.f32.mrb[0].mxu0
    %v1965 = vadd.f32 0.0, %v1964
    %1966 = vmatprep.mubr.bf16.mxu0 %v1415
    %1967 = vmatmul.mubr.bf16.gmra.mrb[0].mxu0 %v1414
    %v1968 = vpop.f32.mrb[0].mxu0
    %v1969 = vadd.f32 0.0, %v1968
    %v1970 = vpop.f32.mrb[0].mxu0
    %v1971 = vadd.f32 0.0, %v1970
    %v1972 = vpop.f32.mrb[0].mxu0
    %v1973 = vadd.f32 0.0, %v1972
    %v1974 = vpop.f32.mrb[0].mxu0
    %v1975 = vadd.f32 0.0, %v1974
    %1976 = vmatprep.mubr.bf16.mxu0 %v1417
    %1977 = vmatmul.mubr.bf16.gmra.mrb[0].mxu0 %v1416
    %v1978 = vpop.f32.mrb[0].mxu0
    %v1979 = vadd.f32 0.0, %v1978
    %v1980 = vpop.f32.mrb[0].mxu0
    %v1981 = vadd.f32 0.0, %v1980
    %v1982 = vpop.f32.mrb[0].mxu0
    %v1983 = vadd.f32 0.0, %v1982
    %v1984 = vpop.f32.mrb[0].mxu0
    %v1985 = vadd.f32 0.0, %v1984
    %1986 = vmatprep.mubr.bf16.mxu0 %v1419
    %1987 = vmatmul.mubr.bf16.gmra.mrb[0].mxu0 %v1418
    %v1988 = vpop.f32.mrb[0].mxu0
    %v1989 = vadd.f32 0.0, %v1988
    %v1990 = vpop.f32.mrb[0].mxu0
    %v1991 = vadd.f32 0.0, %v1990
    %v1992 = vpop.f32.mrb[0].mxu0
    %v1993 = vadd.f32 0.0, %v1992
    %v1994 = vpop.f32.mrb[0].mxu0
    %v1995 = vadd.f32 0.0, %v1994
    %1996 = vdwg.mxu0
    %1997 = vmatprep.subr.bf16.mxu0 %v1679
    %1998 = vmatpush1.bf16.msra.mxu0 %v1678
    %1999 = vmatprep.subr.bf16.mxu0 %v1683
    %2000 = vmatpush1.bf16.msra.mxu0 %v1682
    %2001 = vmatprep.subr.bf16.mxu0 %v1687
    %2002 = vmatpush1.bf16.msra.mxu0 %v1686
    %2003 = vmatprep.subr.bf16.mxu0 %v1691
    %2004 = vmatpush1.bf16.msra.mxu0 %v1690
    %2005 = vmatprep.subr.bf16.mxu0 %v1695
    %2006 = vmatpush1.bf16.msra.mxu0 %v1694
    %2007 = vmatprep.subr.bf16.mxu0 %v1699
    %2008 = vmatpush1.bf16.msra.mxu0 %v1698
    %2009 = vmatprep.subr.bf16.mxu0 %v1703
    %2010 = vmatpush1.bf16.msra.mxu0 %v1702
    %2011 = vmatprep.subr.bf16.mxu0 %v1707
    %2012 = vmatpush1.bf16.msra.mxu0 %v1706
    %2013 = vmatprep.subr.bf16.mxu0 %v1711
    %2014 = vmatpush1.bf16.msra.mxu0 %v1710
    %2015 = vmatprep.subr.bf16.mxu0 %v1715
    %2016 = vmatpush1.bf16.msra.mxu0 %v1714
    %2017 = vmatprep.subr.bf16.mxu0 %v1719
    %2018 = vmatpush1.bf16.msra.mxu0 %v1718
    %2019 = vmatprep.subr.bf16.mxu0 %v1723
    %2020 = vmatpush1.bf16.msra.mxu0 %v1722
    %2021 = vmatprep.subr.bf16.mxu0 %v1727
    %2022 = vmatpush1.bf16.msra.mxu0 %v1726
    %2023 = vmatprep.subr.bf16.mxu0 %v1731
    %2024 = vmatpush1.bf16.msra.mxu0 %v1730
    %2025 = vmatprep.subr.bf16.mxu0 %v1735
    %2026 = vmatpush1.bf16.msra.mxu0 %v1734
    %2027 = vmatprep.subr.bf16.mxu0 %v1739
    %2028 = vmatpush1.bf16.msra.mxu0 %v1738
    %2029 = vmatprep.mubr.bf16.mxu0 %v1389
    %2030 = vmatmul.mubr.bf16.gmra.mrb[0].mxu0 %v1388
    %v2031 = vpop.f32.mrb[0].mxu0
    %v2032 = vadd.f32 0.0, %v2031
    %v2033 = vpop.f32.mrb[0].mxu0
    %v2034 = vadd.f32 0.0, %v2033
    %v2035 = vpop.f32.mrb[0].mxu0
    %v2036 = vadd.f32 0.0, %v2035
    %v2037 = vpop.f32.mrb[0].mxu0
    %v2038 = vadd.f32 0.0, %v2037
    %2039 = vmatprep.mubr.bf16.mxu0 %v1391
    %2040 = vmatmul.mubr.bf16.gmra.mrb[0].mxu0 %v1390
    %v2041 = vpop.f32.mrb[0].mxu0
    %v2042 = vadd.f32 0.0, %v2041
    %v2043 = vpop.f32.mrb[0].mxu0
    %v2044 = vadd.f32 0.0, %v2043
    %v2045 = vpop.f32.mrb[0].mxu0
    %v2046 = vadd.f32 0.0, %v2045
    %v2047 = vpop.f32.mrb[0].mxu0
    %v2048 = vadd.f32 0.0, %v2047
    %2049 = vmatprep.mubr.bf16.mxu0 %v1393
    %2050 = vmatmul.mubr.bf16.gmra.mrb[0].mxu0 %v1392
    %v2051 = vpop.f32.mrb[0].mxu0
    %v2052 = vadd.f32 0.0, %v2051
    %v2053 = vpop.f32.mrb[0].mxu0
    %v2054 = vadd.f32 0.0, %v2053
    %v2055 = vpop.f32.mrb[0].mxu0
    %v2056 = vadd.f32 0.0, %v2055
    %v2057 = vpop.f32.mrb[0].mxu0
    %v2058 = vadd.f32 0.0, %v2057
    %2059 = vmatprep.mubr.bf16.mxu0 %v1395
    %2060 = vmatmul.mubr.bf16.gmra.mrb[0].mxu0 %v1394
    %v2061 = vpop.f32.mrb[0].mxu0
    %v2062 = vadd.f32 0.0, %v2061
    %v2063 = vpop.f32.mrb[0].mxu0
    %v2064 = vadd.f32 0.0, %v2063
    %v2065 = vpop.f32.mrb[0].mxu0
    %v2066 = vadd.f32 0.0, %v2065
    %v2067 = vpop.f32.mrb[0].mxu0
    %v2068 = vadd.f32 0.0, %v2067
    %2069 = vmatprep.mubr.bf16.mxu0 %v1397
    %2070 = vmatmul.mubr.bf16.gmra.mrb[0].mxu0 %v1396
    %v2071 = vpop.f32.mrb[0].mxu0
    %v2072 = vadd.f32 0.0, %v2071
    %v2073 = vpop.f32.mrb[0].mxu0
    %v2074 = vadd.f32 0.0, %v2073
    %v2075 = vpop.f32.mrb[0].mxu0
    %v2076 = vadd.f32 0.0, %v2075
    %v2077 = vpop.f32.mrb[0].mxu0
    %v2078 = vadd.f32 0.0, %v2077
    %2079 = vmatprep.mubr.bf16.mxu0 %v1399
    %2080 = vmatmul.mubr.bf16.gmra.mrb[0].mxu0 %v1398
    %v2081 = vpop.f32.mrb[0].mxu0
    %v2082 = vadd.f32 0.0, %v2081
    %v2083 = vpop.f32.mrb[0].mxu0
    %v2084 = vadd.f32 0.0, %v2083
    %v2085 = vpop.f32.mrb[0].mxu0
    %v2086 = vadd.f32 0.0, %v2085
    %v2087 = vpop.f32.mrb[0].mxu0
    %v2088 = vadd.f32 0.0, %v2087
    %2089 = vmatprep.mubr.bf16.mxu0 %v1401
    %2090 = vmatmul.mubr.bf16.gmra.mrb[0].mxu0 %v1400
    %v2091 = vpop.f32.mrb[0].mxu0
    %v2092 = vadd.f32 0.0, %v2091
    %v2093 = vpop.f32.mrb[0].mxu0
    %v2094 = vadd.f32 0.0, %v2093
    %v2095 = vpop.f32.mrb[0].mxu0
    %v2096 = vadd.f32 0.0, %v2095
    %v2097 = vpop.f32.mrb[0].mxu0
    %v2098 = vadd.f32 0.0, %v2097
    %2099 = vmatprep.mubr.bf16.mxu0 %v1403
    %2100 = vmatmul.mubr.bf16.gmra.mrb[0].mxu0 %v1402
    %v2101 = vpop.f32.mrb[0].mxu0
    %v2102 = vadd.f32 0.0, %v2101
    %v2103 = vpop.f32.mrb[0].mxu0
    %v2104 = vadd.f32 0.0, %v2103
    %v2105 = vpop.f32.mrb[0].mxu0
    %v2106 = vadd.f32 0.0, %v2105
    %v2107 = vpop.f32.mrb[0].mxu0
    %v2108 = vadd.f32 0.0, %v2107
    %2109 = vmatprep.mubr.bf16.mxu0 %v1405
    %2110 = vmatmul.mubr.bf16.gmra.mrb[0].mxu0 %v1404
    %v2111 = vpop.f32.mrb[0].mxu0
    %v2112 = vadd.f32 0.0, %v2111
    %v2113 = vpop.f32.mrb[0].mxu0
    %v2114 = vadd.f32 0.0, %v2113
    %v2115 = vpop.f32.mrb[0].mxu0
    %v2116 = vadd.f32 0.0, %v2115
    %v2117 = vpop.f32.mrb[0].mxu0
    %v2118 = vadd.f32 0.0, %v2117
    %2119 = vmatprep.mubr.bf16.mxu0 %v1407
    %2120 = vmatmul.mubr.bf16.gmra.mrb[0].mxu0 %v1406
    %v2121 = vpop.f32.mrb[0].mxu0
    %v2122 = vadd.f32 0.0, %v2121
    %v2123 = vpop.f32.mrb[0].mxu0
    %v2124 = vadd.f32 0.0, %v2123
    %v2125 = vpop.f32.mrb[0].mxu0
    %v2126 = vadd.f32 0.0, %v2125
    %v2127 = vpop.f32.mrb[0].mxu0
    %v2128 = vadd.f32 0.0, %v2127
    %2129 = vmatprep.mubr.bf16.mxu0 %v1409
    %2130 = vmatmul.mubr.bf16.gmra.mrb[0].mxu0 %v1408
    %v2131 = vpop.f32.mrb[0].mxu0
    %v2132 = vadd.f32 0.0, %v2131
    %v2133 = vpop.f32.mrb[0].mxu0
    %v2134 = vadd.f32 0.0, %v2133
    %v2135 = vpop.f32.mrb[0].mxu0
    %v2136 = vadd.f32 0.0, %v2135
    %v2137 = vpop.f32.mrb[0].mxu0
    %v2138 = vadd.f32 0.0, %v2137
    %2139 = vmatprep.mubr.bf16.mxu0 %v1411
    %2140 = vmatmul.mubr.bf16.gmra.mrb[0].mxu0 %v1410
    %v2141 = vpop.f32.mrb[0].mxu0
    %v2142 = vadd.f32 0.0, %v2141
    %v2143 = vpop.f32.mrb[0].mxu0
    %v2144 = vadd.f32 0.0, %v2143
    %v2145 = vpop.f32.mrb[0].mxu0
    %v2146 = vadd.f32 0.0, %v2145
    %v2147 = vpop.f32.mrb[0].mxu0
    %v2148 = vadd.f32 0.0, %v2147
    %2149 = vmatprep.mubr.bf16.mxu0 %v1413
    %2150 = vmatmul.mubr.bf16.gmra.mrb[0].mxu0 %v1412
    %v2151 = vpop.f32.mrb[0].mxu0
    %v2152 = vadd.f32 0.0, %v2151
    %v2153 = vpop.f32.mrb[0].mxu0
    %v2154 = vadd.f32 0.0, %v2153
    %v2155 = vpop.f32.mrb[0].mxu0
    %v2156 = vadd.f32 0.0, %v2155
    %v2157 = vpop.f32.mrb[0].mxu0
    %v2158 = vadd.f32 0.0, %v2157
    %2159 = vmatprep.mubr.bf16.mxu0 %v1415
    %2160 = vmatmul.mubr.bf16.gmra.mrb[0].mxu0 %v1414
    %v2161 = vpop.f32.mrb[0].mxu0
    %v2162 = vadd.f32 0.0, %v2161
    %v2163 = vpop.f32.mrb[0].mxu0
    %v2164 = vadd.f32 0.0, %v2163
    %v2165 = vpop.f32.mrb[0].mxu0
    %v2166 = vadd.f32 0.0, %v2165
    %v2167 = vpop.f32.mrb[0].mxu0
    %v2168 = vadd.f32 0.0, %v2167
    %2169 = vmatprep.mubr.bf16.mxu0 %v1417
    %2170 = vmatmul.mubr.bf16.gmra.mrb[0].mxu0 %v1416
    %v2171 = vpop.f32.mrb[0].mxu0
    %v2172 = vadd.f32 0.0, %v2171
    %v2173 = vpop.f32.mrb[0].mxu0
    %v2174 = vadd.f32 0.0, %v2173
    %v2175 = vpop.f32.mrb[0].mxu0
    %v2176 = vadd.f32 0.0, %v2175
    %v2177 = vpop.f32.mrb[0].mxu0
    %v2178 = vadd.f32 0.0, %v2177
    %2179 = vmatprep.mubr.bf16.mxu0 %v1419
    %2180 = vmatmul.mubr.bf16.gmra.mrb[0].mxu0 %v1418
    %v2181 = vpop.f32.mrb[0].mxu0
    %v2182 = vadd.f32 0.0, %v2181
    %v2183 = vpop.f32.mrb[0].mxu0
    %v2184 = vadd.f32 0.0, %v2183
    %v2185 = vpop.f32.mrb[0].mxu0
    %v2186 = vadd.f32 0.0, %v2185
    %v2187 = vpop.f32.mrb[0].mxu0
    %v2188 = vadd.f32 0.0, %v2187
    %2189 = vdwg.mxu0
    %v2190 = vpack.c.bf16 %v1170, %v1170
    %v2191 = vpack.c.bf16 %v1177, %v1177
    %v2192 = vpack.c.bf16 %v1184, %v1184
    %v2193 = vpack.c.bf16 %v1191, %v1191
    %v2194 = vpack.c.bf16 %v1198, %v1198
    %v2195 = vpack.c.bf16 %v1205, %v1205
    %v2196 = vpack.c.bf16 %v1212, %v1212
    %v2197 = vpack.c.bf16 %v1219, %v1219
    %v2198 = vpack.c.bf16 %v1226, %v1226
    %v2199 = vpack.c.bf16 %v1233, %v1233
    %v2200 = vpack.c.bf16 %v1240, %v1240
    %v2201 = vpack.c.bf16 %v1247, %v1247
    %v2202 = vpack.c.bf16 %v1254, %v1254
    %v2203 = vpack.c.bf16 %v1261, %v1261
    %v2204 = vpack.c.bf16 %v1268, %v1268
    %v2205 = vpack.c.bf16 %v1275, %v1275
    %v2206 = vpack.c.bf16 %v1282, %v1282
    %v2207 = vpack.c.bf16 %v1289, %v1289
    %v2208 = vpack.c.bf16 %v1296, %v1296
    %v2209 = vpack.c.bf16 %v1303, %v1303
    %v2210 = vpack.c.bf16 %v1310, %v1310
    %v2211 = vpack.c.bf16 %v1317, %v1317
    %v2212 = vpack.c.bf16 %v1324, %v1324
    %v2213 = vpack.c.bf16 %v1331, %v1331
    %v2214 = vpack.c.bf16 %v1338, %v1338
    %v2215 = vpack.c.bf16 %v1345, %v1345
    %v2216 = vpack.c.bf16 %v1352, %v1352
    %v2217 = vpack.c.bf16 %v1359, %v1359
    %v2218 = vpack.c.bf16 %v1366, %v1366
    %v2219 = vpack.c.bf16 %v1373, %v1373
    %v2220 = vpack.c.bf16 %v1380, %v1380
    %v2221 = vpack.c.bf16 %v1387, %v1387
    %v2222 = vld [vmem:[%s7] sm:$0xff]
    %v2223 = vld [vmem:[%s7 + $0x8] sm:$0xff]
    %v2224 = vld [vmem:[%s7 + $0x10] sm:$0xff]
    %v2225 = vld [vmem:[%s7 + $0x18] sm:$0xff]
    %v2226 = vld [vmem:[%s7 + $0x20] sm:$0xff]
    %v2227 = vld [vmem:[%s7 + $0x28] sm:$0xff]
    %v2228 = vld [vmem:[%s7 + $0x30] sm:$0xff]
    %v2229 = vld [vmem:[%s7 + $0x38] sm:$0xff]
    %v2230 = vld [vmem:[%s7 + $0x40] sm:$0xff]
    %v2231 = vld [vmem:[%s7 + $0x48] sm:$0xff]
    %v2232 = vld [vmem:[%s7 + $0x50] sm:$0xff]
    %v2233 = vld [vmem:[%s7 + $0x58] sm:$0xff]
    %v2234 = vld [vmem:[%s7 + $0x60] sm:$0xff]
    %v2235 = vld [vmem:[%s7 + $0x68] sm:$0xff]
    %v2236 = vld [vmem:[%s7 + $0x70] sm:$0xff]
    %v2237 = vld [vmem:[%s7 + $0x78] sm:$0xff]
    %v2238 = vld [vmem:[%s7 + $0x80] sm:$0xff]
    %v2239 = vld [vmem:[%s7 + $0x88] sm:$0xff]
    %v2240 = vld [vmem:[%s7 + $0x90] sm:$0xff]
    %v2241 = vld [vmem:[%s7 + $0x98] sm:$0xff]
    %v2242 = vld [vmem:[%s7 + $0xa0] sm:$0xff]
    %v2243 = vld [vmem:[%s7 + $0xa8] sm:$0xff]
    %v2244 = vld [vmem:[%s7 + $0xb0] sm:$0xff]
    %v2245 = vld [vmem:[%s7 + $0xb8] sm:$0xff]
    %v2246 = vld [vmem:[%s7 + $0xc0] sm:$0xff]
    %v2247 = vld [vmem:[%s7 + $0xc8] sm:$0xff]
    %v2248 = vld [vmem:[%s7 + $0xd0] sm:$0xff]
    %v2249 = vld [vmem:[%s7 + $0xd8] sm:$0xff]
    %v2250 = vld [vmem:[%s7 + $0xe0] sm:$0xff]
    %v2251 = vld [vmem:[%s7 + $0xe8] sm:$0xff]
    %v2252 = vld [vmem:[%s7 + $0xf0] sm:$0xff]
    %v2253 = vld [vmem:[%s7 + $0xf8] sm:$0xff]
    %v2254 = vld [vmem:[%s7 + $0x100] sm:$0xff]
    %v2255 = vld [vmem:[%s7 + $0x108] sm:$0xff]
    %v2256 = vld [vmem:[%s7 + $0x110] sm:$0xff]
    %v2257 = vld [vmem:[%s7 + $0x118] sm:$0xff]
    %v2258 = vld [vmem:[%s7 + $0x120] sm:$0xff]
    %v2259 = vld [vmem:[%s7 + $0x128] sm:$0xff]
    %v2260 = vld [vmem:[%s7 + $0x130] sm:$0xff]
    %v2261 = vld [vmem:[%s7 + $0x138] sm:$0xff]
    %v2262 = vld [vmem:[%s7 + $0x140] sm:$0xff]
    %v2263 = vld [vmem:[%s7 + $0x148] sm:$0xff]
    %v2264 = vld [vmem:[%s7 + $0x150] sm:$0xff]
    %v2265 = vld [vmem:[%s7 + $0x158] sm:$0xff]
    %v2266 = vld [vmem:[%s7 + $0x160] sm:$0xff]
    %v2267 = vld [vmem:[%s7 + $0x168] sm:$0xff]
    %v2268 = vld [vmem:[%s7 + $0x170] sm:$0xff]
    %v2269 = vld [vmem:[%s7 + $0x178] sm:$0xff]
    %v2270 = vld [vmem:[%s7 + $0x180] sm:$0xff]
    %v2271 = vld [vmem:[%s7 + $0x188] sm:$0xff]
    %v2272 = vld [vmem:[%s7 + $0x190] sm:$0xff]
    %v2273 = vld [vmem:[%s7 + $0x198] sm:$0xff]
    %v2274 = vld [vmem:[%s7 + $0x1a0] sm:$0xff]
    %v2275 = vld [vmem:[%s7 + $0x1a8] sm:$0xff]
    %v2276 = vld [vmem:[%s7 + $0x1b0] sm:$0xff]
    %v2277 = vld [vmem:[%s7 + $0x1b8] sm:$0xff]
    %v2278 = vld [vmem:[%s7 + $0x1c0] sm:$0xff]
    %v2279 = vld [vmem:[%s7 + $0x1c8] sm:$0xff]
    %v2280 = vld [vmem:[%s7 + $0x1d0] sm:$0xff]
    %v2281 = vld [vmem:[%s7 + $0x1d8] sm:$0xff]
    %v2282 = vld [vmem:[%s7 + $0x1e0] sm:$0xff]
    %v2283 = vld [vmem:[%s7 + $0x1e8] sm:$0xff]
    %v2284 = vld [vmem:[%s7 + $0x1f0] sm:$0xff]
    %v2285 = vld [vmem:[%s7 + $0x1f8] sm:$0xff]
    %v2318 = vunpack.c.l.b16 %v2190
    %v2319 = vunpack.c.l.b16 %v2191
    %v2320 = vunpack.c.l.b16 %v2192
    %v2321 = vunpack.c.l.b16 %v2193
    %v2322 = vunpack.c.l.b16 %v2194
    %v2323 = vunpack.c.l.b16 %v2195
    %v2324 = vunpack.c.l.b16 %v2196
    %v2325 = vunpack.c.l.b16 %v2197
    %v2326 = vunpack.c.l.b16 %v2198
    %v2327 = vunpack.c.l.b16 %v2199
    %v2328 = vunpack.c.l.b16 %v2200
    %v2329 = vunpack.c.l.b16 %v2201
    %v2330 = vunpack.c.l.b16 %v2202
    %v2331 = vunpack.c.l.b16 %v2203
    %v2332 = vunpack.c.l.b16 %v2204
    %v2333 = vunpack.c.l.b16 %v2205
    %v2334 = vunpack.c.l.b16 %v2206
    %v2335 = vunpack.c.l.b16 %v2207
    %v2336 = vunpack.c.l.b16 %v2208
    %v2337 = vunpack.c.l.b16 %v2209
    %v2338 = vunpack.c.l.b16 %v2210
    %v2339 = vunpack.c.l.b16 %v2211
    %v2340 = vunpack.c.l.b16 %v2212
    %v2341 = vunpack.c.l.b16 %v2213
    %v2342 = vunpack.c.l.b16 %v2214
    %v2343 = vunpack.c.l.b16 %v2215
    %v2344 = vunpack.c.l.b16 %v2216
    %v2345 = vunpack.c.l.b16 %v2217
    %v2346 = vunpack.c.l.b16 %v2218
    %v2347 = vunpack.c.l.b16 %v2219
    %v2348 = vunpack.c.l.b16 %v2220
    %v2349 = vunpack.c.l.b16 %v2221
    %vm2350 = vcmask 1041409
    %v2351 = vsel %vm2350, %v2320, %v2318
    %vm2352 = vcmask 1042434
    %v2353 = vsel %vm2352, %v2322, %v2351
    %vm2354 = vcmask 1043459
    %v2355 = vsel %vm2354, %v2324, %v2353
    %vm2356 = vcmask 1044484
    %v2357 = vsel %vm2356, %v2326, %v2355
    %vm2358 = vcmask 1045509
    %v2359 = vsel %vm2358, %v2328, %v2357
    %vm2360 = vcmask 1046534
    %v2361 = vsel %vm2360, %v2330, %v2359
    %vm2362 = vcmask 1047559
    %v2363 = vsel %vm2362, %v2332, %v2361
    %v2364 = vsel %vm2350, %v2321, %v2319
    %v2365 = vsel %vm2352, %v2323, %v2364
    %v2366 = vsel %vm2354, %v2325, %v2365
    %v2367 = vsel %vm2356, %v2327, %v2366
    %v2368 = vsel %vm2358, %v2329, %v2367
    %v2369 = vsel %vm2360, %v2331, %v2368
    %v2370 = vsel %vm2362, %v2333, %v2369
    %v2371 = vsel %vm2350, %v2336, %v2334
    %v2372 = vsel %vm2352, %v2338, %v2371
    %v2373 = vsel %vm2354, %v2340, %v2372
    %v2374 = vsel %vm2356, %v2342, %v2373
    %v2375 = vsel %vm2358, %v2344, %v2374
    %v2376 = vsel %vm2360, %v2346, %v2375
    %v2377 = vsel %vm2362, %v2348, %v2376
    %v2378 = vsel %vm2350, %v2337, %v2335
    %v2379 = vsel %vm2352, %v2339, %v2378
    %v2380 = vsel %vm2354, %v2341, %v2379
    %v2381 = vsel %vm2356, %v2343, %v2380
    %v2382 = vsel %vm2358, %v2345, %v2381
    %v2383 = vsel %vm2360, %v2347, %v2382
    %v2384 = vsel %vm2362, %v2349, %v2383
    %v2385 = vpack.c.b16 %v2377, %v2363
    %v2386 = vpack.c.b16 %v2384, %v2370
    %v2453 = vunpack.c.l.b16 %v2222
    %v2454 = vunpack.c.h.b16 %v2222
    %v2455 = vunpack.c.l.b16 %v2223
    %v2456 = vunpack.c.h.b16 %v2223
    %v2457 = vunpack.c.l.b16 %v2224
    %v2458 = vunpack.c.h.b16 %v2224
    %v2459 = vunpack.c.l.b16 %v2225
    %v2460 = vunpack.c.h.b16 %v2225
    %v2461 = vunpack.c.l.b16 %v2226
    %v2462 = vunpack.c.h.b16 %v2226
    %v2463 = vunpack.c.l.b16 %v2227
    %v2464 = vunpack.c.h.b16 %v2227
    %v2465 = vunpack.c.l.b16 %v2228
    %v2466 = vunpack.c.h.b16 %v2228
    %v2467 = vunpack.c.l.b16 %v2229
    %v2468 = vunpack.c.h.b16 %v2229
    %v2469 = vunpack.c.l.b16 %v2230
    %v2470 = vunpack.c.h.b16 %v2230
    %v2471 = vunpack.c.l.b16 %v2231
    %v2472 = vunpack.c.h.b16 %v2231
    %v2473 = vunpack.c.l.b16 %v2232
    %v2474 = vunpack.c.h.b16 %v2232
    %v2475 = vunpack.c.l.b16 %v2233
    %v2476 = vunpack.c.h.b16 %v2233
    %v2477 = vunpack.c.l.b16 %v2234
    %v2478 = vunpack.c.h.b16 %v2234
    %v2479 = vunpack.c.l.b16 %v2235
    %v2480 = vunpack.c.h.b16 %v2235
    %v2481 = vunpack.c.l.b16 %v2236
    %v2482 = vunpack.c.h.b16 %v2236
    %v2483 = vunpack.c.l.b16 %v2237
    %v2484 = vunpack.c.h.b16 %v2237
    %v2485 = vunpack.c.l.b16 %v2238
    %v2486 = vunpack.c.h.b16 %v2238
    %v2487 = vunpack.c.l.b16 %v2239
    %v2488 = vunpack.c.h.b16 %v2239
    %v2489 = vunpack.c.l.b16 %v2240
    %v2490 = vunpack.c.h.b16 %v2240
    %v2491 = vunpack.c.l.b16 %v2241
    %v2492 = vunpack.c.h.b16 %v2241
    %v2493 = vunpack.c.l.b16 %v2242
    %v2494 = vunpack.c.h.b16 %v2242
    %v2495 = vunpack.c.l.b16 %v2243
    %v2496 = vunpack.c.h.b16 %v2243
    %v2497 = vunpack.c.l.b16 %v2244
    %v2498 = vunpack.c.h.b16 %v2244
    %v2499 = vunpack.c.l.b16 %v2245
    %v2500 = vunpack.c.h.b16 %v2245
    %v2501 = vunpack.c.l.b16 %v2246
    %v2502 = vunpack.c.h.b16 %v2246
    %v2503 = vunpack.c.l.b16 %v2247
    %v2504 = vunpack.c.h.b16 %v2247
    %v2505 = vunpack.c.l.b16 %v2248
    %v2506 = vunpack.c.h.b16 %v2248
    %v2507 = vunpack.c.l.b16 %v2249
    %v2508 = vunpack.c.h.b16 %v2249
    %v2509 = vunpack.c.l.b16 %v2250
    %v2510 = vunpack.c.h.b16 %v2250
    %v2511 = vunpack.c.l.b16 %v2251
    %v2512 = vunpack.c.h.b16 %v2251
    %v2513 = vunpack.c.l.b16 %v2252
    %v2514 = vunpack.c.h.b16 %v2252
    %v2515 = vunpack.c.l.b16 %v2253
    %v2516 = vunpack.c.h.b16 %v2253
    %v2517 = vunpack.c.l.b16 %v2254
    %v2518 = vunpack.c.h.b16 %v2254
    %v2519 = vunpack.c.l.b16 %v2255
    %v2520 = vunpack.c.h.b16 %v2255
    %v2521 = vunpack.c.l.b16 %v2256
    %v2522 = vunpack.c.h.b16 %v2256
    %v2523 = vunpack.c.l.b16 %v2257
    %v2524 = vunpack.c.h.b16 %v2257
    %v2525 = vunpack.c.l.b16 %v2258
    %v2526 = vunpack.c.h.b16 %v2258
    %v2527 = vunpack.c.l.b16 %v2259
    %v2528 = vunpack.c.h.b16 %v2259
    %v2529 = vunpack.c.l.b16 %v2260
    %v2530 = vunpack.c.h.b16 %v2260
    %v2531 = vunpack.c.l.b16 %v2261
    %v2532 = vunpack.c.h.b16 %v2261
    %v2533 = vunpack.c.l.b16 %v2262
    %v2534 = vunpack.c.h.b16 %v2262
    %v2535 = vunpack.c.l.b16 %v2263
    %v2536 = vunpack.c.h.b16 %v2263
    %v2537 = vunpack.c.l.b16 %v2264
    %v2538 = vunpack.c.h.b16 %v2264
    %v2539 = vunpack.c.l.b16 %v2265
    %v2540 = vunpack.c.h.b16 %v2265
    %v2541 = vunpack.c.l.b16 %v2266
    %v2542 = vunpack.c.h.b16 %v2266
    %v2543 = vunpack.c.l.b16 %v2267
    %v2544 = vunpack.c.h.b16 %v2267
    %v2545 = vunpack.c.l.b16 %v2268
    %v2546 = vunpack.c.h.b16 %v2268
    %v2547 = vunpack.c.l.b16 %v2269
    %v2548 = vunpack.c.h.b16 %v2269
    %v2549 = vunpack.c.l.b16 %v2270
    %v2550 = vunpack.c.h.b16 %v2270
    %v2551 = vunpack.c.l.b16 %v2271
    %v2552 = vunpack.c.h.b16 %v2271
    %v2553 = vunpack.c.l.b16 %v2272
    %v2554 = vunpack.c.h.b16 %v2272
    %v2555 = vunpack.c.l.b16 %v2273
    %v2556 = vunpack.c.h.b16 %v2273
    %v2557 = vunpack.c.l.b16 %v2274
    %v2558 = vunpack.c.h.b16 %v2274
    %v2559 = vunpack.c.l.b16 %v2275
    %v2560 = vunpack.c.h.b16 %v2275
    %v2561 = vunpack.c.l.b16 %v2276
    %v2562 = vunpack.c.h.b16 %v2276
    %v2563 = vunpack.c.l.b16 %v2277
    %v2564 = vunpack.c.h.b16 %v2277
    %v2565 = vunpack.c.l.b16 %v2278
    %v2566 = vunpack.c.h.b16 %v2278
    %v2567 = vunpack.c.l.b16 %v2279
    %v2568 = vunpack.c.h.b16 %v2279
    %v2569 = vunpack.c.l.b16 %v2280
    %v2570 = vunpack.c.h.b16 %v2280
    %v2571 = vunpack.c.l.b16 %v2281
    %v2572 = vunpack.c.h.b16 %v2281
    %v2573 = vunpack.c.l.b16 %v2282
    %v2574 = vunpack.c.h.b16 %v2282
    %v2575 = vunpack.c.l.b16 %v2283
    %v2576 = vunpack.c.h.b16 %v2283
    %v2577 = vunpack.c.l.b16 %v2284
    %v2578 = vunpack.c.h.b16 %v2284
    %v2579 = vunpack.c.l.b16 %v2285
    %v2580 = vunpack.c.h.b16 %v2285
    %v2581 = vpack.c.b16 %v2457, %v2453
    %v2582 = vpack.c.b16 %v2458, %v2454
    %v2583 = vpack.c.b16 %v2459, %v2455
    %v2584 = vpack.c.b16 %v2460, %v2456
    %v2585 = vpack.c.b16 %v2465, %v2461
    %v2586 = vpack.c.b16 %v2466, %v2462
    %v2587 = vpack.c.b16 %v2467, %v2463
    %v2588 = vpack.c.b16 %v2468, %v2464
    %v2589 = vpack.c.b16 %v2473, %v2469
    %v2590 = vpack.c.b16 %v2474, %v2470
    %v2591 = vpack.c.b16 %v2475, %v2471
    %v2592 = vpack.c.b16 %v2476, %v2472
    %v2593 = vpack.c.b16 %v2481, %v2477
    %v2594 = vpack.c.b16 %v2482, %v2478
    %v2595 = vpack.c.b16 %v2483, %v2479
    %v2596 = vpack.c.b16 %v2484, %v2480
    %v2597 = vpack.c.b16 %v2489, %v2485
    %v2598 = vpack.c.b16 %v2490, %v2486
    %v2599 = vpack.c.b16 %v2491, %v2487
    %v2600 = vpack.c.b16 %v2492, %v2488
    %v2601 = vpack.c.b16 %v2497, %v2493
    %v2602 = vpack.c.b16 %v2498, %v2494
    %v2603 = vpack.c.b16 %v2499, %v2495
    %v2604 = vpack.c.b16 %v2500, %v2496
    %v2605 = vpack.c.b16 %v2505, %v2501
    %v2606 = vpack.c.b16 %v2506, %v2502
    %v2607 = vpack.c.b16 %v2507, %v2503
    %v2608 = vpack.c.b16 %v2508, %v2504
    %v2609 = vpack.c.b16 %v2513, %v2509
    %v2610 = vpack.c.b16 %v2514, %v2510
    %v2611 = vpack.c.b16 %v2515, %v2511
    %v2612 = vpack.c.b16 %v2516, %v2512
    %v2613 = vpack.c.b16 %v2521, %v2517
    %v2614 = vpack.c.b16 %v2522, %v2518
    %v2615 = vpack.c.b16 %v2523, %v2519
    %v2616 = vpack.c.b16 %v2524, %v2520
    %v2617 = vpack.c.b16 %v2529, %v2525
    %v2618 = vpack.c.b16 %v2530, %v2526
    %v2619 = vpack.c.b16 %v2531, %v2527
    %v2620 = vpack.c.b16 %v2532, %v2528
    %v2621 = vpack.c.b16 %v2537, %v2533
    %v2622 = vpack.c.b16 %v2538, %v2534
    %v2623 = vpack.c.b16 %v2539, %v2535
    %v2624 = vpack.c.b16 %v2540, %v2536
    %v2625 = vpack.c.b16 %v2545, %v2541
    %v2626 = vpack.c.b16 %v2546, %v2542
    %v2627 = vpack.c.b16 %v2547, %v2543
    %v2628 = vpack.c.b16 %v2548, %v2544
    %v2629 = vpack.c.b16 %v2553, %v2549
    %v2630 = vpack.c.b16 %v2554, %v2550
    %v2631 = vpack.c.b16 %v2555, %v2551
    %v2632 = vpack.c.b16 %v2556, %v2552
    %v2633 = vpack.c.b16 %v2561, %v2557
    %v2634 = vpack.c.b16 %v2562, %v2558
    %v2635 = vpack.c.b16 %v2563, %v2559
    %v2636 = vpack.c.b16 %v2564, %v2560
    %v2637 = vpack.c.b16 %v2569, %v2565
    %v2638 = vpack.c.b16 %v2570, %v2566
    %v2639 = vpack.c.b16 %v2571, %v2567
    %v2640 = vpack.c.b16 %v2572, %v2568
    %v2641 = vpack.c.b16 %v2577, %v2573
    %v2642 = vpack.c.b16 %v2578, %v2574
    %v2643 = vpack.c.b16 %v2579, %v2575
    %v2644 = vpack.c.b16 %v2580, %v2576
    %2709 = vmatprep.subr.bf16.mxu0 %v2582
    %2710 = vmatpush1.bf16.msra.mxu0 %v2581
    %2711 = vmatprep.subr.bf16.mxu0 %v2586
    %2712 = vmatpush1.bf16.msra.mxu0 %v2585
    %2713 = vmatprep.subr.bf16.mxu0 %v2590
    %2714 = vmatpush1.bf16.msra.mxu0 %v2589
    %2715 = vmatprep.subr.bf16.mxu0 %v2594
    %2716 = vmatpush1.bf16.msra.mxu0 %v2593
    %2717 = vmatprep.subr.bf16.mxu0 %v2598
    %2718 = vmatpush1.bf16.msra.mxu0 %v2597
    %2719 = vmatprep.subr.bf16.mxu0 %v2602
    %2720 = vmatpush1.bf16.msra.mxu0 %v2601
    %2721 = vmatprep.subr.bf16.mxu0 %v2606
    %2722 = vmatpush1.bf16.msra.mxu0 %v2605
    %2723 = vmatprep.subr.bf16.mxu0 %v2610
    %2724 = vmatpush1.bf16.msra.mxu0 %v2609
    %2725 = vmatprep.subr.bf16.mxu0 %v2614
    %2726 = vmatpush1.bf16.msra.mxu0 %v2613
    %2727 = vmatprep.subr.bf16.mxu0 %v2618
    %2728 = vmatpush1.bf16.msra.mxu0 %v2617
    %2729 = vmatprep.subr.bf16.mxu0 %v2622
    %2730 = vmatpush1.bf16.msra.mxu0 %v2621
    %2731 = vmatprep.subr.bf16.mxu0 %v2626
    %2732 = vmatpush1.bf16.msra.mxu0 %v2625
    %2733 = vmatprep.subr.bf16.mxu0 %v2630
    %2734 = vmatpush1.bf16.msra.mxu0 %v2629
    %2735 = vmatprep.subr.bf16.mxu0 %v2634
    %2736 = vmatpush1.bf16.msra.mxu0 %v2633
    %2737 = vmatprep.subr.bf16.mxu0 %v2638
    %2738 = vmatpush1.bf16.msra.mxu0 %v2637
    %2739 = vmatprep.subr.bf16.mxu0 %v2642
    %2740 = vmatpush1.bf16.msra.mxu0 %v2641
    %2741 = vmatprep.mubr.bf16.mxu0 %v2386
    %2742 = vmatmul.mubr.bf16.gmra.mrb[0].mxu0 %v2385
    %v2743 = vpop.f32.mrb[0].mxu0
    %v2744 = vadd.f32 0.0, %v2743
    %v2745 = vpop.f32.mrb[0].mxu0
    %v2746 = vadd.f32 0.0, %v2745
    %v2747 = vpop.f32.mrb[0].mxu0
    %v2748 = vadd.f32 0.0, %v2747
    %v2749 = vpop.f32.mrb[0].mxu0
    %v2750 = vadd.f32 0.0, %v2749
    %2751 = vdwg.mxu0
    %2752 = vmatprep.subr.bf16.mxu0 %v2584
    %2753 = vmatpush1.bf16.msra.mxu0 %v2583
    %2754 = vmatprep.subr.bf16.mxu0 %v2588
    %2755 = vmatpush1.bf16.msra.mxu0 %v2587
    %2756 = vmatprep.subr.bf16.mxu0 %v2592
    %2757 = vmatpush1.bf16.msra.mxu0 %v2591
    %2758 = vmatprep.subr.bf16.mxu0 %v2596
    %2759 = vmatpush1.bf16.msra.mxu0 %v2595
    %2760 = vmatprep.subr.bf16.mxu0 %v2600
    %2761 = vmatpush1.bf16.msra.mxu0 %v2599
    %2762 = vmatprep.subr.bf16.mxu0 %v2604
    %2763 = vmatpush1.bf16.msra.mxu0 %v2603
    %2764 = vmatprep.subr.bf16.mxu0 %v2608
    %2765 = vmatpush1.bf16.msra.mxu0 %v2607
    %2766 = vmatprep.subr.bf16.mxu0 %v2612
    %2767 = vmatpush1.bf16.msra.mxu0 %v2611
    %2768 = vmatprep.subr.bf16.mxu0 %v2616
    %2769 = vmatpush1.bf16.msra.mxu0 %v2615
    %2770 = vmatprep.subr.bf16.mxu0 %v2620
    %2771 = vmatpush1.bf16.msra.mxu0 %v2619
    %2772 = vmatprep.subr.bf16.mxu0 %v2624
    %2773 = vmatpush1.bf16.msra.mxu0 %v2623
    %2774 = vmatprep.subr.bf16.mxu0 %v2628
    %2775 = vmatpush1.bf16.msra.mxu0 %v2627
    %2776 = vmatprep.subr.bf16.mxu0 %v2632
    %2777 = vmatpush1.bf16.msra.mxu0 %v2631
    %2778 = vmatprep.subr.bf16.mxu0 %v2636
    %2779 = vmatpush1.bf16.msra.mxu0 %v2635
    %2780 = vmatprep.subr.bf16.mxu0 %v2640
    %2781 = vmatpush1.bf16.msra.mxu0 %v2639
    %2782 = vmatprep.subr.bf16.mxu0 %v2644
    %2783 = vmatpush1.bf16.msra.mxu0 %v2643
    %2784 = vmatprep.mubr.bf16.mxu0 %v2386
    %2785 = vmatmul.mubr.bf16.gmra.mrb[0].mxu0 %v2385
    %v2786 = vpop.f32.mrb[0].mxu0
    %v2787 = vadd.f32 0.0, %v2786
    %v2788 = vpop.f32.mrb[0].mxu0
    %v2789 = vadd.f32 0.0, %v2788
    %v2790 = vpop.f32.mrb[0].mxu0
    %v2791 = vadd.f32 0.0, %v2790
    %v2792 = vpop.f32.mrb[0].mxu0
    %v2793 = vadd.f32 0.0, %v2792
    %2794 = vdwg.mxu0
    %v2803 = vcombine.low %v2744, %v2746
    %v2804 = vcombine.high %v2744, %v2746
    %v2805 = vcombine.low %v2787, %v2789
    %v2806 = vcombine.high %v2787, %v2789
    %v2808 = vunpack.c.l.s4 1966171168
    %v2809 = vunpack.c.0.s8 %v2808
    %v2810 = vlaneseq
    %v2811 = vshrl.u32 %v2810, 7
    %v2812 = vsub.s32 %v2809, %v2811
    %v2813 = vrot.slane %v2803, %v2812
    %v2815 = vunpack.c.l.s4 1966171168
    %v2816 = vunpack.c.0.s8 %v2815
    %v2817 = vlaneseq
    %v2818 = vshrl.u32 %v2817, 7
    %v2819 = vsub.s32 %v2816, %v2818
    %v2820 = vrot.slane %v2804, %v2819
    %v2822 = vunpack.c.l.s4 1966171168
    %v2823 = vunpack.c.0.s8 %v2822
    %v2824 = vlaneseq
    %v2825 = vshrl.u32 %v2824, 7
    %v2826 = vsub.s32 %v2823, %v2825
    %v2827 = vrot.slane %v2805, %v2826
    %v2829 = vunpack.c.l.s4 1966171168
    %v2830 = vunpack.c.0.s8 %v2829
    %v2831 = vlaneseq
    %v2832 = vshrl.u32 %v2831, 7
    %v2833 = vsub.s32 %v2830, %v2832
    %v2834 = vrot.slane %v2806, %v2833
    %v2835 = vcombine.low %v2813, %v2827
    %v2836 = vcombine.high %v2813, %v2827
    %v2837 = vcombine.low %v2820, %v2834
    %v2838 = vcombine.high %v2820, %v2834
    %v2840 = vunpack.c.l.s4 1966171168
    %v2841 = vunpack.c.0.s8 %v2840
    %v2842 = vlaneseq
    %v2843 = vshrl.u32 %v2842, 7
    %v2844 = vsub.s32 %v2841, %v2843
    %v2845 = vrot.slane %v2835, %v2844
    %v2847 = vunpack.c.l.s4 1966171168
    %v2848 = vunpack.c.0.s8 %v2847
    %v2849 = vlaneseq
    %v2850 = vshrl.u32 %v2849, 7
    %v2851 = vsub.s32 %v2848, %v2850
    %v2852 = vrot.slane %v2837, %v2851
    %v2854 = vunpack.c.l.s4 1966171168
    %v2855 = vunpack.c.0.s8 %v2854
    %v2856 = vlaneseq
    %v2857 = vshrl.u32 %v2856, 7
    %v2858 = vsub.s32 %v2855, %v2857
    %v2859 = vrot.slane %v2836, %v2858
    %v2861 = vunpack.c.l.s4 1966171168
    %v2862 = vunpack.c.0.s8 %v2861
    %v2863 = vlaneseq
    %v2864 = vshrl.u32 %v2863, 7
    %v2865 = vsub.s32 %v2862, %v2864
    %v2866 = vrot.slane %v2838, %v2865
    %v2867 = vcombine.high %v2845, %v2845
    %v2868 = vcombine.high %v2852, %v2852
    %v2869 = vcombine.high %v2859, %v2859
    %v2870 = vcombine.high %v2866, %v2866
    %v2871 = vcombine.low %v2748, %v2750
    %v2872 = vcombine.high %v2748, %v2750
    %v2873 = vcombine.low %v2791, %v2793
    %v2874 = vcombine.high %v2791, %v2793
    %v2876 = vunpack.c.l.s4 1966171168
    %v2877 = vunpack.c.0.s8 %v2876
    %v2878 = vlaneseq
    %v2879 = vshrl.u32 %v2878, 7
    %v2880 = vsub.s32 %v2877, %v2879
    %v2881 = vrot.slane %v2871, %v2880
    %v2883 = vunpack.c.l.s4 1966171168
    %v2884 = vunpack.c.0.s8 %v2883
    %v2885 = vlaneseq
    %v2886 = vshrl.u32 %v2885, 7
    %v2887 = vsub.s32 %v2884, %v2886
    %v2888 = vrot.slane %v2872, %v2887
    %v2890 = vunpack.c.l.s4 1966171168
    %v2891 = vunpack.c.0.s8 %v2890
    %v2892 = vlaneseq
    %v2893 = vshrl.u32 %v2892, 7
    %v2894 = vsub.s32 %v2891, %v2893
    %v2895 = vrot.slane %v2873, %v2894
    %v2897 = vunpack.c.l.s4 1966171168
    %v2898 = vunpack.c.0.s8 %v2897
    %v2899 = vlaneseq
    %v2900 = vshrl.u32 %v2899, 7
    %v2901 = vsub.s32 %v2898, %v2900
    %v2902 = vrot.slane %v2874, %v2901
    %v2903 = vcombine.low %v2881, %v2895
    %v2904 = vcombine.high %v2881, %v2895
    %v2905 = vcombine.low %v2888, %v2902
    %v2906 = vcombine.high %v2888, %v2902
    %v2908 = vunpack.c.l.s4 1966171168
    %v2909 = vunpack.c.0.s8 %v2908
    %v2910 = vlaneseq
    %v2911 = vshrl.u32 %v2910, 7
    %v2912 = vsub.s32 %v2909, %v2911
    %v2913 = vrot.slane %v2903, %v2912
    %v2915 = vunpack.c.l.s4 1966171168
    %v2916 = vunpack.c.0.s8 %v2915
    %v2917 = vlaneseq
    %v2918 = vshrl.u32 %v2917, 7
    %v2919 = vsub.s32 %v2916, %v2918
    %v2920 = vrot.slane %v2905, %v2919
    %v2922 = vunpack.c.l.s4 1966171168
    %v2923 = vunpack.c.0.s8 %v2922
    %v2924 = vlaneseq
    %v2925 = vshrl.u32 %v2924, 7
    %v2926 = vsub.s32 %v2923, %v2925
    %v2927 = vrot.slane %v2904, %v2926
    %v2929 = vunpack.c.l.s4 1966171168
    %v2930 = vunpack.c.0.s8 %v2929
    %v2931 = vlaneseq
    %v2932 = vshrl.u32 %v2931, 7
    %v2933 = vsub.s32 %v2930, %v2932
    %v2934 = vrot.slane %v2906, %v2933
    %v2935 = vcombine.high %v2913, %v2913
    %v2936 = vcombine.high %v2920, %v2920
    %v2937 = vcombine.high %v2927, %v2927
    %v2938 = vcombine.high %v2934, %v2934
    %v2939 = vlaneseq
    %v2940 = vshrl.u32 %v2939, 7
    %v2941 = vsub.s32 0, %v2940
    %v2942 = vrot.slane %v2845, %v2941
    %v2943 = vlaneseq
    %v2944 = vshrl.u32 %v2943, 7
    %v2945 = vsub.s32 1, %v2944
    %v2946 = vrot.slane %v2845, %v2945
    %v2947 = vlaneseq
    %v2948 = vshrl.u32 %v2947, 7
    %v2949 = vsub.s32 2, %v2948
    %v2950 = vrot.slane %v2845, %v2949
    %v2951 = vlaneseq
    %v2952 = vshrl.u32 %v2951, 7
    %v2953 = vsub.s32 3, %v2952
    %v2954 = vrot.slane %v2845, %v2953
    %v2955 = vlaneseq
    %v2956 = vshrl.u32 %v2955, 7
    %v2957 = vsub.s32 0, %v2956
    %v2958 = vrot.slane %v2859, %v2957
    %v2959 = vlaneseq
    %v2960 = vshrl.u32 %v2959, 7
    %v2961 = vsub.s32 1, %v2960
    %v2962 = vrot.slane %v2859, %v2961
    %v2963 = vlaneseq
    %v2964 = vshrl.u32 %v2963, 7
    %v2965 = vsub.s32 2, %v2964
    %v2966 = vrot.slane %v2859, %v2965
    %v2967 = vlaneseq
    %v2968 = vshrl.u32 %v2967, 7
    %v2969 = vsub.s32 3, %v2968
    %v2970 = vrot.slane %v2859, %v2969
    %v2971 = vlaneseq
    %v2972 = vshrl.u32 %v2971, 7
    %v2973 = vsub.s32 0, %v2972
    %v2974 = vrot.slane %v2867, %v2973
    %v2975 = vlaneseq
    %v2976 = vshrl.u32 %v2975, 7
    %v2977 = vsub.s32 1, %v2976
    %v2978 = vrot.slane %v2867, %v2977
    %v2979 = vlaneseq
    %v2980 = vshrl.u32 %v2979, 7
    %v2981 = vsub.s32 2, %v2980
    %v2982 = vrot.slane %v2867, %v2981
    %v2983 = vlaneseq
    %v2984 = vshrl.u32 %v2983, 7
    %v2985 = vsub.s32 3, %v2984
    %v2986 = vrot.slane %v2867, %v2985
    %v2987 = vlaneseq
    %v2988 = vshrl.u32 %v2987, 7
    %v2989 = vsub.s32 0, %v2988
    %v2990 = vrot.slane %v2869, %v2989
    %v2991 = vlaneseq
    %v2992 = vshrl.u32 %v2991, 7
    %v2993 = vsub.s32 1, %v2992
    %v2994 = vrot.slane %v2869, %v2993
    %v2995 = vlaneseq
    %v2996 = vshrl.u32 %v2995, 7
    %v2997 = vsub.s32 2, %v2996
    %v2998 = vrot.slane %v2869, %v2997
    %v2999 = vlaneseq
    %v3000 = vshrl.u32 %v2999, 7
    %v3001 = vsub.s32 3, %v3000
    %v3002 = vrot.slane %v2869, %v3001
    %v3003 = vlaneseq
    %v3004 = vshrl.u32 %v3003, 7
    %v3005 = vsub.s32 0, %v3004
    %v3006 = vrot.slane %v2852, %v3005
    %v3007 = vlaneseq
    %v3008 = vshrl.u32 %v3007, 7
    %v3009 = vsub.s32 1, %v3008
    %v3010 = vrot.slane %v2852, %v3009
    %v3011 = vlaneseq
    %v3012 = vshrl.u32 %v3011, 7
    %v3013 = vsub.s32 2, %v3012
    %v3014 = vrot.slane %v2852, %v3013
    %v3015 = vlaneseq
    %v3016 = vshrl.u32 %v3015, 7
    %v3017 = vsub.s32 3, %v3016
    %v3018 = vrot.slane %v2852, %v3017
    %v3019 = vlaneseq
    %v3020 = vshrl.u32 %v3019, 7
    %v3021 = vsub.s32 0, %v3020
    %v3022 = vrot.slane %v2866, %v3021
    %v3023 = vlaneseq
    %v3024 = vshrl.u32 %v3023, 7
    %v3025 = vsub.s32 1, %v3024
    %v3026 = vrot.slane %v2866, %v3025
    %v3027 = vlaneseq
    %v3028 = vshrl.u32 %v3027, 7
    %v3029 = vsub.s32 2, %v3028
    %v3030 = vrot.slane %v2866, %v3029
    %v3031 = vlaneseq
    %v3032 = vshrl.u32 %v3031, 7
    %v3033 = vsub.s32 3, %v3032
    %v3034 = vrot.slane %v2866, %v3033
    %v3035 = vlaneseq
    %v3036 = vshrl.u32 %v3035, 7
    %v3037 = vsub.s32 0, %v3036
    %v3038 = vrot.slane %v2868, %v3037
    %v3039 = vlaneseq
    %v3040 = vshrl.u32 %v3039, 7
    %v3041 = vsub.s32 1, %v3040
    %v3042 = vrot.slane %v2868, %v3041
    %v3043 = vlaneseq
    %v3044 = vshrl.u32 %v3043, 7
    %v3045 = vsub.s32 2, %v3044
    %v3046 = vrot.slane %v2868, %v3045
    %v3047 = vlaneseq
    %v3048 = vshrl.u32 %v3047, 7
    %v3049 = vsub.s32 3, %v3048
    %v3050 = vrot.slane %v2868, %v3049
    %v3051 = vlaneseq
    %v3052 = vshrl.u32 %v3051, 7
    %v3053 = vsub.s32 0, %v3052
    %v3054 = vrot.slane %v2870, %v3053
    %v3055 = vlaneseq
    %v3056 = vshrl.u32 %v3055, 7
    %v3057 = vsub.s32 1, %v3056
    %v3058 = vrot.slane %v2870, %v3057
    %v3059 = vlaneseq
    %v3060 = vshrl.u32 %v3059, 7
    %v3061 = vsub.s32 2, %v3060
    %v3062 = vrot.slane %v2870, %v3061
    %v3063 = vlaneseq
    %v3064 = vshrl.u32 %v3063, 7
    %v3065 = vsub.s32 3, %v3064
    %v3066 = vrot.slane %v2870, %v3065
    %v3067 = vlaneseq
    %v3068 = vshrl.u32 %v3067, 7
    %v3069 = vsub.s32 0, %v3068
    %v3070 = vrot.slane %v2913, %v3069
    %v3071 = vlaneseq
    %v3072 = vshrl.u32 %v3071, 7
    %v3073 = vsub.s32 1, %v3072
    %v3074 = vrot.slane %v2913, %v3073
    %v3075 = vlaneseq
    %v3076 = vshrl.u32 %v3075, 7
    %v3077 = vsub.s32 2, %v3076
    %v3078 = vrot.slane %v2913, %v3077
    %v3079 = vlaneseq
    %v3080 = vshrl.u32 %v3079, 7
    %v3081 = vsub.s32 3, %v3080
    %v3082 = vrot.slane %v2913, %v3081
    %v3083 = vlaneseq
    %v3084 = vshrl.u32 %v3083, 7
    %v3085 = vsub.s32 0, %v3084
    %v3086 = vrot.slane %v2927, %v3085
    %v3087 = vlaneseq
    %v3088 = vshrl.u32 %v3087, 7
    %v3089 = vsub.s32 1, %v3088
    %v3090 = vrot.slane %v2927, %v3089
    %v3091 = vlaneseq
    %v3092 = vshrl.u32 %v3091, 7
    %v3093 = vsub.s32 2, %v3092
    %v3094 = vrot.slane %v2927, %v3093
    %v3095 = vlaneseq
    %v3096 = vshrl.u32 %v3095, 7
    %v3097 = vsub.s32 3, %v3096
    %v3098 = vrot.slane %v2927, %v3097
    %v3099 = vlaneseq
    %v3100 = vshrl.u32 %v3099, 7
    %v3101 = vsub.s32 0, %v3100
    %v3102 = vrot.slane %v2935, %v3101
    %v3103 = vlaneseq
    %v3104 = vshrl.u32 %v3103, 7
    %v3105 = vsub.s32 1, %v3104
    %v3106 = vrot.slane %v2935, %v3105
    %v3107 = vlaneseq
    %v3108 = vshrl.u32 %v3107, 7
    %v3109 = vsub.s32 2, %v3108
    %v3110 = vrot.slane %v2935, %v3109
    %v3111 = vlaneseq
    %v3112 = vshrl.u32 %v3111, 7
    %v3113 = vsub.s32 3, %v3112
    %v3114 = vrot.slane %v2935, %v3113
    %v3115 = vlaneseq
    %v3116 = vshrl.u32 %v3115, 7
    %v3117 = vsub.s32 0, %v3116
    %v3118 = vrot.slane %v2937, %v3117
    %v3119 = vlaneseq
    %v3120 = vshrl.u32 %v3119, 7
    %v3121 = vsub.s32 1, %v3120
    %v3122 = vrot.slane %v2937, %v3121
    %v3123 = vlaneseq
    %v3124 = vshrl.u32 %v3123, 7
    %v3125 = vsub.s32 2, %v3124
    %v3126 = vrot.slane %v2937, %v3125
    %v3127 = vlaneseq
    %v3128 = vshrl.u32 %v3127, 7
    %v3129 = vsub.s32 3, %v3128
    %v3130 = vrot.slane %v2937, %v3129
    %v3131 = vlaneseq
    %v3132 = vshrl.u32 %v3131, 7
    %v3133 = vsub.s32 0, %v3132
    %v3134 = vrot.slane %v2920, %v3133
    %v3135 = vlaneseq
    %v3136 = vshrl.u32 %v3135, 7
    %v3137 = vsub.s32 1, %v3136
    %v3138 = vrot.slane %v2920, %v3137
    %v3139 = vlaneseq
    %v3140 = vshrl.u32 %v3139, 7
    %v3141 = vsub.s32 2, %v3140
    %v3142 = vrot.slane %v2920, %v3141
    %v3143 = vlaneseq
    %v3144 = vshrl.u32 %v3143, 7
    %v3145 = vsub.s32 3, %v3144
    %v3146 = vrot.slane %v2920, %v3145
    %v3147 = vlaneseq
    %v3148 = vshrl.u32 %v3147, 7
    %v3149 = vsub.s32 0, %v3148
    %v3150 = vrot.slane %v2934, %v3149
    %v3151 = vlaneseq
    %v3152 = vshrl.u32 %v3151, 7
    %v3153 = vsub.s32 1, %v3152
    %v3154 = vrot.slane %v2934, %v3153
    %v3155 = vlaneseq
    %v3156 = vshrl.u32 %v3155, 7
    %v3157 = vsub.s32 2, %v3156
    %v3158 = vrot.slane %v2934, %v3157
    %v3159 = vlaneseq
    %v3160 = vshrl.u32 %v3159, 7
    %v3161 = vsub.s32 3, %v3160
    %v3162 = vrot.slane %v2934, %v3161
    %v3163 = vlaneseq
    %v3164 = vshrl.u32 %v3163, 7
    %v3165 = vsub.s32 0, %v3164
    %v3166 = vrot.slane %v2936, %v3165
    %v3167 = vlaneseq
    %v3168 = vshrl.u32 %v3167, 7
    %v3169 = vsub.s32 1, %v3168
    %v3170 = vrot.slane %v2936, %v3169
    %v3171 = vlaneseq
    %v3172 = vshrl.u32 %v3171, 7
    %v3173 = vsub.s32 2, %v3172
    %v3174 = vrot.slane %v2936, %v3173
    %v3175 = vlaneseq
    %v3176 = vshrl.u32 %v3175, 7
    %v3177 = vsub.s32 3, %v3176
    %v3178 = vrot.slane %v2936, %v3177
    %v3179 = vlaneseq
    %v3180 = vshrl.u32 %v3179, 7
    %v3181 = vsub.s32 0, %v3180
    %v3182 = vrot.slane %v2938, %v3181
    %v3183 = vlaneseq
    %v3184 = vshrl.u32 %v3183, 7
    %v3185 = vsub.s32 1, %v3184
    %v3186 = vrot.slane %v2938, %v3185
    %v3187 = vlaneseq
    %v3188 = vshrl.u32 %v3187, 7
    %v3189 = vsub.s32 2, %v3188
    %v3190 = vrot.slane %v2938, %v3189
    %v3191 = vlaneseq
    %v3192 = vshrl.u32 %v3191, 7
    %v3193 = vsub.s32 3, %v3192
    %v3194 = vrot.slane %v2938, %v3193
    %v3259 = vadd.f32 %v1839, %v2942
    %v3260 = vadd.f32 %v1841, %v2946
    %v3261 = vadd.f32 %v2032, %v2950
    %v3262 = vadd.f32 %v2034, %v2954
    %v3263 = vadd.f32 %v1843, %v2942
    %v3264 = vadd.f32 %v1845, %v2946
    %v3265 = vadd.f32 %v2036, %v2950
    %v3266 = vadd.f32 %v2038, %v2954
    %v3267 = vadd.f32 %v1849, %v2958
    %v3268 = vadd.f32 %v1851, %v2962
    %v3269 = vadd.f32 %v2042, %v2966
    %v3270 = vadd.f32 %v2044, %v2970
    %v3271 = vadd.f32 %v1853, %v2958
    %v3272 = vadd.f32 %v1855, %v2962
    %v3273 = vadd.f32 %v2046, %v2966
    %v3274 = vadd.f32 %v2048, %v2970
    %v3275 = vadd.f32 %v1859, %v2974
    %v3276 = vadd.f32 %v1861, %v2978
    %v3277 = vadd.f32 %v2052, %v2982
    %v3278 = vadd.f32 %v2054, %v2986
    %v3279 = vadd.f32 %v1863, %v2974
    %v3280 = vadd.f32 %v1865, %v2978
    %v3281 = vadd.f32 %v2056, %v2982
    %v3282 = vadd.f32 %v2058, %v2986
    %v3283 = vadd.f32 %v1869, %v2990
    %v3284 = vadd.f32 %v1871, %v2994
    %v3285 = vadd.f32 %v2062, %v2998
    %v3286 = vadd.f32 %v2064, %v3002
    %v3287 = vadd.f32 %v1873, %v2990
    %v3288 = vadd.f32 %v1875, %v2994
    %v3289 = vadd.f32 %v2066, %v2998
    %v3290 = vadd.f32 %v2068, %v3002
    %v3291 = vadd.f32 %v1879, %v3006
    %v3292 = vadd.f32 %v1881, %v3010
    %v3293 = vadd.f32 %v2072, %v3014
    %v3294 = vadd.f32 %v2074, %v3018
    %v3295 = vadd.f32 %v1883, %v3006
    %v3296 = vadd.f32 %v1885, %v3010
    %v3297 = vadd.f32 %v2076, %v3014
    %v3298 = vadd.f32 %v2078, %v3018
    %v3299 = vadd.f32 %v1889, %v3022
    %v3300 = vadd.f32 %v1891, %v3026
    %v3301 = vadd.f32 %v2082, %v3030
    %v3302 = vadd.f32 %v2084, %v3034
    %v3303 = vadd.f32 %v1893, %v3022
    %v3304 = vadd.f32 %v1895, %v3026
    %v3305 = vadd.f32 %v2086, %v3030
    %v3306 = vadd.f32 %v2088, %v3034
    %v3307 = vadd.f32 %v1899, %v3038
    %v3308 = vadd.f32 %v1901, %v3042
    %v3309 = vadd.f32 %v2092, %v3046
    %v3310 = vadd.f32 %v2094, %v3050
    %v3311 = vadd.f32 %v1903, %v3038
    %v3312 = vadd.f32 %v1905, %v3042
    %v3313 = vadd.f32 %v2096, %v3046
    %v3314 = vadd.f32 %v2098, %v3050
    %v3315 = vadd.f32 %v1909, %v3054
    %v3316 = vadd.f32 %v1911, %v3058
    %v3317 = vadd.f32 %v2102, %v3062
    %v3318 = vadd.f32 %v2104, %v3066
    %v3319 = vadd.f32 %v1913, %v3054
    %v3320 = vadd.f32 %v1915, %v3058
    %v3321 = vadd.f32 %v2106, %v3062
    %v3322 = vadd.f32 %v2108, %v3066
    %v3323 = vadd.f32 %v1919, %v3070
    %v3324 = vadd.f32 %v1921, %v3074
    %v3325 = vadd.f32 %v2112, %v3078
    %v3326 = vadd.f32 %v2114, %v3082
    %v3327 = vadd.f32 %v1923, %v3070
    %v3328 = vadd.f32 %v1925, %v3074
    %v3329 = vadd.f32 %v2116, %v3078
    %v3330 = vadd.f32 %v2118, %v3082
    %v3331 = vadd.f32 %v1929, %v3086
    %v3332 = vadd.f32 %v1931, %v3090
    %v3333 = vadd.f32 %v2122, %v3094
    %v3334 = vadd.f32 %v2124, %v3098
    %v3335 = vadd.f32 %v1933, %v3086
    %v3336 = vadd.f32 %v1935, %v3090
    %v3337 = vadd.f32 %v2126, %v3094
    %v3338 = vadd.f32 %v2128, %v3098
    %v3339 = vadd.f32 %v1939, %v3102
    %v3340 = vadd.f32 %v1941, %v3106
    %v3341 = vadd.f32 %v2132, %v3110
    %v3342 = vadd.f32 %v2134, %v3114
    %v3343 = vadd.f32 %v1943, %v3102
    %v3344 = vadd.f32 %v1945, %v3106
    %v3345 = vadd.f32 %v2136, %v3110
    %v3346 = vadd.f32 %v2138, %v3114
    %v3347 = vadd.f32 %v1949, %v3118
    %v3348 = vadd.f32 %v1951, %v3122
    %v3349 = vadd.f32 %v2142, %v3126
    %v3350 = vadd.f32 %v2144, %v3130
    %v3351 = vadd.f32 %v1953, %v3118
    %v3352 = vadd.f32 %v1955, %v3122
    %v3353 = vadd.f32 %v2146, %v3126
    %v3354 = vadd.f32 %v2148, %v3130
    %v3355 = vadd.f32 %v1959, %v3134
    %v3356 = vadd.f32 %v1961, %v3138
    %v3357 = vadd.f32 %v2152, %v3142
    %v3358 = vadd.f32 %v2154, %v3146
    %v3359 = vadd.f32 %v1963, %v3134
    %v3360 = vadd.f32 %v1965, %v3138
    %v3361 = vadd.f32 %v2156, %v3142
    %v3362 = vadd.f32 %v2158, %v3146
    %v3363 = vadd.f32 %v1969, %v3150
    %v3364 = vadd.f32 %v1971, %v3154
    %v3365 = vadd.f32 %v2162, %v3158
    %v3366 = vadd.f32 %v2164, %v3162
    %v3367 = vadd.f32 %v1973, %v3150
    %v3368 = vadd.f32 %v1975, %v3154
    %v3369 = vadd.f32 %v2166, %v3158
    %v3370 = vadd.f32 %v2168, %v3162
    %v3371 = vadd.f32 %v1979, %v3166
    %v3372 = vadd.f32 %v1981, %v3170
    %v3373 = vadd.f32 %v2172, %v3174
    %v3374 = vadd.f32 %v2174, %v3178
    %v3375 = vadd.f32 %v1983, %v3166
    %v3376 = vadd.f32 %v1985, %v3170
    %v3377 = vadd.f32 %v2176, %v3174
    %v3378 = vadd.f32 %v2178, %v3178
    %v3379 = vadd.f32 %v1989, %v3182
    %v3380 = vadd.f32 %v1991, %v3186
    %v3381 = vadd.f32 %v2182, %v3190
    %v3382 = vadd.f32 %v2184, %v3194
    %v3383 = vadd.f32 %v1993, %v3182
    %v3384 = vadd.f32 %v1995, %v3186
    %v3385 = vadd.f32 %v2186, %v3190
    %v3386 = vadd.f32 %v2188, %v3194
    %v3387 = vld [vmem:[%s9] sm:$0xf]
    %v3389 = vlaneseq
    %v3390 = vshrl.u32 %v3389, 7
    %v3391 = vsub.s32 0, %v3390
    %v3392 = vrot.slane %v3387, %v3391
    %v3393 = vlaneseq
    %v3394 = vshrl.u32 %v3393, 7
    %v3395 = vsub.s32 1, %v3394
    %v3396 = vrot.slane %v3387, %v3395
    %v3397 = vlaneseq
    %v3398 = vshrl.u32 %v3397, 7
    %v3399 = vsub.s32 2, %v3398
    %v3400 = vrot.slane %v3387, %v3399
    %v3401 = vlaneseq
    %v3402 = vshrl.u32 %v3401, 7
    %v3403 = vsub.s32 3, %v3402
    %v3404 = vrot.slane %v3387, %v3403
    %v3409 = vadd.f32 %v3259, %v3392
    %v3410 = vadd.f32 %v3260, %v3396
    %v3411 = vadd.f32 %v3261, %v3400
    %v3412 = vadd.f32 %v3262, %v3404
    %v3413 = vadd.f32 %v3263, %v3392
    %v3414 = vadd.f32 %v3264, %v3396
    %v3415 = vadd.f32 %v3265, %v3400
    %v3416 = vadd.f32 %v3266, %v3404
    %v3417 = vadd.f32 %v3267, %v3392
    %v3418 = vadd.f32 %v3268, %v3396
    %v3419 = vadd.f32 %v3269, %v3400
    %v3420 = vadd.f32 %v3270, %v3404
    %v3421 = vadd.f32 %v3271, %v3392
    %v3422 = vadd.f32 %v3272, %v3396
    %v3423 = vadd.f32 %v3273, %v3400
    %v3424 = vadd.f32 %v3274, %v3404
    %v3425 = vadd.f32 %v3275, %v3392
    %v3426 = vadd.f32 %v3276, %v3396
    %v3427 = vadd.f32 %v3277, %v3400
    %v3428 = vadd.f32 %v3278, %v3404
    %v3429 = vadd.f32 %v3279, %v3392
    %v3430 = vadd.f32 %v3280, %v3396
    %v3431 = vadd.f32 %v3281, %v3400
    %v3432 = vadd.f32 %v3282, %v3404
    %v3433 = vadd.f32 %v3283, %v3392
    %v3434 = vadd.f32 %v3284, %v3396
    %v3435 = vadd.f32 %v3285, %v3400
    %v3436 = vadd.f32 %v3286, %v3404
    %v3437 = vadd.f32 %v3287, %v3392
    %v3438 = vadd.f32 %v3288, %v3396
    %v3439 = vadd.f32 %v3289, %v3400
    %v3440 = vadd.f32 %v3290, %v3404
    %v3441 = vadd.f32 %v3291, %v3392
    %v3442 = vadd.f32 %v3292, %v3396
    %v3443 = vadd.f32 %v3293, %v3400
    %v3444 = vadd.f32 %v3294, %v3404
    %v3445 = vadd.f32 %v3295, %v3392
    %v3446 = vadd.f32 %v3296, %v3396
    %v3447 = vadd.f32 %v3297, %v3400
    %v3448 = vadd.f32 %v3298, %v3404
    %v3449 = vadd.f32 %v3299, %v3392
    %v3450 = vadd.f32 %v3300, %v3396
    %v3451 = vadd.f32 %v3301, %v3400
    %v3452 = vadd.f32 %v3302, %v3404
    %v3453 = vadd.f32 %v3303, %v3392
    %v3454 = vadd.f32 %v3304, %v3396
    %v3455 = vadd.f32 %v3305, %v3400
    %v3456 = vadd.f32 %v3306, %v3404
    %v3457 = vadd.f32 %v3307, %v3392
    %v3458 = vadd.f32 %v3308, %v3396
    %v3459 = vadd.f32 %v3309, %v3400
    %v3460 = vadd.f32 %v3310, %v3404
    %v3461 = vadd.f32 %v3311, %v3392
    %v3462 = vadd.f32 %v3312, %v3396
    %v3463 = vadd.f32 %v3313, %v3400
    %v3464 = vadd.f32 %v3314, %v3404
    %v3465 = vadd.f32 %v3315, %v3392
    %v3466 = vadd.f32 %v3316, %v3396
    %v3467 = vadd.f32 %v3317, %v3400
    %v3468 = vadd.f32 %v3318, %v3404
    %v3469 = vadd.f32 %v3319, %v3392
    %v3470 = vadd.f32 %v3320, %v3396
    %v3471 = vadd.f32 %v3321, %v3400
    %v3472 = vadd.f32 %v3322, %v3404
    %v3473 = vadd.f32 %v3323, %v3392
    %v3474 = vadd.f32 %v3324, %v3396
    %v3475 = vadd.f32 %v3325, %v3400
    %v3476 = vadd.f32 %v3326, %v3404
    %v3477 = vadd.f32 %v3327, %v3392
    %v3478 = vadd.f32 %v3328, %v3396
    %v3479 = vadd.f32 %v3329, %v3400
    %v3480 = vadd.f32 %v3330, %v3404
    %v3481 = vadd.f32 %v3331, %v3392
    %v3482 = vadd.f32 %v3332, %v3396
    %v3483 = vadd.f32 %v3333, %v3400
    %v3484 = vadd.f32 %v3334, %v3404
    %v3485 = vadd.f32 %v3335, %v3392
    %v3486 = vadd.f32 %v3336, %v3396
    %v3487 = vadd.f32 %v3337, %v3400
    %v3488 = vadd.f32 %v3338, %v3404
    %v3489 = vadd.f32 %v3339, %v3392
    %v3490 = vadd.f32 %v3340, %v3396
    %v3491 = vadd.f32 %v3341, %v3400
    %v3492 = vadd.f32 %v3342, %v3404
    %v3493 = vadd.f32 %v3343, %v3392
    %v3494 = vadd.f32 %v3344, %v3396
    %v3495 = vadd.f32 %v3345, %v3400
    %v3496 = vadd.f32 %v3346, %v3404
    %v3497 = vadd.f32 %v3347, %v3392
    %v3498 = vadd.f32 %v3348, %v3396
    %v3499 = vadd.f32 %v3349, %v3400
    %v3500 = vadd.f32 %v3350, %v3404
    %v3501 = vadd.f32 %v3351, %v3392
    %v3502 = vadd.f32 %v3352, %v3396
    %v3503 = vadd.f32 %v3353, %v3400
    %v3504 = vadd.f32 %v3354, %v3404
    %v3505 = vadd.f32 %v3355, %v3392
    %v3506 = vadd.f32 %v3356, %v3396
    %v3507 = vadd.f32 %v3357, %v3400
    %v3508 = vadd.f32 %v3358, %v3404
    %v3509 = vadd.f32 %v3359, %v3392
    %v3510 = vadd.f32 %v3360, %v3396
    %v3511 = vadd.f32 %v3361, %v3400
    %v3512 = vadd.f32 %v3362, %v3404
    %v3513 = vadd.f32 %v3363, %v3392
    %v3514 = vadd.f32 %v3364, %v3396
    %v3515 = vadd.f32 %v3365, %v3400
    %v3516 = vadd.f32 %v3366, %v3404
    %v3517 = vadd.f32 %v3367, %v3392
    %v3518 = vadd.f32 %v3368, %v3396
    %v3519 = vadd.f32 %v3369, %v3400
    %v3520 = vadd.f32 %v3370, %v3404
    %v3521 = vadd.f32 %v3371, %v3392
    %v3522 = vadd.f32 %v3372, %v3396
    %v3523 = vadd.f32 %v3373, %v3400
    %v3524 = vadd.f32 %v3374, %v3404
    %v3525 = vadd.f32 %v3375, %v3392
    %v3526 = vadd.f32 %v3376, %v3396
    %v3527 = vadd.f32 %v3377, %v3400
    %v3528 = vadd.f32 %v3378, %v3404
    %v3529 = vadd.f32 %v3379, %v3392
    %v3530 = vadd.f32 %v3380, %v3396
    %v3531 = vadd.f32 %v3381, %v3400
    %v3532 = vadd.f32 %v3382, %v3404
    %v3533 = vadd.f32 %v3383, %v3392
    %v3534 = vadd.f32 %v3384, %v3396
    %v3535 = vadd.f32 %v3385, %v3400
    %v3536 = vadd.f32 %v3386, %v3404
    %v3537 = vld [vmem:[%s10] sm:$0xf]
    %v3539 = vlaneseq
    %v3540 = vshrl.u32 %v3539, 7
    %v3541 = vsub.s32 0, %v3540
    %v3542 = vrot.slane %v3537, %v3541
    %v3543 = vlaneseq
    %v3544 = vshrl.u32 %v3543, 7
    %v3545 = vsub.s32 1, %v3544
    %v3546 = vrot.slane %v3537, %v3545
    %v3547 = vlaneseq
    %v3548 = vshrl.u32 %v3547, 7
    %v3549 = vsub.s32 2, %v3548
    %v3550 = vrot.slane %v3537, %v3549
    %v3551 = vlaneseq
    %v3552 = vshrl.u32 %v3551, 7
    %v3553 = vsub.s32 3, %v3552
    %v3554 = vrot.slane %v3537, %v3553
    %v3559 = vmul.f32 %v3409, %v3542
    %v3560 = vmul.f32 %v3410, %v3546
    %v3561 = vmul.f32 %v3411, %v3550
    %v3562 = vmul.f32 %v3412, %v3554
    %v3563 = vmul.f32 %v3413, %v3542
    %v3564 = vmul.f32 %v3414, %v3546
    %v3565 = vmul.f32 %v3415, %v3550
    %v3566 = vmul.f32 %v3416, %v3554
    %v3567 = vmul.f32 %v3417, %v3542
    %v3568 = vmul.f32 %v3418, %v3546
    %v3569 = vmul.f32 %v3419, %v3550
    %v3570 = vmul.f32 %v3420, %v3554
    %v3571 = vmul.f32 %v3421, %v3542
    %v3572 = vmul.f32 %v3422, %v3546
    %v3573 = vmul.f32 %v3423, %v3550
    %v3574 = vmul.f32 %v3424, %v3554
    %v3575 = vmul.f32 %v3425, %v3542
    %v3576 = vmul.f32 %v3426, %v3546
    %v3577 = vmul.f32 %v3427, %v3550
    %v3578 = vmul.f32 %v3428, %v3554
    %v3579 = vmul.f32 %v3429, %v3542
    %v3580 = vmul.f32 %v3430, %v3546
    %v3581 = vmul.f32 %v3431, %v3550
    %v3582 = vmul.f32 %v3432, %v3554
    %v3583 = vmul.f32 %v3433, %v3542
    %v3584 = vmul.f32 %v3434, %v3546
    %v3585 = vmul.f32 %v3435, %v3550
    %v3586 = vmul.f32 %v3436, %v3554
    %v3587 = vmul.f32 %v3437, %v3542
    %v3588 = vmul.f32 %v3438, %v3546
    %v3589 = vmul.f32 %v3439, %v3550
    %v3590 = vmul.f32 %v3440, %v3554
    %v3591 = vmul.f32 %v3441, %v3542
    %v3592 = vmul.f32 %v3442, %v3546
    %v3593 = vmul.f32 %v3443, %v3550
    %v3594 = vmul.f32 %v3444, %v3554
    %v3595 = vmul.f32 %v3445, %v3542
    %v3596 = vmul.f32 %v3446, %v3546
    %v3597 = vmul.f32 %v3447, %v3550
    %v3598 = vmul.f32 %v3448, %v3554
    %v3599 = vmul.f32 %v3449, %v3542
    %v3600 = vmul.f32 %v3450, %v3546
    %v3601 = vmul.f32 %v3451, %v3550
    %v3602 = vmul.f32 %v3452, %v3554
    %v3603 = vmul.f32 %v3453, %v3542
    %v3604 = vmul.f32 %v3454, %v3546
    %v3605 = vmul.f32 %v3455, %v3550
    %v3606 = vmul.f32 %v3456, %v3554
    %v3607 = vmul.f32 %v3457, %v3542
    %v3608 = vmul.f32 %v3458, %v3546
    %v3609 = vmul.f32 %v3459, %v3550
    %v3610 = vmul.f32 %v3460, %v3554
    %v3611 = vmul.f32 %v3461, %v3542
    %v3612 = vmul.f32 %v3462, %v3546
    %v3613 = vmul.f32 %v3463, %v3550
    %v3614 = vmul.f32 %v3464, %v3554
    %v3615 = vmul.f32 %v3465, %v3542
    %v3616 = vmul.f32 %v3466, %v3546
    %v3617 = vmul.f32 %v3467, %v3550
    %v3618 = vmul.f32 %v3468, %v3554
    %v3619 = vmul.f32 %v3469, %v3542
    %v3620 = vmul.f32 %v3470, %v3546
    %v3621 = vmul.f32 %v3471, %v3550
    %v3622 = vmul.f32 %v3472, %v3554
    %v3623 = vmul.f32 %v3473, %v3542
    %v3624 = vmul.f32 %v3474, %v3546
    %v3625 = vmul.f32 %v3475, %v3550
    %v3626 = vmul.f32 %v3476, %v3554
    %v3627 = vmul.f32 %v3477, %v3542
    %v3628 = vmul.f32 %v3478, %v3546
    %v3629 = vmul.f32 %v3479, %v3550
    %v3630 = vmul.f32 %v3480, %v3554
    %v3631 = vmul.f32 %v3481, %v3542
    %v3632 = vmul.f32 %v3482, %v3546
    %v3633 = vmul.f32 %v3483, %v3550
    %v3634 = vmul.f32 %v3484, %v3554
    %v3635 = vmul.f32 %v3485, %v3542
    %v3636 = vmul.f32 %v3486, %v3546
    %v3637 = vmul.f32 %v3487, %v3550
    %v3638 = vmul.f32 %v3488, %v3554
    %v3639 = vmul.f32 %v3489, %v3542
    %v3640 = vmul.f32 %v3490, %v3546
    %v3641 = vmul.f32 %v3491, %v3550
    %v3642 = vmul.f32 %v3492, %v3554
    %v3643 = vmul.f32 %v3493, %v3542
    %v3644 = vmul.f32 %v3494, %v3546
    %v3645 = vmul.f32 %v3495, %v3550
    %v3646 = vmul.f32 %v3496, %v3554
    %v3647 = vmul.f32 %v3497, %v3542
    %v3648 = vmul.f32 %v3498, %v3546
    %v3649 = vmul.f32 %v3499, %v3550
    %v3650 = vmul.f32 %v3500, %v3554
    %v3651 = vmul.f32 %v3501, %v3542
    %v3652 = vmul.f32 %v3502, %v3546
    %v3653 = vmul.f32 %v3503, %v3550
    %v3654 = vmul.f32 %v3504, %v3554
    %v3655 = vmul.f32 %v3505, %v3542
    %v3656 = vmul.f32 %v3506, %v3546
    %v3657 = vmul.f32 %v3507, %v3550
    %v3658 = vmul.f32 %v3508, %v3554
    %v3659 = vmul.f32 %v3509, %v3542
    %v3660 = vmul.f32 %v3510, %v3546
    %v3661 = vmul.f32 %v3511, %v3550
    %v3662 = vmul.f32 %v3512, %v3554
    %v3663 = vmul.f32 %v3513, %v3542
    %v3664 = vmul.f32 %v3514, %v3546
    %v3665 = vmul.f32 %v3515, %v3550
    %v3666 = vmul.f32 %v3516, %v3554
    %v3667 = vmul.f32 %v3517, %v3542
    %v3668 = vmul.f32 %v3518, %v3546
    %v3669 = vmul.f32 %v3519, %v3550
    %v3670 = vmul.f32 %v3520, %v3554
    %v3671 = vmul.f32 %v3521, %v3542
    %v3672 = vmul.f32 %v3522, %v3546
    %v3673 = vmul.f32 %v3523, %v3550
    %v3674 = vmul.f32 %v3524, %v3554
    %v3675 = vmul.f32 %v3525, %v3542
    %v3676 = vmul.f32 %v3526, %v3546
    %v3677 = vmul.f32 %v3527, %v3550
    %v3678 = vmul.f32 %v3528, %v3554
    %v3679 = vmul.f32 %v3529, %v3542
    %v3680 = vmul.f32 %v3530, %v3546
    %v3681 = vmul.f32 %v3531, %v3550
    %v3682 = vmul.f32 %v3532, %v3554
    %v3683 = vmul.f32 %v3533, %v3542
    %v3684 = vmul.f32 %v3534, %v3546
    %v3685 = vmul.f32 %v3535, %v3550
    %v3686 = vmul.f32 %v3536, %v3554
    %v3687 = vld [vmem:[%s11] sm:$0xf]
    %v3689 = vlaneseq
    %v3690 = vshrl.u32 %v3689, 7
    %v3691 = vsub.s32 0, %v3690
    %v3692 = vrot.slane %v3687, %v3691
    %v3693 = vlaneseq
    %v3694 = vshrl.u32 %v3693, 7
    %v3695 = vsub.s32 1, %v3694
    %v3696 = vrot.slane %v3687, %v3695
    %v3697 = vlaneseq
    %v3698 = vshrl.u32 %v3697, 7
    %v3699 = vsub.s32 2, %v3698
    %v3700 = vrot.slane %v3687, %v3699
    %v3701 = vlaneseq
    %v3702 = vshrl.u32 %v3701, 7
    %v3703 = vsub.s32 3, %v3702
    %v3704 = vrot.slane %v3687, %v3703
    %v3709 = vadd.f32 %v3559, %v3692
    %v3710 = vadd.f32 %v3560, %v3696
    %v3711 = vadd.f32 %v3561, %v3700
    %v3712 = vadd.f32 %v3562, %v3704
    %v3713 = vadd.f32 %v3563, %v3692
    %v3714 = vadd.f32 %v3564, %v3696
    %v3715 = vadd.f32 %v3565, %v3700
    %v3716 = vadd.f32 %v3566, %v3704
    %v3717 = vadd.f32 %v3567, %v3692
    %v3718 = vadd.f32 %v3568, %v3696
    %v3719 = vadd.f32 %v3569, %v3700
    %v3720 = vadd.f32 %v3570, %v3704
    %v3721 = vadd.f32 %v3571, %v3692
    %v3722 = vadd.f32 %v3572, %v3696
    %v3723 = vadd.f32 %v3573, %v3700
    %v3724 = vadd.f32 %v3574, %v3704
    %v3725 = vadd.f32 %v3575, %v3692
    %v3726 = vadd.f32 %v3576, %v3696
    %v3727 = vadd.f32 %v3577, %v3700
    %v3728 = vadd.f32 %v3578, %v3704
    %v3729 = vadd.f32 %v3579, %v3692
    %v3730 = vadd.f32 %v3580, %v3696
    %v3731 = vadd.f32 %v3581, %v3700
    %v3732 = vadd.f32 %v3582, %v3704
    %v3733 = vadd.f32 %v3583, %v3692
    %v3734 = vadd.f32 %v3584, %v3696
    %v3735 = vadd.f32 %v3585, %v3700
    %v3736 = vadd.f32 %v3586, %v3704
    %v3737 = vadd.f32 %v3587, %v3692
    %v3738 = vadd.f32 %v3588, %v3696
    %v3739 = vadd.f32 %v3589, %v3700
    %v3740 = vadd.f32 %v3590, %v3704
    %v3741 = vadd.f32 %v3591, %v3692
    %v3742 = vadd.f32 %v3592, %v3696
    %v3743 = vadd.f32 %v3593, %v3700
    %v3744 = vadd.f32 %v3594, %v3704
    %v3745 = vadd.f32 %v3595, %v3692
    %v3746 = vadd.f32 %v3596, %v3696
    %v3747 = vadd.f32 %v3597, %v3700
    %v3748 = vadd.f32 %v3598, %v3704
    %v3749 = vadd.f32 %v3599, %v3692
    %v3750 = vadd.f32 %v3600, %v3696
    %v3751 = vadd.f32 %v3601, %v3700
    %v3752 = vadd.f32 %v3602, %v3704
    %v3753 = vadd.f32 %v3603, %v3692
    %v3754 = vadd.f32 %v3604, %v3696
    %v3755 = vadd.f32 %v3605, %v3700
    %v3756 = vadd.f32 %v3606, %v3704
    %v3757 = vadd.f32 %v3607, %v3692
    %v3758 = vadd.f32 %v3608, %v3696
    %v3759 = vadd.f32 %v3609, %v3700
    %v3760 = vadd.f32 %v3610, %v3704
    %v3761 = vadd.f32 %v3611, %v3692
    %v3762 = vadd.f32 %v3612, %v3696
    %v3763 = vadd.f32 %v3613, %v3700
    %v3764 = vadd.f32 %v3614, %v3704
    %v3765 = vadd.f32 %v3615, %v3692
    %v3766 = vadd.f32 %v3616, %v3696
    %v3767 = vadd.f32 %v3617, %v3700
    %v3768 = vadd.f32 %v3618, %v3704
    %v3769 = vadd.f32 %v3619, %v3692
    %v3770 = vadd.f32 %v3620, %v3696
    %v3771 = vadd.f32 %v3621, %v3700
    %v3772 = vadd.f32 %v3622, %v3704
    %v3773 = vadd.f32 %v3623, %v3692
    %v3774 = vadd.f32 %v3624, %v3696
    %v3775 = vadd.f32 %v3625, %v3700
    %v3776 = vadd.f32 %v3626, %v3704
    %v3777 = vadd.f32 %v3627, %v3692
    %v3778 = vadd.f32 %v3628, %v3696
    %v3779 = vadd.f32 %v3629, %v3700
    %v3780 = vadd.f32 %v3630, %v3704
    %v3781 = vadd.f32 %v3631, %v3692
    %v3782 = vadd.f32 %v3632, %v3696
    %v3783 = vadd.f32 %v3633, %v3700
    %v3784 = vadd.f32 %v3634, %v3704
    %v3785 = vadd.f32 %v3635, %v3692
    %v3786 = vadd.f32 %v3636, %v3696
    %v3787 = vadd.f32 %v3637, %v3700
    %v3788 = vadd.f32 %v3638, %v3704
    %v3789 = vadd.f32 %v3639, %v3692
    %v3790 = vadd.f32 %v3640, %v3696
    %v3791 = vadd.f32 %v3641, %v3700
    %v3792 = vadd.f32 %v3642, %v3704
    %v3793 = vadd.f32 %v3643, %v3692
    %v3794 = vadd.f32 %v3644, %v3696
    %v3795 = vadd.f32 %v3645, %v3700
    %v3796 = vadd.f32 %v3646, %v3704
    %v3797 = vadd.f32 %v3647, %v3692
    %v3798 = vadd.f32 %v3648, %v3696
    %v3799 = vadd.f32 %v3649, %v3700
    %v3800 = vadd.f32 %v3650, %v3704
    %v3801 = vadd.f32 %v3651, %v3692
    %v3802 = vadd.f32 %v3652, %v3696
    %v3803 = vadd.f32 %v3653, %v3700
    %v3804 = vadd.f32 %v3654, %v3704
    %v3805 = vadd.f32 %v3655, %v3692
    %v3806 = vadd.f32 %v3656, %v3696
    %v3807 = vadd.f32 %v3657, %v3700
    %v3808 = vadd.f32 %v3658, %v3704
    %v3809 = vadd.f32 %v3659, %v3692
    %v3810 = vadd.f32 %v3660, %v3696
    %v3811 = vadd.f32 %v3661, %v3700
    %v3812 = vadd.f32 %v3662, %v3704
    %v3813 = vadd.f32 %v3663, %v3692
    %v3814 = vadd.f32 %v3664, %v3696
    %v3815 = vadd.f32 %v3665, %v3700
    %v3816 = vadd.f32 %v3666, %v3704
    %v3817 = vadd.f32 %v3667, %v3692
    %v3818 = vadd.f32 %v3668, %v3696
    %v3819 = vadd.f32 %v3669, %v3700
    %v3820 = vadd.f32 %v3670, %v3704
    %v3821 = vadd.f32 %v3671, %v3692
    %v3822 = vadd.f32 %v3672, %v3696
    %v3823 = vadd.f32 %v3673, %v3700
    %v3824 = vadd.f32 %v3674, %v3704
    %v3825 = vadd.f32 %v3675, %v3692
    %v3826 = vadd.f32 %v3676, %v3696
    %v3827 = vadd.f32 %v3677, %v3700
    %v3828 = vadd.f32 %v3678, %v3704
    %v3829 = vadd.f32 %v3679, %v3692
    %v3830 = vadd.f32 %v3680, %v3696
    %v3831 = vadd.f32 %v3681, %v3700
    %v3832 = vadd.f32 %v3682, %v3704
    %v3833 = vadd.f32 %v3683, %v3692
    %v3834 = vadd.f32 %v3684, %v3696
    %v3835 = vadd.f32 %v3685, %v3700
    %v3836 = vadd.f32 %v3686, %v3704
    %v3837 = vmax.f32 %v3709, 0.0
    %v3838 = vmax.f32 %v3710, 0.0
    %v3839 = vmax.f32 %v3711, 0.0
    %v3840 = vmax.f32 %v3712, 0.0
    %v3841 = vmax.f32 %v3713, 0.0
    %v3842 = vmax.f32 %v3714, 0.0
    %v3843 = vmax.f32 %v3715, 0.0
    %v3844 = vmax.f32 %v3716, 0.0
    %v3845 = vmax.f32 %v3717, 0.0
    %v3846 = vmax.f32 %v3718, 0.0
    %v3847 = vmax.f32 %v3719, 0.0
    %v3848 = vmax.f32 %v3720, 0.0
    %v3849 = vmax.f32 %v3721, 0.0
    %v3850 = vmax.f32 %v3722, 0.0
    %v3851 = vmax.f32 %v3723, 0.0
    %v3852 = vmax.f32 %v3724, 0.0
    %v3853 = vmax.f32 %v3725, 0.0
    %v3854 = vmax.f32 %v3726, 0.0
    %v3855 = vmax.f32 %v3727, 0.0
    %v3856 = vmax.f32 %v3728, 0.0
    %v3857 = vmax.f32 %v3729, 0.0
    %v3858 = vmax.f32 %v3730, 0.0
    %v3859 = vmax.f32 %v3731, 0.0
    %v3860 = vmax.f32 %v3732, 0.0
    %v3861 = vmax.f32 %v3733, 0.0
    %v3862 = vmax.f32 %v3734, 0.0
    %v3863 = vmax.f32 %v3735, 0.0
    %v3864 = vmax.f32 %v3736, 0.0
    %v3865 = vmax.f32 %v3737, 0.0
    %v3866 = vmax.f32 %v3738, 0.0
    %v3867 = vmax.f32 %v3739, 0.0
    %v3868 = vmax.f32 %v3740, 0.0
    %v3869 = vmax.f32 %v3741, 0.0
    %v3870 = vmax.f32 %v3742, 0.0
    %v3871 = vmax.f32 %v3743, 0.0
    %v3872 = vmax.f32 %v3744, 0.0
    %v3873 = vmax.f32 %v3745, 0.0
    %v3874 = vmax.f32 %v3746, 0.0
    %v3875 = vmax.f32 %v3747, 0.0
    %v3876 = vmax.f32 %v3748, 0.0
    %v3877 = vmax.f32 %v3749, 0.0
    %v3878 = vmax.f32 %v3750, 0.0
    %v3879 = vmax.f32 %v3751, 0.0
    %v3880 = vmax.f32 %v3752, 0.0
    %v3881 = vmax.f32 %v3753, 0.0
    %v3882 = vmax.f32 %v3754, 0.0
    %v3883 = vmax.f32 %v3755, 0.0
    %v3884 = vmax.f32 %v3756, 0.0
    %v3885 = vmax.f32 %v3757, 0.0
    %v3886 = vmax.f32 %v3758, 0.0
    %v3887 = vmax.f32 %v3759, 0.0
    %v3888 = vmax.f32 %v3760, 0.0
    %v3889 = vmax.f32 %v3761, 0.0
    %v3890 = vmax.f32 %v3762, 0.0
    %v3891 = vmax.f32 %v3763, 0.0
    %v3892 = vmax.f32 %v3764, 0.0
    %v3893 = vmax.f32 %v3765, 0.0
    %v3894 = vmax.f32 %v3766, 0.0
    %v3895 = vmax.f32 %v3767, 0.0
    %v3896 = vmax.f32 %v3768, 0.0
    %v3897 = vmax.f32 %v3769, 0.0
    %v3898 = vmax.f32 %v3770, 0.0
    %v3899 = vmax.f32 %v3771, 0.0
    %v3900 = vmax.f32 %v3772, 0.0
    %v3901 = vmax.f32 %v3773, 0.0
    %v3902 = vmax.f32 %v3774, 0.0
    %v3903 = vmax.f32 %v3775, 0.0
    %v3904 = vmax.f32 %v3776, 0.0
    %v3905 = vmax.f32 %v3777, 0.0
    %v3906 = vmax.f32 %v3778, 0.0
    %v3907 = vmax.f32 %v3779, 0.0
    %v3908 = vmax.f32 %v3780, 0.0
    %v3909 = vmax.f32 %v3781, 0.0
    %v3910 = vmax.f32 %v3782, 0.0
    %v3911 = vmax.f32 %v3783, 0.0
    %v3912 = vmax.f32 %v3784, 0.0
    %v3913 = vmax.f32 %v3785, 0.0
    %v3914 = vmax.f32 %v3786, 0.0
    %v3915 = vmax.f32 %v3787, 0.0
    %v3916 = vmax.f32 %v3788, 0.0
    %v3917 = vmax.f32 %v3789, 0.0
    %v3918 = vmax.f32 %v3790, 0.0
    %v3919 = vmax.f32 %v3791, 0.0
    %v3920 = vmax.f32 %v3792, 0.0
    %v3921 = vmax.f32 %v3793, 0.0
    %v3922 = vmax.f32 %v3794, 0.0
    %v3923 = vmax.f32 %v3795, 0.0
    %v3924 = vmax.f32 %v3796, 0.0
    %v3925 = vmax.f32 %v3797, 0.0
    %v3926 = vmax.f32 %v3798, 0.0
    %v3927 = vmax.f32 %v3799, 0.0
    %v3928 = vmax.f32 %v3800, 0.0
    %v3929 = vmax.f32 %v3801, 0.0
    %v3930 = vmax.f32 %v3802, 0.0
    %v3931 = vmax.f32 %v3803, 0.0
    %v3932 = vmax.f32 %v3804, 0.0
    %v3933 = vmax.f32 %v3805, 0.0
    %v3934 = vmax.f32 %v3806, 0.0
    %v3935 = vmax.f32 %v3807, 0.0
    %v3936 = vmax.f32 %v3808, 0.0
    %v3937 = vmax.f32 %v3809, 0.0
    %v3938 = vmax.f32 %v3810, 0.0
    %v3939 = vmax.f32 %v3811, 0.0
    %v3940 = vmax.f32 %v3812, 0.0
    %v3941 = vmax.f32 %v3813, 0.0
    %v3942 = vmax.f32 %v3814, 0.0
    %v3943 = vmax.f32 %v3815, 0.0
    %v3944 = vmax.f32 %v3816, 0.0
    %v3945 = vmax.f32 %v3817, 0.0
    %v3946 = vmax.f32 %v3818, 0.0
    %v3947 = vmax.f32 %v3819, 0.0
    %v3948 = vmax.f32 %v3820, 0.0
    %v3949 = vmax.f32 %v3821, 0.0
    %v3950 = vmax.f32 %v3822, 0.0
    %v3951 = vmax.f32 %v3823, 0.0
    %v3952 = vmax.f32 %v3824, 0.0
    %v3953 = vmax.f32 %v3825, 0.0
    %v3954 = vmax.f32 %v3826, 0.0
    %v3955 = vmax.f32 %v3827, 0.0
    %v3956 = vmax.f32 %v3828, 0.0
    %v3957 = vmax.f32 %v3829, 0.0
    %v3958 = vmax.f32 %v3830, 0.0
    %v3959 = vmax.f32 %v3831, 0.0
    %v3960 = vmax.f32 %v3832, 0.0
    %v3961 = vmax.f32 %v3833, 0.0
    %v3962 = vmax.f32 %v3834, 0.0
    %v3963 = vmax.f32 %v3835, 0.0
    %v3964 = vmax.f32 %v3836, 0.0
    %v3965 = vpack.c.bf16 %v3841, %v3837
    %v3966 = vpack.c.bf16 %v3842, %v3838
    %v3967 = vpack.c.bf16 %v3843, %v3839
    %v3968 = vpack.c.bf16 %v3844, %v3840
    %v3969 = vpack.c.bf16 %v3849, %v3845
    %v3970 = vpack.c.bf16 %v3850, %v3846
    %v3971 = vpack.c.bf16 %v3851, %v3847
    %v3972 = vpack.c.bf16 %v3852, %v3848
    %v3973 = vpack.c.bf16 %v3857, %v3853
    %v3974 = vpack.c.bf16 %v3858, %v3854
    %v3975 = vpack.c.bf16 %v3859, %v3855
    %v3976 = vpack.c.bf16 %v3860, %v3856
    %v3977 = vpack.c.bf16 %v3865, %v3861
    %v3978 = vpack.c.bf16 %v3866, %v3862
    %v3979 = vpack.c.bf16 %v3867, %v3863
    %v3980 = vpack.c.bf16 %v3868, %v3864
    %v3981 = vpack.c.bf16 %v3873, %v3869
    %v3982 = vpack.c.bf16 %v3874, %v3870
    %v3983 = vpack.c.bf16 %v3875, %v3871
    %v3984 = vpack.c.bf16 %v3876, %v3872
    %v3985 = vpack.c.bf16 %v3881, %v3877
    %v3986 = vpack.c.bf16 %v3882, %v3878
    %v3987 = vpack.c.bf16 %v3883, %v3879
    %v3988 = vpack.c.bf16 %v3884, %v3880
    %v3989 = vpack.c.bf16 %v3889, %v3885
    %v3990 = vpack.c.bf16 %v3890, %v3886
    %v3991 = vpack.c.bf16 %v3891, %v3887
    %v3992 = vpack.c.bf16 %v3892, %v3888
    %v3993 = vpack.c.bf16 %v3897, %v3893
    %v3994 = vpack.c.bf16 %v3898, %v3894
    %v3995 = vpack.c.bf16 %v3899, %v3895
    %v3996 = vpack.c.bf16 %v3900, %v3896
    %v3997 = vpack.c.bf16 %v3905, %v3901
    %v3998 = vpack.c.bf16 %v3906, %v3902
    %v3999 = vpack.c.bf16 %v3907, %v3903
    %v4000 = vpack.c.bf16 %v3908, %v3904
    %v4001 = vpack.c.bf16 %v3913, %v3909
    %v4002 = vpack.c.bf16 %v3914, %v3910
    %v4003 = vpack.c.bf16 %v3915, %v3911
    %v4004 = vpack.c.bf16 %v3916, %v3912
    %v4005 = vpack.c.bf16 %v3921, %v3917
    %v4006 = vpack.c.bf16 %v3922, %v3918
    %v4007 = vpack.c.bf16 %v3923, %v3919
    %v4008 = vpack.c.bf16 %v3924, %v3920
    %v4009 = vpack.c.bf16 %v3929, %v3925
    %v4010 = vpack.c.bf16 %v3930, %v3926
    %v4011 = vpack.c.bf16 %v3931, %v3927
    %v4012 = vpack.c.bf16 %v3932, %v3928
    %v4013 = vpack.c.bf16 %v3937, %v3933
    %v4014 = vpack.c.bf16 %v3938, %v3934
    %v4015 = vpack.c.bf16 %v3939, %v3935
    %v4016 = vpack.c.bf16 %v3940, %v3936
    %v4017 = vpack.c.bf16 %v3945, %v3941
    %v4018 = vpack.c.bf16 %v3946, %v3942
    %v4019 = vpack.c.bf16 %v3947, %v3943
    %v4020 = vpack.c.bf16 %v3948, %v3944
    %v4021 = vpack.c.bf16 %v3953, %v3949
    %v4022 = vpack.c.bf16 %v3954, %v3950
    %v4023 = vpack.c.bf16 %v3955, %v3951
    %v4024 = vpack.c.bf16 %v3956, %v3952
    %v4025 = vpack.c.bf16 %v3961, %v3957
    %v4026 = vpack.c.bf16 %v3962, %v3958
    %v4027 = vpack.c.bf16 %v3963, %v3959
    %v4028 = vpack.c.bf16 %v3964, %v3960
    %v4029 = vld [vmem:[%s12] sm:$0xf]
    %v4030 = vld [vmem:[%s12 + $0x4] sm:$0xf]
    %v4031 = vld [vmem:[%s12 + $0x8] sm:$0xf]
    %v4032 = vld [vmem:[%s12 + $0xc] sm:$0xf]
    %v4033 = vld [vmem:[%s12 + $0x10] sm:$0xf]
    %v4034 = vld [vmem:[%s12 + $0x14] sm:$0xf]
    %v4035 = vld [vmem:[%s12 + $0x18] sm:$0xf]
    %v4036 = vld [vmem:[%s12 + $0x1c] sm:$0xf]
    %v4037 = vld [vmem:[%s12 + $0x20] sm:$0xf]
    %v4038 = vld [vmem:[%s12 + $0x24] sm:$0xf]
    %v4039 = vld [vmem:[%s12 + $0x28] sm:$0xf]
    %v4040 = vld [vmem:[%s12 + $0x2c] sm:$0xf]
    %v4041 = vld [vmem:[%s12 + $0x30] sm:$0xf]
    %v4042 = vld [vmem:[%s12 + $0x34] sm:$0xf]
    %v4043 = vld [vmem:[%s12 + $0x38] sm:$0xf]
    %v4044 = vld [vmem:[%s12 + $0x3c] sm:$0xf]
    %v4045 = vld [vmem:[%s12 + $0x40] sm:$0xf]
    %v4046 = vld [vmem:[%s12 + $0x44] sm:$0xf]
    %v4047 = vld [vmem:[%s12 + $0x48] sm:$0xf]
    %v4048 = vld [vmem:[%s12 + $0x4c] sm:$0xf]
    %v4049 = vld [vmem:[%s12 + $0x50] sm:$0xf]
    %v4050 = vld [vmem:[%s12 + $0x54] sm:$0xf]
    %v4051 = vld [vmem:[%s12 + $0x58] sm:$0xf]
    %v4052 = vld [vmem:[%s12 + $0x5c] sm:$0xf]
    %v4053 = vld [vmem:[%s12 + $0x60] sm:$0xf]
    %v4054 = vld [vmem:[%s12 + $0x64] sm:$0xf]
    %v4055 = vld [vmem:[%s12 + $0x68] sm:$0xf]
    %v4056 = vld [vmem:[%s12 + $0x6c] sm:$0xf]
    %v4057 = vld [vmem:[%s12 + $0x70] sm:$0xf]
    %v4058 = vld [vmem:[%s12 + $0x74] sm:$0xf]
    %v4059 = vld [vmem:[%s12 + $0x78] sm:$0xf]
    %v4060 = vld [vmem:[%s12 + $0x7c] sm:$0xf]
    %v4061 = vld [vmem:[%s12 + $0x80] sm:$0xf]
    %v4062 = vld [vmem:[%s12 + $0x84] sm:$0xf]
    %v4063 = vld [vmem:[%s12 + $0x88] sm:$0xf]
    %v4064 = vld [vmem:[%s12 + $0x8c] sm:$0xf]
    %v4065 = vld [vmem:[%s12 + $0x90] sm:$0xf]
    %v4066 = vld [vmem:[%s12 + $0x94] sm:$0xf]
    %v4067 = vld [vmem:[%s12 + $0x98] sm:$0xf]
    %v4068 = vld [vmem:[%s12 + $0x9c] sm:$0xf]
    %v4069 = vld [vmem:[%s12 + $0xa0] sm:$0xf]
    %v4070 = vld [vmem:[%s12 + $0xa4] sm:$0xf]
    %v4071 = vld [vmem:[%s12 + $0xa8] sm:$0xf]
    %v4072 = vld [vmem:[%s12 + $0xac] sm:$0xf]
    %v4073 = vld [vmem:[%s12 + $0xb0] sm:$0xf]
    %v4074 = vld [vmem:[%s12 + $0xb4] sm:$0xf]
    %v4075 = vld [vmem:[%s12 + $0xb8] sm:$0xf]
    %v4076 = vld [vmem:[%s12 + $0xbc] sm:$0xf]
    %v4077 = vld [vmem:[%s12 + $0xc0] sm:$0xf]
    %v4078 = vld [vmem:[%s12 + $0xc4] sm:$0xf]
    %v4079 = vld [vmem:[%s12 + $0xc8] sm:$0xf]
    %v4080 = vld [vmem:[%s12 + $0xcc] sm:$0xf]
    %v4081 = vld [vmem:[%s12 + $0xd0] sm:$0xf]
    %v4082 = vld [vmem:[%s12 + $0xd4] sm:$0xf]
    %v4083 = vld [vmem:[%s12 + $0xd8] sm:$0xf]
    %v4084 = vld [vmem:[%s12 + $0xdc] sm:$0xf]
    %v4085 = vld [vmem:[%s12 + $0xe0] sm:$0xf]
    %v4086 = vld [vmem:[%s12 + $0xe4] sm:$0xf]
    %v4087 = vld [vmem:[%s12 + $0xe8] sm:$0xf]
    %v4088 = vld [vmem:[%s12 + $0xec] sm:$0xf]
    %v4089 = vld [vmem:[%s12 + $0xf0] sm:$0xf]
    %v4090 = vld [vmem:[%s12 + $0xf4] sm:$0xf]
    %v4091 = vld [vmem:[%s12 + $0xf8] sm:$0xf]
    %v4092 = vld [vmem:[%s12 + $0xfc] sm:$0xf]
    %v4093 = vld [vmem:[%s13] sm:$0x1]
    %v4095 = vlaneseq
    %v4096 = vshrl.u32 %v4095, 7
    %v4097 = vsub.s32 0, %v4096
    %v4098 = vrot.slane %v4093, %v4097
    %v4164 = vunpack.c.l.b16 %v4029
    %v4165 = vunpack.c.l.b16 %v4030
    %v4166 = vunpack.c.l.b16 %v4031
    %v4167 = vunpack.c.l.b16 %v4032
    %v4168 = vunpack.c.l.b16 %v4033
    %v4169 = vunpack.c.l.b16 %v4034
    %v4170 = vunpack.c.l.b16 %v4035
    %v4171 = vunpack.c.l.b16 %v4036
    %v4172 = vunpack.c.l.b16 %v4037
    %v4173 = vunpack.c.l.b16 %v4038
    %v4174 = vunpack.c.l.b16 %v4039
    %v4175 = vunpack.c.l.b16 %v4040
    %v4176 = vunpack.c.l.b16 %v4041
    %v4177 = vunpack.c.l.b16 %v4042
    %v4178 = vunpack.c.l.b16 %v4043
    %v4179 = vunpack.c.l.b16 %v4044
    %v4180 = vunpack.c.l.b16 %v4045
    %v4181 = vunpack.c.l.b16 %v4046
    %v4182 = vunpack.c.l.b16 %v4047
    %v4183 = vunpack.c.l.b16 %v4048
    %v4184 = vunpack.c.l.b16 %v4049
    %v4185 = vunpack.c.l.b16 %v4050
    %v4186 = vunpack.c.l.b16 %v4051
    %v4187 = vunpack.c.l.b16 %v4052
    %v4188 = vunpack.c.l.b16 %v4053
    %v4189 = vunpack.c.l.b16 %v4054
    %v4190 = vunpack.c.l.b16 %v4055
    %v4191 = vunpack.c.l.b16 %v4056
    %v4192 = vunpack.c.l.b16 %v4057
    %v4193 = vunpack.c.l.b16 %v4058
    %v4194 = vunpack.c.l.b16 %v4059
    %v4195 = vunpack.c.l.b16 %v4060
    %v4196 = vunpack.c.l.b16 %v4061
    %v4197 = vunpack.c.l.b16 %v4062
    %v4198 = vunpack.c.l.b16 %v4063
    %v4199 = vunpack.c.l.b16 %v4064
    %v4200 = vunpack.c.l.b16 %v4065
    %v4201 = vunpack.c.l.b16 %v4066
    %v4202 = vunpack.c.l.b16 %v4067
    %v4203 = vunpack.c.l.b16 %v4068
    %v4204 = vunpack.c.l.b16 %v4069
    %v4205 = vunpack.c.l.b16 %v4070
    %v4206 = vunpack.c.l.b16 %v4071
    %v4207 = vunpack.c.l.b16 %v4072
    %v4208 = vunpack.c.l.b16 %v4073
    %v4209 = vunpack.c.l.b16 %v4074
    %v4210 = vunpack.c.l.b16 %v4075
    %v4211 = vunpack.c.l.b16 %v4076
    %v4212 = vunpack.c.l.b16 %v4077
    %v4213 = vunpack.c.l.b16 %v4078
    %v4214 = vunpack.c.l.b16 %v4079
    %v4215 = vunpack.c.l.b16 %v4080
    %v4216 = vunpack.c.l.b16 %v4081
    %v4217 = vunpack.c.l.b16 %v4082
    %v4218 = vunpack.c.l.b16 %v4083
    %v4219 = vunpack.c.l.b16 %v4084
    %v4220 = vunpack.c.l.b16 %v4085
    %v4221 = vunpack.c.l.b16 %v4086
    %v4222 = vunpack.c.l.b16 %v4087
    %v4223 = vunpack.c.l.b16 %v4088
    %v4224 = vunpack.c.l.b16 %v4089
    %v4225 = vunpack.c.l.b16 %v4090
    %v4226 = vunpack.c.l.b16 %v4091
    %v4227 = vunpack.c.l.b16 %v4092
    %v4228 = vpack.c.b16 %v4165, %v4164
    %v4229 = vpack.c.b16 %v4167, %v4166
    %v4230 = vpack.c.b16 %v4169, %v4168
    %v4231 = vpack.c.b16 %v4171, %v4170
    %v4232 = vpack.c.b16 %v4173, %v4172
    %v4233 = vpack.c.b16 %v4175, %v4174
    %v4234 = vpack.c.b16 %v4177, %v4176
    %v4235 = vpack.c.b16 %v4179, %v4178
    %v4236 = vpack.c.b16 %v4181, %v4180
    %v4237 = vpack.c.b16 %v4183, %v4182
    %v4238 = vpack.c.b16 %v4185, %v4184
    %v4239 = vpack.c.b16 %v4187, %v4186
    %v4240 = vpack.c.b16 %v4189, %v4188
    %v4241 = vpack.c.b16 %v4191, %v4190
    %v4242 = vpack.c.b16 %v4193, %v4192
    %v4243 = vpack.c.b16 %v4195, %v4194
    %v4244 = vpack.c.b16 %v4197, %v4196
    %v4245 = vpack.c.b16 %v4199, %v4198
    %v4246 = vpack.c.b16 %v4201, %v4200
    %v4247 = vpack.c.b16 %v4203, %v4202
    %v4248 = vpack.c.b16 %v4205, %v4204
    %v4249 = vpack.c.b16 %v4207, %v4206
    %v4250 = vpack.c.b16 %v4209, %v4208
    %v4251 = vpack.c.b16 %v4211, %v4210
    %v4252 = vpack.c.b16 %v4213, %v4212
    %v4253 = vpack.c.b16 %v4215, %v4214
    %v4254 = vpack.c.b16 %v4217, %v4216
    %v4255 = vpack.c.b16 %v4219, %v4218
    %v4256 = vpack.c.b16 %v4221, %v4220
    %v4257 = vpack.c.b16 %v4223, %v4222
    %v4258 = vpack.c.b16 %v4225, %v4224
    %v4259 = vpack.c.b16 %v4227, %v4226
    %4292 = vmatprep.subr.bf16.mxu0 0
    %4293 = vmatpush1.bf16.msra.mxu0 %v4228
    %4294 = vmatprep.subr.bf16.mxu0 0
    %4295 = vmatpush1.bf16.msra.mxu0 %v4229
    %4296 = vmatprep.subr.bf16.mxu0 0
    %4297 = vmatpush1.bf16.msra.mxu0 %v4230
    %4298 = vmatprep.subr.bf16.mxu0 0
    %4299 = vmatpush1.bf16.msra.mxu0 %v4231
    %4300 = vmatprep.subr.bf16.mxu0 0
    %4301 = vmatpush1.bf16.msra.mxu0 %v4232
    %4302 = vmatprep.subr.bf16.mxu0 0
    %4303 = vmatpush1.bf16.msra.mxu0 %v4233
    %4304 = vmatprep.subr.bf16.mxu0 0
    %4305 = vmatpush1.bf16.msra.mxu0 %v4234
    %4306 = vmatprep.subr.bf16.mxu0 0
    %4307 = vmatpush1.bf16.msra.mxu0 %v4235
    %4308 = vmatprep.subr.bf16.mxu0 0
    %4309 = vmatpush1.bf16.msra.mxu0 %v4236
    %4310 = vmatprep.subr.bf16.mxu0 0
    %4311 = vmatpush1.bf16.msra.mxu0 %v4237
    %4312 = vmatprep.subr.bf16.mxu0 0
    %4313 = vmatpush1.bf16.msra.mxu0 %v4238
    %4314 = vmatprep.subr.bf16.mxu0 0
    %4315 = vmatpush1.bf16.msra.mxu0 %v4239
    %4316 = vmatprep.subr.bf16.mxu0 0
    %4317 = vmatpush1.bf16.msra.mxu0 %v4240
    %4318 = vmatprep.subr.bf16.mxu0 0
    %4319 = vmatpush1.bf16.msra.mxu0 %v4241
    %4320 = vmatprep.subr.bf16.mxu0 0
    %4321 = vmatpush1.bf16.msra.mxu0 %v4242
    %4322 = vmatprep.subr.bf16.mxu0 0
    %4323 = vmatpush1.bf16.msra.mxu0 %v4243
    %4324 = vmatprep.mubr.bf16.mxu0 %v3966
    %4325 = vmatmul.mubr.bf16.gmra.mrb[0].mxu0 %v3965
    %v4326 = vpop.f32.mrb[0].mxu0
    %v4327 = vadd.f32 %v4098, %v4326
    %v4328 = vpop.f32.mrb[0].mxu0
    %v4329 = vpop.f32.mrb[0].mxu0
    %v4330 = vadd.f32 %v4098, %v4329
    %v4331 = vpop.f32.mrb[0].mxu0
    %4332 = vmatprep.mubr.bf16.mxu0 %v3970
    %4333 = vmatmul.mubr.bf16.gmra.mrb[0].mxu0 %v3969
    %v4334 = vpop.f32.mrb[0].mxu0
    %v4335 = vadd.f32 %v4098, %v4334
    %v4336 = vpop.f32.mrb[0].mxu0
    %v4337 = vpop.f32.mrb[0].mxu0
    %v4338 = vadd.f32 %v4098, %v4337
    %v4339 = vpop.f32.mrb[0].mxu0
    %4340 = vmatprep.mubr.bf16.mxu0 %v3974
    %4341 = vmatmul.mubr.bf16.gmra.mrb[0].mxu0 %v3973
    %v4342 = vpop.f32.mrb[0].mxu0
    %v4343 = vadd.f32 %v4098, %v4342
    %v4344 = vpop.f32.mrb[0].mxu0
    %v4345 = vpop.f32.mrb[0].mxu0
    %v4346 = vadd.f32 %v4098, %v4345
    %v4347 = vpop.f32.mrb[0].mxu0
    %4348 = vmatprep.mubr.bf16.mxu0 %v3978
    %4349 = vmatmul.mubr.bf16.gmra.mrb[0].mxu0 %v3977
    %v4350 = vpop.f32.mrb[0].mxu0
    %v4351 = vadd.f32 %v4098, %v4350
    %v4352 = vpop.f32.mrb[0].mxu0
    %v4353 = vpop.f32.mrb[0].mxu0
    %v4354 = vadd.f32 %v4098, %v4353
    %v4355 = vpop.f32.mrb[0].mxu0
    %4356 = vmatprep.mubr.bf16.mxu0 %v3982
    %4357 = vmatmul.mubr.bf16.gmra.mrb[0].mxu0 %v3981
    %v4358 = vpop.f32.mrb[0].mxu0
    %v4359 = vadd.f32 %v4098, %v4358
    %v4360 = vpop.f32.mrb[0].mxu0
    %v4361 = vpop.f32.mrb[0].mxu0
    %v4362 = vadd.f32 %v4098, %v4361
    %v4363 = vpop.f32.mrb[0].mxu0
    %4364 = vmatprep.mubr.bf16.mxu0 %v3986
    %4365 = vmatmul.mubr.bf16.gmra.mrb[0].mxu0 %v3985
    %v4366 = vpop.f32.mrb[0].mxu0
    %v4367 = vadd.f32 %v4098, %v4366
    %v4368 = vpop.f32.mrb[0].mxu0
    %v4369 = vpop.f32.mrb[0].mxu0
    %v4370 = vadd.f32 %v4098, %v4369
    %v4371 = vpop.f32.mrb[0].mxu0
    %4372 = vmatprep.mubr.bf16.mxu0 %v3990
    %4373 = vmatmul.mubr.bf16.gmra.mrb[0].mxu0 %v3989
    %v4374 = vpop.f32.mrb[0].mxu0
    %v4375 = vadd.f32 %v4098, %v4374
    %v4376 = vpop.f32.mrb[0].mxu0
    %v4377 = vpop.f32.mrb[0].mxu0
    %v4378 = vadd.f32 %v4098, %v4377
    %v4379 = vpop.f32.mrb[0].mxu0
    %4380 = vmatprep.mubr.bf16.mxu0 %v3994
    %4381 = vmatmul.mubr.bf16.gmra.mrb[0].mxu0 %v3993
    %v4382 = vpop.f32.mrb[0].mxu0
    %v4383 = vadd.f32 %v4098, %v4382
    %v4384 = vpop.f32.mrb[0].mxu0
    %v4385 = vpop.f32.mrb[0].mxu0
    %v4386 = vadd.f32 %v4098, %v4385
    %v4387 = vpop.f32.mrb[0].mxu0
    %4388 = vmatprep.mubr.bf16.mxu0 %v3998
    %4389 = vmatmul.mubr.bf16.gmra.mrb[0].mxu0 %v3997
    %v4390 = vpop.f32.mrb[0].mxu0
    %v4391 = vadd.f32 %v4098, %v4390
    %v4392 = vpop.f32.mrb[0].mxu0
    %v4393 = vpop.f32.mrb[0].mxu0
    %v4394 = vadd.f32 %v4098, %v4393
    %v4395 = vpop.f32.mrb[0].mxu0
    %4396 = vmatprep.mubr.bf16.mxu0 %v4002
    %4397 = vmatmul.mubr.bf16.gmra.mrb[0].mxu0 %v4001
    %v4398 = vpop.f32.mrb[0].mxu0
    %v4399 = vadd.f32 %v4098, %v4398
    %v4400 = vpop.f32.mrb[0].mxu0
    %v4401 = vpop.f32.mrb[0].mxu0
    %v4402 = vadd.f32 %v4098, %v4401
    %v4403 = vpop.f32.mrb[0].mxu0
    %4404 = vmatprep.mubr.bf16.mxu0 %v4006
    %4405 = vmatmul.mubr.bf16.gmra.mrb[0].mxu0 %v4005
    %v4406 = vpop.f32.mrb[0].mxu0
    %v4407 = vadd.f32 %v4098, %v4406
    %v4408 = vpop.f32.mrb[0].mxu0
    %v4409 = vpop.f32.mrb[0].mxu0
    %v4410 = vadd.f32 %v4098, %v4409
    %v4411 = vpop.f32.mrb[0].mxu0
    %4412 = vmatprep.mubr.bf16.mxu0 %v4010
    %4413 = vmatmul.mubr.bf16.gmra.mrb[0].mxu0 %v4009
    %v4414 = vpop.f32.mrb[0].mxu0
    %v4415 = vadd.f32 %v4098, %v4414
    %v4416 = vpop.f32.mrb[0].mxu0
    %v4417 = vpop.f32.mrb[0].mxu0
    %v4418 = vadd.f32 %v4098, %v4417
    %v4419 = vpop.f32.mrb[0].mxu0
    %4420 = vmatprep.mubr.bf16.mxu0 %v4014
    %4421 = vmatmul.mubr.bf16.gmra.mrb[0].mxu0 %v4013
    %v4422 = vpop.f32.mrb[0].mxu0
    %v4423 = vadd.f32 %v4098, %v4422
    %v4424 = vpop.f32.mrb[0].mxu0
    %v4425 = vpop.f32.mrb[0].mxu0
    %v4426 = vadd.f32 %v4098, %v4425
    %v4427 = vpop.f32.mrb[0].mxu0
    %4428 = vmatprep.mubr.bf16.mxu0 %v4018
    %4429 = vmatmul.mubr.bf16.gmra.mrb[0].mxu0 %v4017
    %v4430 = vpop.f32.mrb[0].mxu0
    %v4431 = vadd.f32 %v4098, %v4430
    %v4432 = vpop.f32.mrb[0].mxu0
    %v4433 = vpop.f32.mrb[0].mxu0
    %v4434 = vadd.f32 %v4098, %v4433
    %v4435 = vpop.f32.mrb[0].mxu0
    %4436 = vmatprep.mubr.bf16.mxu0 %v4022
    %4437 = vmatmul.mubr.bf16.gmra.mrb[0].mxu0 %v4021
    %v4438 = vpop.f32.mrb[0].mxu0
    %v4439 = vadd.f32 %v4098, %v4438
    %v4440 = vpop.f32.mrb[0].mxu0
    %v4441 = vpop.f32.mrb[0].mxu0
    %v4442 = vadd.f32 %v4098, %v4441
    %v4443 = vpop.f32.mrb[0].mxu0
    %4444 = vmatprep.mubr.bf16.mxu0 %v4026
    %4445 = vmatmul.mubr.bf16.gmra.mrb[0].mxu0 %v4025
    %v4446 = vpop.f32.mrb[0].mxu0
    %v4447 = vadd.f32 %v4098, %v4446
    %v4448 = vpop.f32.mrb[0].mxu0
    %v4449 = vpop.f32.mrb[0].mxu0
    %v4450 = vadd.f32 %v4098, %v4449
    %v4451 = vpop.f32.mrb[0].mxu0
    %4452 = vdwg.mxu0
    %4453 = vmatprep.subr.bf16.mxu0 0
    %4454 = vmatpush1.bf16.msra.mxu0 %v4244
    %4455 = vmatprep.subr.bf16.mxu0 0
    %4456 = vmatpush1.bf16.msra.mxu0 %v4245
    %4457 = vmatprep.subr.bf16.mxu0 0
    %4458 = vmatpush1.bf16.msra.mxu0 %v4246
    %4459 = vmatprep.subr.bf16.mxu0 0
    %4460 = vmatpush1.bf16.msra.mxu0 %v4247
    %4461 = vmatprep.subr.bf16.mxu0 0
    %4462 = vmatpush1.bf16.msra.mxu0 %v4248
    %4463 = vmatprep.subr.bf16.mxu0 0
    %4464 = vmatpush1.bf16.msra.mxu0 %v4249
    %4465 = vmatprep.subr.bf16.mxu0 0
    %4466 = vmatpush1.bf16.msra.mxu0 %v4250
    %4467 = vmatprep.subr.bf16.mxu0 0
    %4468 = vmatpush1.bf16.msra.mxu0 %v4251
    %4469 = vmatprep.subr.bf16.mxu0 0
    %4470 = vmatpush1.bf16.msra.mxu0 %v4252
    %4471 = vmatprep.subr.bf16.mxu0 0
    %4472 = vmatpush1.bf16.msra.mxu0 %v4253
    %4473 = vmatprep.subr.bf16.mxu0 0
    %4474 = vmatpush1.bf16.msra.mxu0 %v4254
    %4475 = vmatprep.subr.bf16.mxu0 0
    %4476 = vmatpush1.bf16.msra.mxu0 %v4255
    %4477 = vmatprep.subr.bf16.mxu0 0
    %4478 = vmatpush1.bf16.msra.mxu0 %v4256
    %4479 = vmatprep.subr.bf16.mxu0 0
    %4480 = vmatpush1.bf16.msra.mxu0 %v4257
    %4481 = vmatprep.subr.bf16.mxu0 0
    %4482 = vmatpush1.bf16.msra.mxu0 %v4258
    %4483 = vmatprep.subr.bf16.mxu0 0
    %4484 = vmatpush1.bf16.msra.mxu0 %v4259
    %4485 = vmatprep.mubr.bf16.mxu0 %v3968
    %4486 = vmatmul.mubr.bf16.gmra.mrb[0].mxu0 %v3967
    %v4487 = vpop.f32.mrb[0].mxu0
    %v4488 = vadd.f32 %v4327, %v4487
    %v4489 = vpop.f32.mrb[0].mxu0
    %v4490 = vpop.f32.mrb[0].mxu0
    %v4491 = vadd.f32 %v4330, %v4490
    %v4492 = vpop.f32.mrb[0].mxu0
    %4493 = vmatprep.mubr.bf16.mxu0 %v3972
    %4494 = vmatmul.mubr.bf16.gmra.mrb[0].mxu0 %v3971
    %v4495 = vpop.f32.mrb[0].mxu0
    %v4496 = vadd.f32 %v4335, %v4495
    %v4497 = vpop.f32.mrb[0].mxu0
    %v4498 = vpop.f32.mrb[0].mxu0
    %v4499 = vadd.f32 %v4338, %v4498
    %v4500 = vpop.f32.mrb[0].mxu0
    %4501 = vmatprep.mubr.bf16.mxu0 %v3976
    %4502 = vmatmul.mubr.bf16.gmra.mrb[0].mxu0 %v3975
    %v4503 = vpop.f32.mrb[0].mxu0
    %v4504 = vadd.f32 %v4343, %v4503
    %v4505 = vpop.f32.mrb[0].mxu0
    %v4506 = vpop.f32.mrb[0].mxu0
    %v4507 = vadd.f32 %v4346, %v4506
    %v4508 = vpop.f32.mrb[0].mxu0
    %4509 = vmatprep.mubr.bf16.mxu0 %v3980
    %4510 = vmatmul.mubr.bf16.gmra.mrb[0].mxu0 %v3979
    %v4511 = vpop.f32.mrb[0].mxu0
    %v4512 = vadd.f32 %v4351, %v4511
    %v4513 = vpop.f32.mrb[0].mxu0
    %v4514 = vpop.f32.mrb[0].mxu0
    %v4515 = vadd.f32 %v4354, %v4514
    %v4516 = vpop.f32.mrb[0].mxu0
    %4517 = vmatprep.mubr.bf16.mxu0 %v3984
    %4518 = vmatmul.mubr.bf16.gmra.mrb[0].mxu0 %v3983
    %v4519 = vpop.f32.mrb[0].mxu0
    %v4520 = vadd.f32 %v4359, %v4519
    %v4521 = vpop.f32.mrb[0].mxu0
    %v4522 = vpop.f32.mrb[0].mxu0
    %v4523 = vadd.f32 %v4362, %v4522
    %v4524 = vpop.f32.mrb[0].mxu0
    %4525 = vmatprep.mubr.bf16.mxu0 %v3988
    %4526 = vmatmul.mubr.bf16.gmra.mrb[0].mxu0 %v3987
    %v4527 = vpop.f32.mrb[0].mxu0
    %v4528 = vadd.f32 %v4367, %v4527
    %v4529 = vpop.f32.mrb[0].mxu0
    %v4530 = vpop.f32.mrb[0].mxu0
    %v4531 = vadd.f32 %v4370, %v4530
    %v4532 = vpop.f32.mrb[0].mxu0
    %4533 = vmatprep.mubr.bf16.mxu0 %v3992
    %4534 = vmatmul.mubr.bf16.gmra.mrb[0].mxu0 %v3991
    %v4535 = vpop.f32.mrb[0].mxu0
    %v4536 = vadd.f32 %v4375, %v4535
    %v4537 = vpop.f32.mrb[0].mxu0
    %v4538 = vpop.f32.mrb[0].mxu0
    %v4539 = vadd.f32 %v4378, %v4538
    %v4540 = vpop.f32.mrb[0].mxu0
    %4541 = vmatprep.mubr.bf16.mxu0 %v3996
    %4542 = vmatmul.mubr.bf16.gmra.mrb[0].mxu0 %v3995
    %v4543 = vpop.f32.mrb[0].mxu0
    %v4544 = vadd.f32 %v4383, %v4543
    %v4545 = vpop.f32.mrb[0].mxu0
    %v4546 = vpop.f32.mrb[0].mxu0
    %v4547 = vadd.f32 %v4386, %v4546
    %v4548 = vpop.f32.mrb[0].mxu0
    %4549 = vmatprep.mubr.bf16.mxu0 %v4000
    %4550 = vmatmul.mubr.bf16.gmra.mrb[0].mxu0 %v3999
    %v4551 = vpop.f32.mrb[0].mxu0
    %v4552 = vadd.f32 %v4391, %v4551
    %v4553 = vpop.f32.mrb[0].mxu0
    %v4554 = vpop.f32.mrb[0].mxu0
    %v4555 = vadd.f32 %v4394, %v4554
    %v4556 = vpop.f32.mrb[0].mxu0
    %4557 = vmatprep.mubr.bf16.mxu0 %v4004
    %4558 = vmatmul.mubr.bf16.gmra.mrb[0].mxu0 %v4003
    %v4559 = vpop.f32.mrb[0].mxu0
    %v4560 = vadd.f32 %v4399, %v4559
    %v4561 = vpop.f32.mrb[0].mxu0
    %v4562 = vpop.f32.mrb[0].mxu0
    %v4563 = vadd.f32 %v4402, %v4562
    %v4564 = vpop.f32.mrb[0].mxu0
    %4565 = vmatprep.mubr.bf16.mxu0 %v4008
    %4566 = vmatmul.mubr.bf16.gmra.mrb[0].mxu0 %v4007
    %v4567 = vpop.f32.mrb[0].mxu0
    %v4568 = vadd.f32 %v4407, %v4567
    %v4569 = vpop.f32.mrb[0].mxu0
    %v4570 = vpop.f32.mrb[0].mxu0
    %v4571 = vadd.f32 %v4410, %v4570
    %v4572 = vpop.f32.mrb[0].mxu0
    %4573 = vmatprep.mubr.bf16.mxu0 %v4012
    %4574 = vmatmul.mubr.bf16.gmra.mrb[0].mxu0 %v4011
    %v4575 = vpop.f32.mrb[0].mxu0
    %v4576 = vadd.f32 %v4415, %v4575
    %v4577 = vpop.f32.mrb[0].mxu0
    %v4578 = vpop.f32.mrb[0].mxu0
    %v4579 = vadd.f32 %v4418, %v4578
    %v4580 = vpop.f32.mrb[0].mxu0
    %4581 = vmatprep.mubr.bf16.mxu0 %v4016
    %4582 = vmatmul.mubr.bf16.gmra.mrb[0].mxu0 %v4015
    %v4583 = vpop.f32.mrb[0].mxu0
    %v4584 = vadd.f32 %v4423, %v4583
    %v4585 = vpop.f32.mrb[0].mxu0
    %v4586 = vpop.f32.mrb[0].mxu0
    %v4587 = vadd.f32 %v4426, %v4586
    %v4588 = vpop.f32.mrb[0].mxu0
    %4589 = vmatprep.mubr.bf16.mxu0 %v4020
    %4590 = vmatmul.mubr.bf16.gmra.mrb[0].mxu0 %v4019
    %v4591 = vpop.f32.mrb[0].mxu0
    %v4592 = vadd.f32 %v4431, %v4591
    %v4593 = vpop.f32.mrb[0].mxu0
    %v4594 = vpop.f32.mrb[0].mxu0
    %v4595 = vadd.f32 %v4434, %v4594
    %v4596 = vpop.f32.mrb[0].mxu0
    %4597 = vmatprep.mubr.bf16.mxu0 %v4024
    %4598 = vmatmul.mubr.bf16.gmra.mrb[0].mxu0 %v4023
    %v4599 = vpop.f32.mrb[0].mxu0
    %v4600 = vadd.f32 %v4439, %v4599
    %v4601 = vpop.f32.mrb[0].mxu0
    %v4602 = vpop.f32.mrb[0].mxu0
    %v4603 = vadd.f32 %v4442, %v4602
    %v4604 = vpop.f32.mrb[0].mxu0
    %4605 = vmatprep.mubr.bf16.mxu0 %v4028
    %4606 = vmatmul.mubr.bf16.gmra.mrb[0].mxu0 %v4027
    %v4607 = vpop.f32.mrb[0].mxu0
    %v4608 = vadd.f32 %v4447, %v4607
    %v4609 = vpop.f32.mrb[0].mxu0
    %v4610 = vpop.f32.mrb[0].mxu0
    %v4611 = vadd.f32 %v4450, %v4610
    %v4612 = vpop.f32.mrb[0].mxu0
    %4613 = vdwg.mxu0
    %vm4614 = vcmask 523264
    %v4615 = vsel %vm4614, %v4488, -inf
    %v4616 = vsel %vm4614, %v4491, -inf
    %v4617 = vmax.f32 %v4615, %v4616
    %v4618 = vrot.slane %v4617, 4
    %v4619 = vmax.f32 %v4617, %v4618
    %v4620 = vrot.slane %v4619, 2
    %v4621 = vmax.f32 %v4619, %v4620
    %v4622 = vrot.slane %v4621, 1
    %v4623 = vmax.f32 %v4621, %v4622
    %v4624 = vsel %vm4614, %v4496, -inf
    %v4625 = vsel %vm4614, %v4499, -inf
    %v4626 = vmax.f32 %v4624, %v4625
    %v4627 = vrot.slane %v4626, 4
    %v4628 = vmax.f32 %v4626, %v4627
    %v4629 = vrot.slane %v4628, 2
    %v4630 = vmax.f32 %v4628, %v4629
    %v4631 = vrot.slane %v4630, 1
    %v4632 = vmax.f32 %v4630, %v4631
    %v4633 = vsel %vm4614, %v4504, -inf
    %v4634 = vsel %vm4614, %v4507, -inf
    %v4635 = vmax.f32 %v4633, %v4634
    %v4636 = vrot.slane %v4635, 4
    %v4637 = vmax.f32 %v4635, %v4636
    %v4638 = vrot.slane %v4637, 2
    %v4639 = vmax.f32 %v4637, %v4638
    %v4640 = vrot.slane %v4639, 1
    %v4641 = vmax.f32 %v4639, %v4640
    %v4642 = vsel %vm4614, %v4512, -inf
    %v4643 = vsel %vm4614, %v4515, -inf
    %v4644 = vmax.f32 %v4642, %v4643
    %v4645 = vrot.slane %v4644, 4
    %v4646 = vmax.f32 %v4644, %v4645
    %v4647 = vrot.slane %v4646, 2
    %v4648 = vmax.f32 %v4646, %v4647
    %v4649 = vrot.slane %v4648, 1
    %v4650 = vmax.f32 %v4648, %v4649
    %v4651 = vsel %vm4614, %v4520, -inf
    %v4652 = vsel %vm4614, %v4523, -inf
    %v4653 = vmax.f32 %v4651, %v4652
    %v4654 = vrot.slane %v4653, 4
    %v4655 = vmax.f32 %v4653, %v4654
    %v4656 = vrot.slane %v4655, 2
    %v4657 = vmax.f32 %v4655, %v4656
    %v4658 = vrot.slane %v4657, 1
    %v4659 = vmax.f32 %v4657, %v4658
    %v4660 = vsel %vm4614, %v4528, -inf
    %v4661 = vsel %vm4614, %v4531, -inf
    %v4662 = vmax.f32 %v4660, %v4661
    %v4663 = vrot.slane %v4662, 4
    %v4664 = vmax.f32 %v4662, %v4663
    %v4665 = vrot.slane %v4664, 2
    %v4666 = vmax.f32 %v4664, %v4665
    %v4667 = vrot.slane %v4666, 1
    %v4668 = vmax.f32 %v4666, %v4667
    %v4669 = vsel %vm4614, %v4536, -inf
    %v4670 = vsel %vm4614, %v4539, -inf
    %v4671 = vmax.f32 %v4669, %v4670
    %v4672 = vrot.slane %v4671, 4
    %v4673 = vmax.f32 %v4671, %v4672
    %v4674 = vrot.slane %v4673, 2
    %v4675 = vmax.f32 %v4673, %v4674
    %v4676 = vrot.slane %v4675, 1
    %v4677 = vmax.f32 %v4675, %v4676
    %v4678 = vsel %vm4614, %v4544, -inf
    %v4679 = vsel %vm4614, %v4547, -inf
    %v4680 = vmax.f32 %v4678, %v4679
    %v4681 = vrot.slane %v4680, 4
    %v4682 = vmax.f32 %v4680, %v4681
    %v4683 = vrot.slane %v4682, 2
    %v4684 = vmax.f32 %v4682, %v4683
    %v4685 = vrot.slane %v4684, 1
    %v4686 = vmax.f32 %v4684, %v4685
    %v4687 = vsel %vm4614, %v4552, -inf
    %v4688 = vsel %vm4614, %v4555, -inf
    %v4689 = vmax.f32 %v4687, %v4688
    %v4690 = vrot.slane %v4689, 4
    %v4691 = vmax.f32 %v4689, %v4690
    %v4692 = vrot.slane %v4691, 2
    %v4693 = vmax.f32 %v4691, %v4692
    %v4694 = vrot.slane %v4693, 1
    %v4695 = vmax.f32 %v4693, %v4694
    %v4696 = vsel %vm4614, %v4560, -inf
    %v4697 = vsel %vm4614, %v4563, -inf
    %v4698 = vmax.f32 %v4696, %v4697
    %v4699 = vrot.slane %v4698, 4
    %v4700 = vmax.f32 %v4698, %v4699
    %v4701 = vrot.slane %v4700, 2
    %v4702 = vmax.f32 %v4700, %v4701
    %v4703 = vrot.slane %v4702, 1
    %v4704 = vmax.f32 %v4702, %v4703
    %v4705 = vsel %vm4614, %v4568, -inf
    %v4706 = vsel %vm4614, %v4571, -inf
    %v4707 = vmax.f32 %v4705, %v4706
    %v4708 = vrot.slane %v4707, 4
    %v4709 = vmax.f32 %v4707, %v4708
    %v4710 = vrot.slane %v4709, 2
    %v4711 = vmax.f32 %v4709, %v4710
    %v4712 = vrot.slane %v4711, 1
    %v4713 = vmax.f32 %v4711, %v4712
    %v4714 = vsel %vm4614, %v4576, -inf
    %v4715 = vsel %vm4614, %v4579, -inf
    %v4716 = vmax.f32 %v4714, %v4715
    %v4717 = vrot.slane %v4716, 4
    %v4718 = vmax.f32 %v4716, %v4717
    %v4719 = vrot.slane %v4718, 2
    %v4720 = vmax.f32 %v4718, %v4719
    %v4721 = vrot.slane %v4720, 1
    %v4722 = vmax.f32 %v4720, %v4721
    %v4723 = vsel %vm4614, %v4584, -inf
    %v4724 = vsel %vm4614, %v4587, -inf
    %v4725 = vmax.f32 %v4723, %v4724
    %v4726 = vrot.slane %v4725, 4
    %v4727 = vmax.f32 %v4725, %v4726
    %v4728 = vrot.slane %v4727, 2
    %v4729 = vmax.f32 %v4727, %v4728
    %v4730 = vrot.slane %v4729, 1
    %v4731 = vmax.f32 %v4729, %v4730
    %v4732 = vsel %vm4614, %v4592, -inf
    %v4733 = vsel %vm4614, %v4595, -inf
    %v4734 = vmax.f32 %v4732, %v4733
    %v4735 = vrot.slane %v4734, 4
    %v4736 = vmax.f32 %v4734, %v4735
    %v4737 = vrot.slane %v4736, 2
    %v4738 = vmax.f32 %v4736, %v4737
    %v4739 = vrot.slane %v4738, 1
    %v4740 = vmax.f32 %v4738, %v4739
    %v4741 = vsel %vm4614, %v4600, -inf
    %v4742 = vsel %vm4614, %v4603, -inf
    %v4743 = vmax.f32 %v4741, %v4742
    %v4744 = vrot.slane %v4743, 4
    %v4745 = vmax.f32 %v4743, %v4744
    %v4746 = vrot.slane %v4745, 2
    %v4747 = vmax.f32 %v4745, %v4746
    %v4748 = vrot.slane %v4747, 1
    %v4749 = vmax.f32 %v4747, %v4748
    %v4750 = vsel %vm4614, %v4608, -inf
    %v4751 = vsel %vm4614, %v4611, -inf
    %v4752 = vmax.f32 %v4750, %v4751
    %v4753 = vrot.slane %v4752, 4
    %v4754 = vmax.f32 %v4752, %v4753
    %v4755 = vrot.slane %v4754, 2
    %v4756 = vmax.f32 %v4754, %v4755
    %v4757 = vrot.slane %v4756, 1
    %v4758 = vmax.f32 %v4756, %v4757
    %v4775 = vsel %vm2350, %v4632, %v4623
    %v4776 = vsel %vm2352, %v4641, %v4775
    %v4777 = vsel %vm2354, %v4650, %v4776
    %v4778 = vsel %vm2356, %v4659, %v4777
    %v4779 = vsel %vm2358, %v4668, %v4778
    %v4780 = vsel %vm2360, %v4677, %v4779
    %v4781 = vsel %vm2362, %v4686, %v4780
    %v4782 = vsel %vm2350, %v4704, %v4695
    %v4783 = vsel %vm2352, %v4713, %v4782
    %v4784 = vsel %vm2354, %v4722, %v4783
    %v4785 = vsel %vm2356, %v4731, %v4784
    %v4786 = vsel %vm2358, %v4740, %v4785
    %v4787 = vsel %vm2360, %v4749, %v4786
    %v4788 = vsel %vm2362, %v4758, %v4787
    %4791 = vst.msk [vmem:[#allocation7] sm:$0xff] %vm4614, %v4781
    %4792 = vst.msk [vmem:[#allocation7 + $0x8] sm:$0xff] %vm4614, %v4788
    // Predicated region
    $region66: #{tpu_custom_call.1} parent=1 // pred_check
      _
    $region67: #{tpu_custom_call.1} parent=1 // pred_check_branch
      %4794 = sbr.rel (0) target = $region69
    $region68: #{tpu_custom_call.1} parent=1 // pred_region
      %s4796 = ssub.s32 256, 256
      %4797 = vsyncadd [#allocation4], %s4796
      %s4798 = sshll.u32 [#allocation7], 4
      %s4799 = int_to_ptr.vmem [resolvable:$true] %s4798
      %4804 = dma.vmem_to_hbm [thread:$0]  %s4799, 256, %s14, [#allocation4], 128, 128, 8
    $region69: #{tpu_custom_call.1} parent=1 // pred_fallthru
      _
    // Predicated region
    $region70: #{tpu_custom_call.1} parent=1 // pred_check
      _
    $region71: #{tpu_custom_call.1} parent=1 // pred_check_branch
      %4806 = sbr.rel (0) target = $region73
    $region72: #{tpu_custom_call.1} parent=1 // pred_region
      %4807 = dma.done [#allocation4], 256
    $region73: #{tpu_custom_call.1} parent=1 // pred_fallthru
      _
    %4808 = vsyncpa [#allocation3], 1
    %4809 = vsyncpa [#allocation6], 1
    %4810 = vsyncpa [#allocation4], 1

</llo_original>
